<compile_context>
chip_gen: v7x
topology: tpu7x:2x2x1
jax: 0.10.0
libtpu: 0.0.40
codegen_flags: <defaults>
</compile_context>

<pallas_src>
import functools

import jax
import jax.numpy as jnp
from jax.experimental import pallas as pl
from jax.experimental.pallas import tpu as pltpu


# ---------------------------------------------------------------------------
# Helpers
# ---------------------------------------------------------------------------
def _round_up(n, m):
    return ((n + m - 1) // m) * m


def _vmem_capacity_bytes():
    """Physical VMEM per core; conservative fallback compiles everywhere."""
    try:
        cap = int(pltpu.get_tpu_info().vmem_capacity_bytes)
        if cap > 0:
            return cap
    except Exception:
        pass
    try:
        kind = jax.devices()[0].device_kind.lower()
        if ("v7" in kind) or ("tpu7" in kind):
            return 64 << 20
        if ("v5" in kind) or ("v6" in kind):
            return 128 << 20
    except Exception:
        pass
    return 64 << 20  # conservative (v7x-sized); always safe to request


def _vmem_budget_cap(vmem_cap):
    """How much scoped VMEM we allow ourselves to request."""
    return min(int(vmem_cap * 0.75), vmem_cap - (8 << 20))


def _is_multi_tc_chip():
    """True on chips with 2 TensorCores sharing the grid (v7x)."""
    try:
        kind = jax.devices()[0].device_kind.lower()
        return ("v7" in kind) or ("tpu7" in kind)
    except Exception:
        return False


def _plan_recurrence(T, Bp, Hp, vmem_cap, two_tc):
    """Pick (batch_block, t_tile, vmem_limit) from the chip's VMEM budget."""
    if two_tc and Bp >= 16 and Bp % 16 == 0:
        bb = Bp // 2          # split batch across the 2 TensorCores
    else:
        bb = Bp
    cap = _vmem_budget_cap(vmem_cap)
    headroom = 2 << 20
    fixed = Hp * 3 * Hp * 2   # W_hh VMEM scratch (bf16, single-buffered)
    fixed += 2 * Hp * 4       # b_hn (double-buffered, tiny)
    fixed += bb * Hp * 4      # carried hidden state (f32)
    per_t = 2 * bb * 3 * Hp * 4   # gx tile  (f32, double-buffered)
    per_t += 2 * bb * Hp * 2      # out tile (bf16, double-buffered)
    budget = cap - fixed - headroom
    t_tile = budget // per_t if budget > 0 else 1
    t_tile = int(max(1, min(t_tile, 128, T)))
    needed = fixed + per_t * t_tile + headroom
    vmem_limit = int(min(max(needed + needed // 4, 16 << 20), cap))
    vmem_limit = max(vmem_limit, needed)
    return bb, t_tile, vmem_limit


# ---------------------------------------------------------------------------
# Pallas kernels
# ---------------------------------------------------------------------------
def _dense_kernel(x_ref, wT_ref, b_ref, o_ref):
    """(rt, K) @ (K, tn) + (1, tn); bf16 MXU feed, f32 accumulate."""
    o_ref[...] = (
        jnp.dot(x_ref[...], wT_ref[...], preferred_element_type=jnp.float32)
        + b_ref[...]
    ).astype(o_ref.dtype)


def _sigmoid(x):
    # sigmoid(x) == 0.5 * tanh(0.5 * x) + 0.5 : one EUP op instead of exp+div.
    return 0.5 * jnp.tanh(0.5 * x) + 0.5


def _gru_recurrence_kernel(gx_ref, whh_hbm, bhn_ref, out_ref,
                           w_scr, dma_sem, h_scr, *, t_tile, unroll):
    """Time-tiled GRU recurrence (input projection hoisted into gx).

    gx_ref:  (Tt, bb, 3Hp) precomputed x@W_ih + b_ih + b_hh[r,z]   (f32)
    whh_hbm: (Hp, 3Hp)     hidden->hidden weights, in HBM (pl.ANY) (bf16)
    bhn_ref: (1, Hp)       hidden bias of the n-gate only          (f32)
    out_ref: (Tt, bb, Hp)  hidden state per time step              (bf16)
    w_scr:   (Hp, 3Hp)     single-buffered resident W_hh           (bf16)
    h_scr:   (bb, Hp)      carried hidden state                    (f32)
    """
    t_blk = pl.program_id(1)

    @pl.when(t_blk == 0)
    def _():
        cp = pltpu.make_async_copy(whh_hbm, w_scr, dma_sem)
        cp.start()
        cp.wait()
        h_scr[...] = jnp.zeros_like(h_scr)

    Hp = h_scr.shape[-1]
    b_n = jnp.broadcast_to(bhn_ref[...], h_scr.shape)     # hoisted broadcast

    def step(i, carry):
        h_prev = h_scr[...]                                # (bb, Hp) f32
        gh = jnp.dot(h_prev.astype(jnp.bfloat16), w_scr[...],
                     preferred_element_type=jnp.float32)   # (bb, 3Hp) f32
        gx = gx_ref[i]                                     # (bb, 3Hp) f32
        r = _sigmoid(gx[:, 0:Hp] + gh[:, 0:Hp])
        z = _sigmoid(gx[:, Hp:2 * Hp] + gh[:, Hp:2 * Hp])
        n = jnp.tanh(gx[:, 2 * Hp:] + r * (gh[:, 2 * Hp:] + b_n))
        h_new = n + z * (h_prev - n)                       # == (1-z)*n + z*h
        h_scr[...] = h_new
        out_ref[i] = h_new.astype(out_ref.dtype)
        return carry

    jax.lax.fori_loop(0, t_tile, step, 0, unroll=unroll)


# ---------------------------------------------------------------------------
# pallas_call wrappers
# ---------------------------------------------------------------------------
def _dense(x2d, wT, b, *, vmem_cap, out_dtype=jnp.float32):
    """x2d: (N, K) bf16; wT: (K, Kout) bf16; b: (1, Kout) f32 -> (N, Kout)."""
    N, K = x2d.shape
    Kout = wT.shape[1]
    cap = _vmem_budget_cap(vmem_cap)
    xb = jnp.dtype(x2d.dtype).itemsize
    wb = jnp.dtype(wT.dtype).itemsize
    ob = jnp.dtype(out_dtype).itemsize

    # Lane (output-column) tile: lane-dense multiple of 128, <= 1024.
    tn = Kout
    if Kout > 1024:
        tn = 128
        for cand in range(1024, 127, -128):
            if Kout % cand == 0:
                tn = cand
                break

    headroom = 2 << 20

    def need(rt_):
        return 2 * (rt_ * K * xb + K * tn * wb + tn * 4 + rt_ * tn * ob) + headroom

    rt = 512
    while rt > 16 and need(rt) > cap:
        rt //= 2

    Np = _round_up(N, 8)
    if Np <= rt:
        rt, Ng = Np, Np
    else:
        Ng = _round_up(Np, rt)
    xp = jnp.pad(x2d, ((0, Ng - N), (0, 0))) if Ng != N else x2d

    vmem_limit = int(min(max(need(rt) + need(rt) // 4, 16 << 20), cap))
    vmem_limit = max(vmem_limit, need(rt))

    out = pl.pallas_call(
        _dense_kernel,
        out_shape=jax.ShapeDtypeStruct((Ng, Kout), out_dtype),
        grid_spec=pltpu.PrefetchScalarGridSpec(
            num_scalar_prefetch=0,
            grid=(Ng // rt, Kout // tn),
            in_specs=[
                pl.BlockSpec((rt, K), lambda i, j: (i, 0)),
                pl.BlockSpec((K, tn), lambda i, j: (0, j)),
                pl.BlockSpec((1, tn), lambda i, j: (0, j)),
            ],
            out_specs=pl.BlockSpec((rt, tn), lambda i, j: (i, j)),
        ),
        compiler_params=pltpu.CompilerParams(
            dimension_semantics=("parallel", "parallel"),
            vmem_limit_bytes=vmem_limit,
        ),
    )(xp, wT, b)
    return out[:N]


def _gru_recurrence(gx_tm, w_hhT, b_hn, *, t_tile, bb, vmem_limit):
    """gx_tm: (Tp, Bp, 3Hp) f32 -> hidden states (Tp, Bp, Hp) bf16."""
    Tp, Bp, threeHp = gx_tm.shape
    Hp = threeHp // 3
    nb = Bp // bb
    nt = Tp // t_tile
    unroll = max(1, min(t_tile, 8))
    kernel = functools.partial(_gru_recurrence_kernel, t_tile=t_tile, unroll=unroll)
    return pl.pallas_call(
        kernel,
        out_shape=jax.ShapeDtypeStruct((Tp, Bp, Hp), jnp.bfloat16),
        grid_spec=pltpu.PrefetchScalarGridSpec(
            num_scalar_prefetch=0,
            grid=(nb, nt),
            in_specs=[
                pl.BlockSpec((t_tile, bb, threeHp), lambda b, t: (t, b, 0)),
                pl.BlockSpec(memory_space=pl.ANY),      # W_hh stays in HBM
                pl.BlockSpec((1, Hp), lambda b, t: (0, 0)),
            ],
            out_specs=pl.BlockSpec((t_tile, bb, Hp), lambda b, t: (t, b, 0)),
            scratch_shapes=[
                pltpu.VMEM((Hp, threeHp), jnp.bfloat16),   # resident W_hh (1x)
                pltpu.SemaphoreType.DMA(()),
                pltpu.VMEM((bb, Hp), jnp.float32),         # carried h
            ],
        ),
        compiler_params=pltpu.CompilerParams(
            # batch blocks are independent (2 TCs on v7x); time is a true
            # recurrence and must stay sequential.
            dimension_semantics=("parallel", "arbitrary"),
            vmem_limit_bytes=vmem_limit,
        ),
    )(gx_tm, w_hhT, b_hn)


@functools.partial(jax.jit, static_argnames=("output_size",))
def rnn_model_forward(x, params, *, output_size):
    """x: (B, T, input_size) batch-first. Returns (B, T, output_size)."""
    B, T, _ = x.shape
    layers = params["layers"]
    Hp = layers[0]["w_hhT"].shape[0]
    Bp = max(8, _round_up(B, 8))

    vmem_cap = _vmem_capacity_bytes()
    two_tc = _is_multi_tc_chip()
    bb, t_tile, vmem_limit = _plan_recurrence(T, Bp, Hp, vmem_cap, two_tc)
    Tp = _round_up(T, t_tile)   # pad T so any sequence length gets big tiles

    x_tm = jnp.transpose(x, (1, 0, 2)).astype(jnp.bfloat16)   # (T, B, I)
    h = jnp.pad(x_tm, ((0, Tp - T), (0, Bp - B), (0, 0)))     # (Tp, Bp, I)

    for lp in layers:
        in_dim = h.shape[-1]
        # Hoisted, fully parallel input projection (one big MXU matmul).
        gx = _dense(h.reshape(Tp * Bp, in_dim), lp["w_ihT"], lp["b_gx"],
                    vmem_cap=vmem_cap)
        gx = gx.reshape(Tp, Bp, 3 * Hp)
        # Serial part: only h @ W_hh per step, time-tiled, bf16 writeback.
        h = _gru_recurrence(gx, lp["w_hhT"], lp["b_hn"],
                            t_tile=t_tile, bb=bb, vmem_limit=vmem_limit)
        # TODO(synk): inter-layer dropout (training mode) not implemented.

    # Dropout after the RNN: identity in eval mode.
    y = _dense(h.reshape(Tp * Bp, Hp), params["fc_wT"], params["fc_b"],
               vmem_cap=vmem_cap)                              # (Tp*Bp, Op) f32
    y = y.reshape(Tp, Bp, -1)[:T, :B, :output_size]            # (T, B, O)
    return jnp.transpose(y, (1, 0, 2))                         # (B, T, O)


# ---------------------------------------------------------------------------
# Parameter init (mirrors PyTorch uniform(-1/sqrt(H), 1/sqrt(H))) + preprocess
# ---------------------------------------------------------------------------
def init_params(key, input_size, hidden_size, output_size, num_layers):
    H = hidden_size
    bound = 1.0 / float(H) ** 0.5
    layers = []
    for l in range(num_layers):
        in_dim = input_size if l == 0 else hidden_size
        key, k1, k2, k3, k4 = jax.random.split(key, 5)
        layers.append(dict(
            w_ih=jax.random.uniform(k1, (3 * H, in_dim), jnp.float32, -bound, bound),
            w_hh=jax.random.uniform(k2, (3 * H, H), jnp.float32, -bound, bound),
            b_ih=jax.random.uniform(k3, (3 * H,), jnp.float32, -bound, bound),
            b_hh=jax.random.uniform(k4, (3 * H,), jnp.float32, -bound, bound),
        ))
    key, k5, k6 = jax.random.split(key, 3)
    fc_w = jax.random.uniform(k5, (output_size, H), jnp.float32, -bound, bound)
    fc_b = jax.random.uniform(k6, (output_size,), jnp.float32, -bound, bound)
    return dict(layers=tuple(layers), fc_w=fc_w, fc_b=fc_b)


def prepare_params(raw):
    """Pad gate/hidden/output widths to lane multiples, cast weights to bf16,
    and fold the r/z hidden biases into the precomputed-gx bias."""
    H = raw["layers"][0]["w_hh"].shape[1]
    Hp = _round_up(H, 128)
    O = raw["fc_w"].shape[0]
    Op = _round_up(O, 128)

    def gate_pad_cols(a):  # (..., 3H) -> (..., 3Hp), zero-pad each gate block
        lead = a.shape[:-1]
        a3 = a.reshape(lead + (3, H))
        pad = [(0, 0)] * (a3.ndim - 1) + [(0, Hp - H)]
        return jnp.pad(a3, pad).reshape(lead + (3 * Hp,))

    layers = []
    for l, lp in enumerate(raw["layers"]):
        w_ihT = lp["w_ih"].T                               # (in_dim, 3H)
        w_hhT = lp["w_hh"].T                               # (H, 3H)
        if l > 0:  # previous layer output is Hp-padded -> zero rows for pads
            w_ihT = jnp.pad(w_ihT, ((0, Hp - H), (0, 0)))
        w_hhT = jnp.pad(w_hhT, ((0, Hp - H), (0, 0)))
        b_gx = lp["b_ih"] + jnp.concatenate(
            [lp["b_hh"][: 2 * H], jnp.zeros((H,), jnp.float32)])
        layers.append(dict(
            w_ihT=gate_pad_cols(w_ihT).astype(jnp.bfloat16),
            b_gx=gate_pad_cols(b_gx)[None, :],
            w_hhT=gate_pad_cols(w_hhT).astype(jnp.bfloat16),
            b_hn=jnp.pad(lp["b_hh"][2 * H:], (0, Hp - H))[None, :],
        ))
    fc_wT = jnp.pad(raw["fc_w"].T, ((0, Hp - H), (0, Op - O))).astype(jnp.bfloat16)
    fc_b = jnp.pad(raw["fc_b"], (0, Op - O))[None, :]
    return dict(layers=tuple(layers), fc_wT=fc_wT, fc_b=fc_b)


# ---------------------------------------------------------------------------
# Pure-JAX reference (PyTorch GRU formulation, same bf16 weight/act feed)
# ---------------------------------------------------------------------------
def rnn_model_forward_ref(x, raw):
    B, T, _ = x.shape
    H = raw["layers"][0]["w_hh"].shape[1]
    h_seq = jnp.transpose(x, (1, 0, 2))                    # (T, B, I)
    for lp in raw["layers"]:
        w_ihT = lp["w_ih"].T.astype(jnp.bfloat16)
        w_hhT = lp["w_hh"].T.astype(jnp.bfloat16)
        b_ih, b_hh = lp["b_ih"], lp["b_hh"]

        def step(h, x_t, w_ihT=w_ihT, w_hhT=w_hhT, b_ih=b_ih, b_hh=b_hh):
            gx = jnp.dot(x_t.astype(jnp.bfloat16), w_ihT,
                         preferred_element_type=jnp.float32) + b_ih
            gh = jnp.dot(h.astype(jnp.bfloat16), w_hhT,
                         preferred_element_type=jnp.float32) + b_hh
            r = jax.nn.sigmoid(gx[:, :H] + gh[:, :H])
            z = jax.nn.sigmoid(gx[:, H:2 * H] + gh[:, H:2 * H])
            n = jnp.tanh(gx[:, 2 * H:] + r * gh[:, 2 * H:])
            h_new = (1.0 - z) * n + z * h
            return h_new, h_new

        h0 = jnp.zeros((B, H), jnp.float32)
        _, h_seq = jax.lax.scan(step, h0, h_seq)
    out_bt = jnp.transpose(h_seq, (1, 0, 2))               # (B, T, H)
    y = jnp.dot(out_bt.astype(jnp.bfloat16), raw["fc_w"].T.astype(jnp.bfloat16),
                preferred_element_type=jnp.float32) + raw["fc_b"]
    return y


# ---------------------------------------------------------------------------
if __name__ == "__main__":
    B, T = 2, 8
    input_size, hidden_size, output_size, num_layers = 16, 32, 8, 2

    key = jax.random.PRNGKey(0)
    key, kx, kp = jax.random.split(key, 3)
    x = jax.random.normal(kx, (B, T, input_size), jnp.float32)
    raw = init_params(kp, input_size, hidden_size, output_size, num_layers)
    params = prepare_params(raw)

    out = rnn_model_forward(x, params, output_size=output_size)
    out = jax.block_until_ready(out)

    ref = rnn_model_forward_ref(x, raw)
    assert out.shape == (B, T, output_size), out.shape
    assert bool(jnp.all(jnp.isfinite(out)))
    err = float(jnp.max(jnp.abs(out - ref)))
    assert err < 5e-3, err   # bf16 weight/activation feed, f32 accumulation

    print("KERNEL_OK")
</pallas_src>

<mosaic_0001>
module attributes {stable_mosaic.version = 11 : i64} {
  func.func @_dense_kernel(%arg0: i32, %arg1: i32, %arg2: memref<64x16xbf16, #tpu.memory_space<vmem>>, %arg3: memref<16x384xbf16, #tpu.memory_space<vmem>>, %arg4: memref<1x384xf32, #tpu.memory_space<vmem>>, %arg5: memref<64x384xf32, #tpu.memory_space<vmem>>) attributes {dimension_semantics = [#tpu.dimension_semantics<parallel>, #tpu.dimension_semantics<parallel>], iteration_bounds = array<i64: 1, 1>, scalar_prefetch = 0 : i64, scratch_operands = 0 : i64, tpu.core_type = #tpu.core_type<tc>, window_params = [{transform_indices = @transform_0, window_bounds = array<i64: 64, 16>}, {transform_indices = @transform_1, window_bounds = array<i64: 16, 384>}, {transform_indices = @transform_2, window_bounds = array<i64: 1, 384>}, {transform_indices = @transform_3, window_bounds = array<i64: 64, 384>}]} {
    %c0 = arith.constant 0 : index
    %c0_0 = arith.constant 0 : index
    %0 = vector.load %arg2[%c0, %c0_0] : memref<64x16xbf16, #tpu.memory_space<vmem>>, vector<64x16xbf16>
    %c0_1 = arith.constant 0 : index
    %c0_2 = arith.constant 0 : index
    %1 = vector.load %arg3[%c0_1, %c0_2] : memref<16x384xbf16, #tpu.memory_space<vmem>>, vector<16x384xbf16>
    %cst = arith.constant dense<0.000000e+00> : vector<64x384xf32>
    %2 = tpu.matmul %0, %1, %cst {dimension_numbers = #tpu.dot_dimension_numbers<[1], [0], [0], [1], [0, 0, 1, 1], [], []>} : vector<64x16xbf16>, vector<16x384xbf16>, vector<64x384xf32> -> vector<64x384xf32>
    %c0_3 = arith.constant 0 : index
    %c0_4 = arith.constant 0 : index
    %3 = vector.load %arg4[%c0_3, %c0_4] : memref<1x384xf32, #tpu.memory_space<vmem>>, vector<1x384xf32>
    %4 = vector.broadcast %3 : vector<1x384xf32> to vector<64x384xf32>
    %5 = arith.addf %2, %4 : vector<64x384xf32>
    %c0_5 = arith.constant 0 : index
    %c0_6 = arith.constant 0 : index
    %6 = vector.load %arg5[%c0_5, %c0_6] : memref<64x384xf32, #tpu.memory_space<vmem>>, vector<64x384xf32>
    tpu.vector_store %arg5[%c0_5, %c0_6], %5 {strides = array<i32>} : memref<64x384xf32, #tpu.memory_space<vmem>>, vector<64x384xf32>,
    return
  }
  func.func @transform_0(%arg0: i32, %arg1: i32) -> (i32, i32) {
    %c0_i32 = arith.constant 0 : i32
    %c0_i32_0 = arith.constant 0 : i32
    return %arg0, %c0_i32 : i32, i32
  }
  func.func @transform_1(%arg0: i32, %arg1: i32) -> (i32, i32) {
    %c0_i32 = arith.constant 0 : i32
    %c0_i32_0 = arith.constant 0 : i32
    return %c0_i32, %arg1 : i32, i32
  }
  func.func @transform_2(%arg0: i32, %arg1: i32) -> (i32, i32) {
    %c0_i32 = arith.constant 0 : i32
    %c0_i32_0 = arith.constant 0 : i32
    return %c0_i32, %arg1 : i32, i32
  }
  func.func @transform_3(%arg0: i32, %arg1: i32) -> (i32, i32) {
    %c0_i32 = arith.constant 0 : i32
    return %arg0, %arg1 : i32, i32
  }
}

module attributes {stable_mosaic.version = 11 : i64} {
  func.func @_dense_kernel(%arg0: i32, %arg1: i32, %arg2: memref<64x128xbf16, #tpu.memory_space<vmem>>, %arg3: memref<128x128xbf16, #tpu.memory_space<vmem>>, %arg4: memref<1x128xf32, #tpu.memory_space<vmem>>, %arg5: memref<64x128xf32, #tpu.memory_space<vmem>>) attributes {dimension_semantics = [#tpu.dimension_semantics<parallel>, #tpu.dimension_semantics<parallel>], iteration_bounds = array<i64: 1, 1>, scalar_prefetch = 0 : i64, scratch_operands = 0 : i64, tpu.core_type = #tpu.core_type<tc>, window_params = [{transform_indices = @transform_0, window_bounds = array<i64: 64, 128>}, {transform_indices = @transform_1, window_bounds = array<i64: 128, 128>}, {transform_indices = @transform_2, window_bounds = array<i64: 1, 128>}, {transform_indices = @transform_3, window_bounds = array<i64: 64, 128>}]} {
    %c0 = arith.constant 0 : index
    %c0_0 = arith.constant 0 : index
    %0 = vector.load %arg2[%c0, %c0_0] : memref<64x128xbf16, #tpu.memory_space<vmem>>, vector<64x128xbf16>
    %c0_1 = arith.constant 0 : index
    %c0_2 = arith.constant 0 : index
    %1 = vector.load %arg3[%c0_1, %c0_2] : memref<128x128xbf16, #tpu.memory_space<vmem>>, vector<128x128xbf16>
    %cst = arith.constant dense<0.000000e+00> : vector<64x128xf32>
    %2 = tpu.matmul %0, %1, %cst {dimension_numbers = #tpu.dot_dimension_numbers<[1], [0], [0], [1], [0, 0, 1, 1], [], []>} : vector<64x128xbf16>, vector<128x128xbf16>, vector<64x128xf32> -> vector<64x128xf32>
    %c0_3 = arith.constant 0 : index
    %c0_4 = arith.constant 0 : index
    %3 = vector.load %arg4[%c0_3, %c0_4] : memref<1x128xf32, #tpu.memory_space<vmem>>, vector<1x128xf32>
    %4 = vector.broadcast %3 : vector<1x128xf32> to vector<64x128xf32>
    %5 = arith.addf %2, %4 : vector<64x128xf32>
    %c0_5 = arith.constant 0 : index
    %c0_6 = arith.constant 0 : index
    %6 = vector.load %arg5[%c0_5, %c0_6] : memref<64x128xf32, #tpu.memory_space<vmem>>, vector<64x128xf32>
    tpu.vector_store %arg5[%c0_5, %c0_6], %5 {strides = array<i32>} : memref<64x128xf32, #tpu.memory_space<vmem>>, vector<64x128xf32>,
    return
  }
  func.func @transform_0(%arg0: i32, %arg1: i32) -> (i32, i32) {
    %c0_i32 = arith.constant 0 : i32
    %c0_i32_0 = arith.constant 0 : i32
    return %arg0, %c0_i32 : i32, i32
  }
  func.func @transform_1(%arg0: i32, %arg1: i32) -> (i32, i32) {
    %c0_i32 = arith.constant 0 : i32
    %c0_i32_0 = arith.constant 0 : i32
    return %c0_i32, %arg1 : i32, i32
  }
  func.func @transform_2(%arg0: i32, %arg1: i32) -> (i32, i32) {
    %c0_i32 = arith.constant 0 : i32
    %c0_i32_0 = arith.constant 0 : i32
    return %c0_i32, %arg1 : i32, i32
  }
  func.func @transform_3(%arg0: i32, %arg1: i32) -> (i32, i32) {
    %c0_i32 = arith.constant 0 : i32
    return %arg0, %arg1 : i32, i32
  }
}

module attributes {stable_mosaic.version = 11 : i64} {
  func.func @_dense_kernel(%arg0: i32, %arg1: i32, %arg2: memref<64x128xbf16, #tpu.memory_space<vmem>>, %arg3: memref<128x384xbf16, #tpu.memory_space<vmem>>, %arg4: memref<1x384xf32, #tpu.memory_space<vmem>>, %arg5: memref<64x384xf32, #tpu.memory_space<vmem>>) attributes {dimension_semantics = [#tpu.dimension_semantics<parallel>, #tpu.dimension_semantics<parallel>], iteration_bounds = array<i64: 1, 1>, scalar_prefetch = 0 : i64, scratch_operands = 0 : i64, tpu.core_type = #tpu.core_type<tc>, window_params = [{transform_indices = @transform_0, window_bounds = array<i64: 64, 128>}, {transform_indices = @transform_1, window_bounds = array<i64: 128, 384>}, {transform_indices = @transform_2, window_bounds = array<i64: 1, 384>}, {transform_indices = @transform_3, window_bounds = array<i64: 64, 384>}]} {
    %c0 = arith.constant 0 : index
    %c0_0 = arith.constant 0 : index
    %0 = vector.load %arg2[%c0, %c0_0] : memref<64x128xbf16, #tpu.memory_space<vmem>>, vector<64x128xbf16>
    %c0_1 = arith.constant 0 : index
    %c0_2 = arith.constant 0 : index
    %1 = vector.load %arg3[%c0_1, %c0_2] : memref<128x384xbf16, #tpu.memory_space<vmem>>, vector<128x384xbf16>
    %cst = arith.constant dense<0.000000e+00> : vector<64x384xf32>
    %2 = tpu.matmul %0, %1, %cst {dimension_numbers = #tpu.dot_dimension_numbers<[1], [0], [0], [1], [0, 0, 1, 1], [], []>} : vector<64x128xbf16>, vector<128x384xbf16>, vector<64x384xf32> -> vector<64x384xf32>
    %c0_3 = arith.constant 0 : index
    %c0_4 = arith.constant 0 : index
    %3 = vector.load %arg4[%c0_3, %c0_4] : memref<1x384xf32, #tpu.memory_space<vmem>>, vector<1x384xf32>
    %4 = vector.broadcast %3 : vector<1x384xf32> to vector<64x384xf32>
    %5 = arith.addf %2, %4 : vector<64x384xf32>
    %c0_5 = arith.constant 0 : index
    %c0_6 = arith.constant 0 : index
    %6 = vector.load %arg5[%c0_5, %c0_6] : memref<64x384xf32, #tpu.memory_space<vmem>>, vector<64x384xf32>
    tpu.vector_store %arg5[%c0_5, %c0_6], %5 {strides = array<i32>} : memref<64x384xf32, #tpu.memory_space<vmem>>, vector<64x384xf32>,
    return
  }
  func.func @transform_0(%arg0: i32, %arg1: i32) -> (i32, i32) {
    %c0_i32 = arith.constant 0 : i32
    %c0_i32_0 = arith.constant 0 : i32
    return %arg0, %c0_i32 : i32, i32
  }
  func.func @transform_1(%arg0: i32, %arg1: i32) -> (i32, i32) {
    %c0_i32 = arith.constant 0 : i32
    %c0_i32_0 = arith.constant 0 : i32
    return %c0_i32, %arg1 : i32, i32
  }
  func.func @transform_2(%arg0: i32, %arg1: i32) -> (i32, i32) {
    %c0_i32 = arith.constant 0 : i32
    %c0_i32_0 = arith.constant 0 : i32
    return %c0_i32, %arg1 : i32, i32
  }
  func.func @transform_3(%arg0: i32, %arg1: i32) -> (i32, i32) {
    %c0_i32 = arith.constant 0 : i32
    return %arg0, %arg1 : i32, i32
  }
}

module attributes {stable_mosaic.version = 11 : i64} {
  func.func @_gru_recurrence_kernel(%arg0: i32, %arg1: i32, %arg2: memref<8x8x384xf32, #tpu.memory_space<vmem>>, %arg3: memref<128x384xbf16, #tpu.memory_space<any>>, %arg4: memref<1x128xf32, #tpu.memory_space<vmem>>, %arg5: memref<8x8x128xbf16, #tpu.memory_space<vmem>>, %arg6: memref<128x384xbf16, #tpu.memory_space<vmem>>, %arg7: memref<!tpu.dma_semaphore, #tpu.memory_space<semaphore_mem>>, %arg8: memref<8x128xf32, #tpu.memory_space<vmem>>) attributes {dimension_semantics = [#tpu.dimension_semantics<parallel>, #tpu.dimension_semantics<arbitrary>], iteration_bounds = array<i64: 1, 1>, scalar_prefetch = 0 : i64, scratch_operands = 3 : i64, tpu.core_type = #tpu.core_type<tc>, window_params = [{transform_indices = @transform_0, window_bounds = array<i64: 8, 8, 384>}, {}, {pipeline_mode = #tpu.pipeline_mode<synchronous>, transform_indices = @transform_2, window_bounds = array<i64: 1, 128>}, {transform_indices = @transform_3, window_bounds = array<i64: 8, 8, 128>}]} {
    %c0_i32 = arith.constant 0 : i32
    %0 = arith.cmpi eq, %arg1, %c0_i32 : i32
    %1 = arith.extui %0 : i1 to i32
    %c0_i32_0 = arith.constant 0 : i32
    %2 = arith.cmpi ne, %1, %c0_i32_0 : i32
    scf.if %2 {
      tpu.enqueue_dma source(%arg3 : memref<128x384xbf16, #tpu.memory_space<any>>) target(%arg6 : memref<128x384xbf16, #tpu.memory_space<vmem>>) target_semaphore(%arg7 : memref<!tpu.dma_semaphore, #tpu.memory_space<semaphore_mem>>)
      tpu.wait_dma2 semaphore(%arg7 : memref<!tpu.dma_semaphore, #tpu.memory_space<semaphore_mem>>) src(%arg3 : memref<128x384xbf16, #tpu.memory_space<any>>) dst(%arg6 : memref<128x384xbf16, #tpu.memory_space<vmem>>)
      %cst_138 = arith.constant 0.000000e+00 : f32
      %342 = vector.broadcast %cst_138 : f32 to vector<8x128xf32>
      %c0_139 = arith.constant 0 : index
      %c0_140 = arith.constant 0 : index
      %343 = vector.load %arg8[%c0_139, %c0_140] : memref<8x128xf32, #tpu.memory_space<vmem>>, vector<8x128xf32>
      tpu.vector_store %arg8[%c0_139, %c0_140], %342 {strides = array<i32>} : memref<8x128xf32, #tpu.memory_space<vmem>>, vector<8x128xf32>,
    } else {
    }
    %c0 = arith.constant 0 : index
    %c0_1 = arith.constant 0 : index
    %3 = vector.load %arg4[%c0, %c0_1] : memref<1x128xf32, #tpu.memory_space<vmem>>, vector<1x128xf32>
    %4 = vector.shape_cast %3 : vector<1x128xf32> to vector<1x128xf32>
    %5 = vector.broadcast %4 : vector<1x128xf32> to vector<8x128xf32>
    %c0_i32_2 = arith.constant 0 : i32
    %c0_3 = arith.constant 0 : index
    %c0_4 = arith.constant 0 : index
    %6 = vector.load %arg8[%c0_3, %c0_4] : memref<8x128xf32, #tpu.memory_space<vmem>>, vector<8x128xf32>
    %7 = arith.truncf %6 : vector<8x128xf32> to vector<8x128xbf16>
    %c0_5 = arith.constant 0 : index
    %c0_6 = arith.constant 0 : index
    %8 = vector.load %arg6[%c0_5, %c0_6] : memref<128x384xbf16, #tpu.memory_space<vmem>>, vector<128x384xbf16>
    %cst = arith.constant dense<0.000000e+00> : vector<8x384xf32>
    %9 = tpu.matmul %7, %8, %cst {dimension_numbers = #tpu.dot_dimension_numbers<[1], [0], [0], [1], [0, 0, 1, 1], [], []>} : vector<8x128xbf16>, vector<128x384xbf16>, vector<8x384xf32> -> vector<8x384xf32>
    %10 = arith.index_cast %c0_i32_2 : i32 to index
    %c0_7 = arith.constant 0 : index
    %c0_8 = arith.constant 0 : index
    %11 = vector.load %arg2[%10, %c0_7, %c0_8] : memref<8x8x384xf32, #tpu.memory_space<vmem>>, vector<1x8x384xf32>
    %12 = vector.shape_cast %11 : vector<1x8x384xf32> to vector<8x384xf32>
    %13 = vector.extract_strided_slice %12 {offsets = [0, 0], sizes = [8, 128], strides = [1, 1]} : vector<8x384xf32> to vector<8x128xf32>
    %14 = vector.extract_strided_slice %9 {offsets = [0, 0], sizes = [8, 128], strides = [1, 1]} : vector<8x384xf32> to vector<8x128xf32>
    %15 = arith.addf %13, %14 : vector<8x128xf32>
    %cst_9 = arith.constant 5.000000e-01 : f32
    %16 = vector.broadcast %cst_9 : f32 to vector<8x128xf32>
    %17 = arith.mulf %16, %15 : vector<8x128xf32>
    %18 = math.tanh %17 : vector<8x128xf32>
    %cst_10 = arith.constant 5.000000e-01 : f32
    %19 = vector.broadcast %cst_10 : f32 to vector<8x128xf32>
    %20 = arith.mulf %19, %18 : vector<8x128xf32>
    %cst_11 = arith.constant 5.000000e-01 : f32
    %21 = vector.broadcast %cst_11 : f32 to vector<8x128xf32>
    %22 = arith.addf %20, %21 : vector<8x128xf32>
    %23 = vector.extract_strided_slice %12 {offsets = [0, 128], sizes = [8, 128], strides = [1, 1]} : vector<8x384xf32> to vector<8x128xf32>
    %24 = vector.extract_strided_slice %9 {offsets = [0, 128], sizes = [8, 128], strides = [1, 1]} : vector<8x384xf32> to vector<8x128xf32>
    %25 = arith.addf %23, %24 : vector<8x128xf32>
    %cst_12 = arith.constant 5.000000e-01 : f32
    %26 = vector.broadcast %cst_12 : f32 to vector<8x128xf32>
    %27 = arith.mulf %26, %25 : vector<8x128xf32>
    %28 = math.tanh %27 : vector<8x128xf32>
    %cst_13 = arith.constant 5.000000e-01 : f32
    %29 = vector.broadcast %cst_13 : f32 to vector<8x128xf32>
    %30 = arith.mulf %29, %28 : vector<8x128xf32>
    %cst_14 = arith.constant 5.000000e-01 : f32
    %31 = vector.broadcast %cst_14 : f32 to vector<8x128xf32>
    %32 = arith.addf %30, %31 : vector<8x128xf32>
    %33 = vector.extract_strided_slice %12 {offsets = [0, 256], sizes = [8, 128], strides = [1, 1]} : vector<8x384xf32> to vector<8x128xf32>
    %34 = vector.extract_strided_slice %9 {offsets = [0, 256], sizes = [8, 128], strides = [1, 1]} : vector<8x384xf32> to vector<8x128xf32>
    %35 = arith.addf %34, %5 : vector<8x128xf32>
    %36 = arith.mulf %22, %35 : vector<8x128xf32>
    %37 = arith.addf %33, %36 : vector<8x128xf32>
    %38 = math.tanh %37 : vector<8x128xf32>
    %39 = arith.subf %6, %38 : vector<8x128xf32>
    %40 = arith.mulf %32, %39 : vector<8x128xf32>
    %41 = arith.addf %38, %40 : vector<8x128xf32>
    %c0_15 = arith.constant 0 : index
    %c0_16 = arith.constant 0 : index
    %42 = vector.load %arg8[%c0_15, %c0_16] : memref<8x128xf32, #tpu.memory_space<vmem>>, vector<8x128xf32>
    tpu.vector_store %arg8[%c0_15, %c0_16], %41 {strides = array<i32>} : memref<8x128xf32, #tpu.memory_space<vmem>>, vector<8x128xf32>,
    %43 = arith.truncf %41 : vector<8x128xf32> to vector<8x128xbf16>
    %44 = arith.index_cast %c0_i32_2 : i32 to index
    %c0_17 = arith.constant 0 : index
    %c0_18 = arith.constant 0 : index
    %45 = vector.load %arg5[%44, %c0_17, %c0_18] : memref<8x8x128xbf16, #tpu.memory_space<vmem>>, vector<1x8x128xbf16>
    %46 = vector.shape_cast %45 : vector<1x8x128xbf16> to vector<8x128xbf16>
    %47 = vector.shape_cast %43 : vector<8x128xbf16> to vector<1x8x128xbf16>
    tpu.vector_store %arg5[%44, %c0_17, %c0_18], %47 {strides = array<i32>} : memref<8x8x128xbf16, #tpu.memory_space<vmem>>, vector<1x8x128xbf16>,
    %c1_i32 = arith.constant 1 : i32
    %c0_19 = arith.constant 0 : index
    %c0_20 = arith.constant 0 : index
    %48 = vector.load %arg8[%c0_19, %c0_20] : memref<8x128xf32, #tpu.memory_space<vmem>>, vector<8x128xf32>
    %49 = arith.truncf %48 : vector<8x128xf32> to vector<8x128xbf16>
    %c0_21 = arith.constant 0 : index
    %c0_22 = arith.constant 0 : index
    %50 = vector.load %arg6[%c0_21, %c0_22] : memref<128x384xbf16, #tpu.memory_space<vmem>>, vector<128x384xbf16>
    %cst_23 = arith.constant dense<0.000000e+00> : vector<8x384xf32>
    %51 = tpu.matmul %49, %50, %cst_23 {dimension_numbers = #tpu.dot_dimension_numbers<[1], [0], [0], [1], [0, 0, 1, 1], [], []>} : vector<8x128xbf16>, vector<128x384xbf16>, vector<8x384xf32> -> vector<8x384xf32>
    %52 = arith.index_cast %c1_i32 : i32 to index
    %c0_24 = arith.constant 0 : index
    %c0_25 = arith.constant 0 : index
    %53 = vector.load %arg2[%52, %c0_24, %c0_25] : memref<8x8x384xf32, #tpu.memory_space<vmem>>, vector<1x8x384xf32>
    %54 = vector.shape_cast %53 : vector<1x8x384xf32> to vector<8x384xf32>
    %55 = vector.extract_strided_slice %54 {offsets = [0, 0], sizes = [8, 128], strides = [1, 1]} : vector<8x384xf32> to vector<8x128xf32>
    %56 = vector.extract_strided_slice %51 {offsets = [0, 0], sizes = [8, 128], strides = [1, 1]} : vector<8x384xf32> to vector<8x128xf32>
    %57 = arith.addf %55, %56 : vector<8x128xf32>
    %cst_26 = arith.constant 5.000000e-01 : f32
    %58 = vector.broadcast %cst_26 : f32 to vector<8x128xf32>
    %59 = arith.mulf %58, %57 : vector<8x128xf32>
    %60 = math.tanh %59 : vector<8x128xf32>
    %cst_27 = arith.constant 5.000000e-01 : f32
    %61 = vector.broadcast %cst_27 : f32 to vector<8x128xf32>
    %62 = arith.mulf %61, %60 : vector<8x128xf32>
    %cst_28 = arith.constant 5.000000e-01 : f32
    %63 = vector.broadcast %cst_28 : f32 to vector<8x128xf32>
    %64 = arith.addf %62, %63 : vector<8x128xf32>
    %65 = vector.extract_strided_slice %54 {offsets = [0, 128], sizes = [8, 128], strides = [1, 1]} : vector<8x384xf32> to vector<8x128xf32>
    %66 = vector.extract_strided_slice %51 {offsets = [0, 128], sizes = [8, 128], strides = [1, 1]} : vector<8x384xf32> to vector<8x128xf32>
    %67 = arith.addf %65, %66 : vector<8x128xf32>
    %cst_29 = arith.constant 5.000000e-01 : f32
    %68 = vector.broadcast %cst_29 : f32 to vector<8x128xf32>
    %69 = arith.mulf %68, %67 : vector<8x128xf32>
    %70 = math.tanh %69 : vector<8x128xf32>
    %cst_30 = arith.constant 5.000000e-01 : f32
    %71 = vector.broadcast %cst_30 : f32 to vector<8x128xf32>
    %72 = arith.mulf %71, %70 : vector<8x128xf32>
    %cst_31 = arith.constant 5.000000e-01 : f32
    %73 = vector.broadcast %cst_31 : f32 to vector<8x128xf32>
    %74 = arith.addf %72, %73 : vector<8x128xf32>
    %75 = vector.extract_strided_slice %54 {offsets = [0, 256], sizes = [8, 128], strides = [1, 1]} : vector<8x384xf32> to vector<8x128xf32>
    %76 = vector.extract_strided_slice %51 {offsets = [0, 256], sizes = [8, 128], strides = [1, 1]} : vector<8x384xf32> to vector<8x128xf32>
    %77 = arith.addf %76, %5 : vector<8x128xf32>
    %78 = arith.mulf %64, %77 : vector<8x128xf32>
    %79 = arith.addf %75, %78 : vector<8x128xf32>
    %80 = math.tanh %79 : vector<8x128xf32>
    %81 = arith.subf %48, %80 : vector<8x128xf32>
    %82 = arith.mulf %74, %81 : vector<8x128xf32>
    %83 = arith.addf %80, %82 : vector<8x128xf32>
    %c0_32 = arith.constant 0 : index
    %c0_33 = arith.constant 0 : index
    %84 = vector.load %arg8[%c0_32, %c0_33] : memref<8x128xf32, #tpu.memory_space<vmem>>, vector<8x128xf32>
    tpu.vector_store %arg8[%c0_32, %c0_33], %83 {strides = array<i32>} : memref<8x128xf32, #tpu.memory_space<vmem>>, vector<8x128xf32>,
    %85 = arith.truncf %83 : vector<8x128xf32> to vector<8x128xbf16>
    %86 = arith.index_cast %c1_i32 : i32 to index
    %c0_34 = arith.constant 0 : index
    %c0_35 = arith.constant 0 : index
    %87 = vector.load %arg5[%86, %c0_34, %c0_35] : memref<8x8x128xbf16, #tpu.memory_space<vmem>>, vector<1x8x128xbf16>
    %88 = vector.shape_cast %87 : vector<1x8x128xbf16> to vector<8x128xbf16>
    %89 = vector.shape_cast %85 : vector<8x128xbf16> to vector<1x8x128xbf16>
    tpu.vector_store %arg5[%86, %c0_34, %c0_35], %89 {strides = array<i32>} : memref<8x8x128xbf16, #tpu.memory_space<vmem>>, vector<1x8x128xbf16>,
    %c2_i32 = arith.constant 2 : i32
    %c0_36 = arith.constant 0 : index
    %c0_37 = arith.constant 0 : index
    %90 = vector.load %arg8[%c0_36, %c0_37] : memref<8x128xf32, #tpu.memory_space<vmem>>, vector<8x128xf32>
    %91 = arith.truncf %90 : vector<8x128xf32> to vector<8x128xbf16>
    %c0_38 = arith.constant 0 : index
    %c0_39 = arith.constant 0 : index
    %92 = vector.load %arg6[%c0_38, %c0_39] : memref<128x384xbf16, #tpu.memory_space<vmem>>, vector<128x384xbf16>
    %cst_40 = arith.constant dense<0.000000e+00> : vector<8x384xf32>
    %93 = tpu.matmul %91, %92, %cst_40 {dimension_numbers = #tpu.dot_dimension_numbers<[1], [0], [0], [1], [0, 0, 1, 1], [], []>} : vector<8x128xbf16>, vector<128x384xbf16>, vector<8x384xf32> -> vector<8x384xf32>
    %94 = arith.index_cast %c2_i32 : i32 to index
    %c0_41 = arith.constant 0 : index
    %c0_42 = arith.constant 0 : index
    %95 = vector.load %arg2[%94, %c0_41, %c0_42] : memref<8x8x384xf32, #tpu.memory_space<vmem>>, vector<1x8x384xf32>
    %96 = vector.shape_cast %95 : vector<1x8x384xf32> to vector<8x384xf32>
    %97 = vector.extract_strided_slice %96 {offsets = [0, 0], sizes = [8, 128], strides = [1, 1]} : vector<8x384xf32> to vector<8x128xf32>
    %98 = vector.extract_strided_slice %93 {offsets = [0, 0], sizes = [8, 128], strides = [1, 1]} : vector<8x384xf32> to vector<8x128xf32>
    %99 = arith.addf %97, %98 : vector<8x128xf32>
    %cst_43 = arith.constant 5.000000e-01 : f32
    %100 = vector.broadcast %cst_43 : f32 to vector<8x128xf32>
    %101 = arith.mulf %100, %99 : vector<8x128xf32>
    %102 = math.tanh %101 : vector<8x128xf32>
    %cst_44 = arith.constant 5.000000e-01 : f32
    %103 = vector.broadcast %cst_44 : f32 to vector<8x128xf32>
    %104 = arith.mulf %103, %102 : vector<8x128xf32>
    %cst_45 = arith.constant 5.000000e-01 : f32
    %105 = vector.broadcast %cst_45 : f32 to vector<8x128xf32>
    %106 = arith.addf %104, %105 : vector<8x128xf32>
    %107 = vector.extract_strided_slice %96 {offsets = [0, 128], sizes = [8, 128], strides = [1, 1]} : vector<8x384xf32> to vector<8x128xf32>
    %108 = vector.extract_strided_slice %93 {offsets = [0, 128], sizes = [8, 128], strides = [1, 1]} : vector<8x384xf32> to vector<8x128xf32>
    %109 = arith.addf %107, %108 : vector<8x128xf32>
    %cst_46 = arith.constant 5.000000e-01 : f32
    %110 = vector.broadcast %cst_46 : f32 to vector<8x128xf32>
    %111 = arith.mulf %110, %109 : vector<8x128xf32>
    %112 = math.tanh %111 : vector<8x128xf32>
    %cst_47 = arith.constant 5.000000e-01 : f32
    %113 = vector.broadcast %cst_47 : f32 to vector<8x128xf32>
    %114 = arith.mulf %113, %112 : vector<8x128xf32>
    %cst_48 = arith.constant 5.000000e-01 : f32
    %115 = vector.broadcast %cst_48 : f32 to vector<8x128xf32>
    %116 = arith.addf %114, %115 : vector<8x128xf32>
    %117 = vector.extract_strided_slice %96 {offsets = [0, 256], sizes = [8, 128], strides = [1, 1]} : vector<8x384xf32> to vector<8x128xf32>
    %118 = vector.extract_strided_slice %93 {offsets = [0, 256], sizes = [8, 128], strides = [1, 1]} : vector<8x384xf32> to vector<8x128xf32>
    %119 = arith.addf %118, %5 : vector<8x128xf32>
    %120 = arith.mulf %106, %119 : vector<8x128xf32>
    %121 = arith.addf %117, %120 : vector<8x128xf32>
    %122 = math.tanh %121 : vector<8x128xf32>
    %123 = arith.subf %90, %122 : vector<8x128xf32>
    %124 = arith.mulf %116, %123 : vector<8x128xf32>
    %125 = arith.addf %122, %124 : vector<8x128xf32>
    %c0_49 = arith.constant 0 : index
    %c0_50 = arith.constant 0 : index
    %126 = vector.load %arg8[%c0_49, %c0_50] : memref<8x128xf32, #tpu.memory_space<vmem>>, vector<8x128xf32>
    tpu.vector_store %arg8[%c0_49, %c0_50], %125 {strides = array<i32>} : memref<8x128xf32, #tpu.memory_space<vmem>>, vector<8x128xf32>,
    %127 = arith.truncf %125 : vector<8x128xf32> to vector<8x128xbf16>
    %128 = arith.index_cast %c2_i32 : i32 to index
    %c0_51 = arith.constant 0 : index
    %c0_52 = arith.constant 0 : index
    %129 = vector.load %arg5[%128, %c0_51, %c0_52] : memref<8x8x128xbf16, #tpu.memory_space<vmem>>, vector<1x8x128xbf16>
    %130 = vector.shape_cast %129 : vector<1x8x128xbf16> to vector<8x128xbf16>
    %131 = vector.shape_cast %127 : vector<8x128xbf16> to vector<1x8x128xbf16>
    tpu.vector_store %arg5[%128, %c0_51, %c0_52], %131 {strides = array<i32>} : memref<8x8x128xbf16, #tpu.memory_space<vmem>>, vector<1x8x128xbf16>,
    %c3_i32 = arith.constant 3 : i32
    %c0_53 = arith.constant 0 : index
    %c0_54 = arith.constant 0 : index
    %132 = vector.load %arg8[%c0_53, %c0_54] : memref<8x128xf32, #tpu.memory_space<vmem>>, vector<8x128xf32>
    %133 = arith.truncf %132 : vector<8x128xf32> to vector<8x128xbf16>
    %c0_55 = arith.constant 0 : index
    %c0_56 = arith.constant 0 : index
    %134 = vector.load %arg6[%c0_55, %c0_56] : memref<128x384xbf16, #tpu.memory_space<vmem>>, vector<128x384xbf16>
    %cst_57 = arith.constant dense<0.000000e+00> : vector<8x384xf32>
    %135 = tpu.matmul %133, %134, %cst_57 {dimension_numbers = #tpu.dot_dimension_numbers<[1], [0], [0], [1], [0, 0, 1, 1], [], []>} : vector<8x128xbf16>, vector<128x384xbf16>, vector<8x384xf32> -> vector<8x384xf32>
    %136 = arith.index_cast %c3_i32 : i32 to index
    %c0_58 = arith.constant 0 : index
    %c0_59 = arith.constant 0 : index
    %137 = vector.load %arg2[%136, %c0_58, %c0_59] : memref<8x8x384xf32, #tpu.memory_space<vmem>>, vector<1x8x384xf32>
    %138 = vector.shape_cast %137 : vector<1x8x384xf32> to vector<8x384xf32>
    %139 = vector.extract_strided_slice %138 {offsets = [0, 0], sizes = [8, 128], strides = [1, 1]} : vector<8x384xf32> to vector<8x128xf32>
    %140 = vector.extract_strided_slice %135 {offsets = [0, 0], sizes = [8, 128], strides = [1, 1]} : vector<8x384xf32> to vector<8x128xf32>
    %141 = arith.addf %139, %140 : vector<8x128xf32>
    %cst_60 = arith.constant 5.000000e-01 : f32
    %142 = vector.broadcast %cst_60 : f32 to vector<8x128xf32>
    %143 = arith.mulf %142, %141 : vector<8x128xf32>
    %144 = math.tanh %143 : vector<8x128xf32>
    %cst_61 = arith.constant 5.000000e-01 : f32
    %145 = vector.broadcast %cst_61 : f32 to vector<8x128xf32>
    %146 = arith.mulf %145, %144 : vector<8x128xf32>
    %cst_62 = arith.constant 5.000000e-01 : f32
    %147 = vector.broadcast %cst_62 : f32 to vector<8x128xf32>
    %148 = arith.addf %146, %147 : vector<8x128xf32>
    %149 = vector.extract_strided_slice %138 {offsets = [0, 128], sizes = [8, 128], strides = [1, 1]} : vector<8x384xf32> to vector<8x128xf32>
    %150 = vector.extract_strided_slice %135 {offsets = [0, 128], sizes = [8, 128], strides = [1, 1]} : vector<8x384xf32> to vector<8x128xf32>
    %151 = arith.addf %149, %150 : vector<8x128xf32>
    %cst_63 = arith.constant 5.000000e-01 : f32
    %152 = vector.broadcast %cst_63 : f32 to vector<8x128xf32>
    %153 = arith.mulf %152, %151 : vector<8x128xf32>
    %154 = math.tanh %153 : vector<8x128xf32>
    %cst_64 = arith.constant 5.000000e-01 : f32
    %155 = vector.broadcast %cst_64 : f32 to vector<8x128xf32>
    %156 = arith.mulf %155, %154 : vector<8x128xf32>
    %cst_65 = arith.constant 5.000000e-01 : f32
    %157 = vector.broadcast %cst_65 : f32 to vector<8x128xf32>
    %158 = arith.addf %156, %157 : vector<8x128xf32>
    %159 = vector.extract_strided_slice %138 {offsets = [0, 256], sizes = [8, 128], strides = [1, 1]} : vector<8x384xf32> to vector<8x128xf32>
    %160 = vector.extract_strided_slice %135 {offsets = [0, 256], sizes = [8, 128], strides = [1, 1]} : vector<8x384xf32> to vector<8x128xf32>
    %161 = arith.addf %160, %5 : vector<8x128xf32>
    %162 = arith.mulf %148, %161 : vector<8x128xf32>
    %163 = arith.addf %159, %162 : vector<8x128xf32>
    %164 = math.tanh %163 : vector<8x128xf32>
    %165 = arith.subf %132, %164 : vector<8x128xf32>
    %166 = arith.mulf %158, %165 : vector<8x128xf32>
    %167 = arith.addf %164, %166 : vector<8x128xf32>
    %c0_66 = arith.constant 0 : index
    %c0_67 = arith.constant 0 : index
    %168 = vector.load %arg8[%c0_66, %c0_67] : memref<8x128xf32, #tpu.memory_space<vmem>>, vector<8x128xf32>
    tpu.vector_store %arg8[%c0_66, %c0_67], %167 {strides = array<i32>} : memref<8x128xf32, #tpu.memory_space<vmem>>, vector<8x128xf32>,
    %169 = arith.truncf %167 : vector<8x128xf32> to vector<8x128xbf16>
    %170 = arith.index_cast %c3_i32 : i32 to index
    %c0_68 = arith.constant 0 : index
    %c0_69 = arith.constant 0 : index
    %171 = vector.load %arg5[%170, %c0_68, %c0_69] : memref<8x8x128xbf16, #tpu.memory_space<vmem>>, vector<1x8x128xbf16>
    %172 = vector.shape_cast %171 : vector<1x8x128xbf16> to vector<8x128xbf16>
    %173 = vector.shape_cast %169 : vector<8x128xbf16> to vector<1x8x128xbf16>
    tpu.vector_store %arg5[%170, %c0_68, %c0_69], %173 {strides = array<i32>} : memref<8x8x128xbf16, #tpu.memory_space<vmem>>, vector<1x8x128xbf16>,
    %c4_i32 = arith.constant 4 : i32
    %c0_70 = arith.constant 0 : index
    %c0_71 = arith.constant 0 : index
    %174 = vector.load %arg8[%c0_70, %c0_71] : memref<8x128xf32, #tpu.memory_space<vmem>>, vector<8x128xf32>
    %175 = arith.truncf %174 : vector<8x128xf32> to vector<8x128xbf16>
    %c0_72 = arith.constant 0 : index
    %c0_73 = arith.constant 0 : index
    %176 = vector.load %arg6[%c0_72, %c0_73] : memref<128x384xbf16, #tpu.memory_space<vmem>>, vector<128x384xbf16>
    %cst_74 = arith.constant dense<0.000000e+00> : vector<8x384xf32>
    %177 = tpu.matmul %175, %176, %cst_74 {dimension_numbers = #tpu.dot_dimension_numbers<[1], [0], [0], [1], [0, 0, 1, 1], [], []>} : vector<8x128xbf16>, vector<128x384xbf16>, vector<8x384xf32> -> vector<8x384xf32>
    %178 = arith.index_cast %c4_i32 : i32 to index
    %c0_75 = arith.constant 0 : index
    %c0_76 = arith.constant 0 : index
    %179 = vector.load %arg2[%178, %c0_75, %c0_76] : memref<8x8x384xf32, #tpu.memory_space<vmem>>, vector<1x8x384xf32>
    %180 = vector.shape_cast %179 : vector<1x8x384xf32> to vector<8x384xf32>
    %181 = vector.extract_strided_slice %180 {offsets = [0, 0], sizes = [8, 128], strides = [1, 1]} : vector<8x384xf32> to vector<8x128xf32>
    %182 = vector.extract_strided_slice %177 {offsets = [0, 0], sizes = [8, 128], strides = [1, 1]} : vector<8x384xf32> to vector<8x128xf32>
    %183 = arith.addf %181, %182 : vector<8x128xf32>
    %cst_77 = arith.constant 5.000000e-01 : f32
    %184 = vector.broadcast %cst_77 : f32 to vector<8x128xf32>
    %185 = arith.mulf %184, %183 : vector<8x128xf32>
    %186 = math.tanh %185 : vector<8x128xf32>
    %cst_78 = arith.constant 5.000000e-01 : f32
    %187 = vector.broadcast %cst_78 : f32 to vector<8x128xf32>
    %188 = arith.mulf %187, %186 : vector<8x128xf32>
    %cst_79 = arith.constant 5.000000e-01 : f32
    %189 = vector.broadcast %cst_79 : f32 to vector<8x128xf32>
    %190 = arith.addf %188, %189 : vector<8x128xf32>
    %191 = vector.extract_strided_slice %180 {offsets = [0, 128], sizes = [8, 128], strides = [1, 1]} : vector<8x384xf32> to vector<8x128xf32>
    %192 = vector.extract_strided_slice %177 {offsets = [0, 128], sizes = [8, 128], strides = [1, 1]} : vector<8x384xf32> to vector<8x128xf32>
    %193 = arith.addf %191, %192 : vector<8x128xf32>
    %cst_80 = arith.constant 5.000000e-01 : f32
    %194 = vector.broadcast %cst_80 : f32 to vector<8x128xf32>
    %195 = arith.mulf %194, %193 : vector<8x128xf32>
    %196 = math.tanh %195 : vector<8x128xf32>
    %cst_81 = arith.constant 5.000000e-01 : f32
    %197 = vector.broadcast %cst_81 : f32 to vector<8x128xf32>
    %198 = arith.mulf %197, %196 : vector<8x128xf32>
    %cst_82 = arith.constant 5.000000e-01 : f32
    %199 = vector.broadcast %cst_82 : f32 to vector<8x128xf32>
    %200 = arith.addf %198, %199 : vector<8x128xf32>
    %201 = vector.extract_strided_slice %180 {offsets = [0, 256], sizes = [8, 128], strides = [1, 1]} : vector<8x384xf32> to vector<8x128xf32>
    %202 = vector.extract_strided_slice %177 {offsets = [0, 256], sizes = [8, 128], strides = [1, 1]} : vector<8x384xf32> to vector<8x128xf32>
    %203 = arith.addf %202, %5 : vector<8x128xf32>
    %204 = arith.mulf %190, %203 : vector<8x128xf32>
    %205 = arith.addf %201, %204 : vector<8x128xf32>
    %206 = math.tanh %205 : vector<8x128xf32>
    %207 = arith.subf %174, %206 : vector<8x128xf32>
    %208 = arith.mulf %200, %207 : vector<8x128xf32>
    %209 = arith.addf %206, %208 : vector<8x128xf32>
    %c0_83 = arith.constant 0 : index
    %c0_84 = arith.constant 0 : index
    %210 = vector.load %arg8[%c0_83, %c0_84] : memref<8x128xf32, #tpu.memory_space<vmem>>, vector<8x128xf32>
    tpu.vector_store %arg8[%c0_83, %c0_84], %209 {strides = array<i32>} : memref<8x128xf32, #tpu.memory_space<vmem>>, vector<8x128xf32>,
    %211 = arith.truncf %209 : vector<8x128xf32> to vector<8x128xbf16>
    %212 = arith.index_cast %c4_i32 : i32 to index
    %c0_85 = arith.constant 0 : index
    %c0_86 = arith.constant 0 : index
    %213 = vector.load %arg5[%212, %c0_85, %c0_86] : memref<8x8x128xbf16, #tpu.memory_space<vmem>>, vector<1x8x128xbf16>
    %214 = vector.shape_cast %213 : vector<1x8x128xbf16> to vector<8x128xbf16>
    %215 = vector.shape_cast %211 : vector<8x128xbf16> to vector<1x8x128xbf16>
    tpu.vector_store %arg5[%212, %c0_85, %c0_86], %215 {strides = array<i32>} : memref<8x8x128xbf16, #tpu.memory_space<vmem>>, vector<1x8x128xbf16>,
    %c5_i32 = arith.constant 5 : i32
    %c0_87 = arith.constant 0 : index
    %c0_88 = arith.constant 0 : index
    %216 = vector.load %arg8[%c0_87, %c0_88] : memref<8x128xf32, #tpu.memory_space<vmem>>, vector<8x128xf32>
    %217 = arith.truncf %216 : vector<8x128xf32> to vector<8x128xbf16>
    %c0_89 = arith.constant 0 : index
    %c0_90 = arith.constant 0 : index
    %218 = vector.load %arg6[%c0_89, %c0_90] : memref<128x384xbf16, #tpu.memory_space<vmem>>, vector<128x384xbf16>
    %cst_91 = arith.constant dense<0.000000e+00> : vector<8x384xf32>
    %219 = tpu.matmul %217, %218, %cst_91 {dimension_numbers = #tpu.dot_dimension_numbers<[1], [0], [0], [1], [0, 0, 1, 1], [], []>} : vector<8x128xbf16>, vector<128x384xbf16>, vector<8x384xf32> -> vector<8x384xf32>
    %220 = arith.index_cast %c5_i32 : i32 to index
    %c0_92 = arith.constant 0 : index
    %c0_93 = arith.constant 0 : index
    %221 = vector.load %arg2[%220, %c0_92, %c0_93] : memref<8x8x384xf32, #tpu.memory_space<vmem>>, vector<1x8x384xf32>
    %222 = vector.shape_cast %221 : vector<1x8x384xf32> to vector<8x384xf32>
    %223 = vector.extract_strided_slice %222 {offsets = [0, 0], sizes = [8, 128], strides = [1, 1]} : vector<8x384xf32> to vector<8x128xf32>
    %224 = vector.extract_strided_slice %219 {offsets = [0, 0], sizes = [8, 128], strides = [1, 1]} : vector<8x384xf32> to vector<8x128xf32>
    %225 = arith.addf %223, %224 : vector<8x128xf32>
    %cst_94 = arith.constant 5.000000e-01 : f32
    %226 = vector.broadcast %cst_94 : f32 to vector<8x128xf32>
    %227 = arith.mulf %226, %225 : vector<8x128xf32>
    %228 = math.tanh %227 : vector<8x128xf32>
    %cst_95 = arith.constant 5.000000e-01 : f32
    %229 = vector.broadcast %cst_95 : f32 to vector<8x128xf32>
    %230 = arith.mulf %229, %228 : vector<8x128xf32>
    %cst_96 = arith.constant 5.000000e-01 : f32
    %231 = vector.broadcast %cst_96 : f32 to vector<8x128xf32>
    %232 = arith.addf %230, %231 : vector<8x128xf32>
    %233 = vector.extract_strided_slice %222 {offsets = [0, 128], sizes = [8, 128], strides = [1, 1]} : vector<8x384xf32> to vector<8x128xf32>
    %234 = vector.extract_strided_slice %219 {offsets = [0, 128], sizes = [8, 128], strides = [1, 1]} : vector<8x384xf32> to vector<8x128xf32>
    %235 = arith.addf %233, %234 : vector<8x128xf32>
    %cst_97 = arith.constant 5.000000e-01 : f32
    %236 = vector.broadcast %cst_97 : f32 to vector<8x128xf32>
    %237 = arith.mulf %236, %235 : vector<8x128xf32>
    %238 = math.tanh %237 : vector<8x128xf32>
    %cst_98 = arith.constant 5.000000e-01 : f32
    %239 = vector.broadcast %cst_98 : f32 to vector<8x128xf32>
    %240 = arith.mulf %239, %238 : vector<8x128xf32>
    %cst_99 = arith.constant 5.000000e-01 : f32
    %241 = vector.broadcast %cst_99 : f32 to vector<8x128xf32>
    %242 = arith.addf %240, %241 : vector<8x128xf32>
    %243 = vector.extract_strided_slice %222 {offsets = [0, 256], sizes = [8, 128], strides = [1, 1]} : vector<8x384xf32> to vector<8x128xf32>
    %244 = vector.extract_strided_slice %219 {offsets = [0, 256], sizes = [8, 128], strides = [1, 1]} : vector<8x384xf32> to vector<8x128xf32>
    %245 = arith.addf %244, %5 : vector<8x128xf32>
    %246 = arith.mulf %232, %245 : vector<8x128xf32>
    %247 = arith.addf %243, %246 : vector<8x128xf32>
    %248 = math.tanh %247 : vector<8x128xf32>
    %249 = arith.subf %216, %248 : vector<8x128xf32>
    %250 = arith.mulf %242, %249 : vector<8x128xf32>
    %251 = arith.addf %248, %250 : vector<8x128xf32>
    %c0_100 = arith.constant 0 : index
    %c0_101 = arith.constant 0 : index
    %252 = vector.load %arg8[%c0_100, %c0_101] : memref<8x128xf32, #tpu.memory_space<vmem>>, vector<8x128xf32>
    tpu.vector_store %arg8[%c0_100, %c0_101], %251 {strides = array<i32>} : memref<8x128xf32, #tpu.memory_space<vmem>>, vector<8x128xf32>,
    %253 = arith.truncf %251 : vector<8x128xf32> to vector<8x128xbf16>
    %254 = arith.index_cast %c5_i32 : i32 to index
    %c0_102 = arith.constant 0 : index
    %c0_103 = arith.constant 0 : index
    %255 = vector.load %arg5[%254, %c0_102, %c0_103] : memref<8x8x128xbf16, #tpu.memory_space<vmem>>, vector<1x8x128xbf16>
    %256 = vector.shape_cast %255 : vector<1x8x128xbf16> to vector<8x128xbf16>
    %257 = vector.shape_cast %253 : vector<8x128xbf16> to vector<1x8x128xbf16>
    tpu.vector_store %arg5[%254, %c0_102, %c0_103], %257 {strides = array<i32>} : memref<8x8x128xbf16, #tpu.memory_space<vmem>>, vector<1x8x128xbf16>,
    %c6_i32 = arith.constant 6 : i32
    %c0_104 = arith.constant 0 : index
    %c0_105 = arith.constant 0 : index
    %258 = vector.load %arg8[%c0_104, %c0_105] : memref<8x128xf32, #tpu.memory_space<vmem>>, vector<8x128xf32>
    %259 = arith.truncf %258 : vector<8x128xf32> to vector<8x128xbf16>
    %c0_106 = arith.constant 0 : index
    %c0_107 = arith.constant 0 : index
    %260 = vector.load %arg6[%c0_106, %c0_107] : memref<128x384xbf16, #tpu.memory_space<vmem>>, vector<128x384xbf16>
    %cst_108 = arith.constant dense<0.000000e+00> : vector<8x384xf32>
    %261 = tpu.matmul %259, %260, %cst_108 {dimension_numbers = #tpu.dot_dimension_numbers<[1], [0], [0], [1], [0, 0, 1, 1], [], []>} : vector<8x128xbf16>, vector<128x384xbf16>, vector<8x384xf32> -> vector<8x384xf32>
    %262 = arith.index_cast %c6_i32 : i32 to index
    %c0_109 = arith.constant 0 : index
    %c0_110 = arith.constant 0 : index
    %263 = vector.load %arg2[%262, %c0_109, %c0_110] : memref<8x8x384xf32, #tpu.memory_space<vmem>>, vector<1x8x384xf32>
    %264 = vector.shape_cast %263 : vector<1x8x384xf32> to vector<8x384xf32>
    %265 = vector.extract_strided_slice %264 {offsets = [0, 0], sizes = [8, 128], strides = [1, 1]} : vector<8x384xf32> to vector<8x128xf32>
    %266 = vector.extract_strided_slice %261 {offsets = [0, 0], sizes = [8, 128], strides = [1, 1]} : vector<8x384xf32> to vector<8x128xf32>
    %267 = arith.addf %265, %266 : vector<8x128xf32>
    %cst_111 = arith.constant 5.000000e-01 : f32
    %268 = vector.broadcast %cst_111 : f32 to vector<8x128xf32>
    %269 = arith.mulf %268, %267 : vector<8x128xf32>
    %270 = math.tanh %269 : vector<8x128xf32>
    %cst_112 = arith.constant 5.000000e-01 : f32
    %271 = vector.broadcast %cst_112 : f32 to vector<8x128xf32>
    %272 = arith.mulf %271, %270 : vector<8x128xf32>
    %cst_113 = arith.constant 5.000000e-01 : f32
    %273 = vector.broadcast %cst_113 : f32 to vector<8x128xf32>
    %274 = arith.addf %272, %273 : vector<8x128xf32>
    %275 = vector.extract_strided_slice %264 {offsets = [0, 128], sizes = [8, 128], strides = [1, 1]} : vector<8x384xf32> to vector<8x128xf32>
    %276 = vector.extract_strided_slice %261 {offsets = [0, 128], sizes = [8, 128], strides = [1, 1]} : vector<8x384xf32> to vector<8x128xf32>
    %277 = arith.addf %275, %276 : vector<8x128xf32>
    %cst_114 = arith.constant 5.000000e-01 : f32
    %278 = vector.broadcast %cst_114 : f32 to vector<8x128xf32>
    %279 = arith.mulf %278, %277 : vector<8x128xf32>
    %280 = math.tanh %279 : vector<8x128xf32>
    %cst_115 = arith.constant 5.000000e-01 : f32
    %281 = vector.broadcast %cst_115 : f32 to vector<8x128xf32>
    %282 = arith.mulf %281, %280 : vector<8x128xf32>
    %cst_116 = arith.constant 5.000000e-01 : f32
    %283 = vector.broadcast %cst_116 : f32 to vector<8x128xf32>
    %284 = arith.addf %282, %283 : vector<8x128xf32>
    %285 = vector.extract_strided_slice %264 {offsets = [0, 256], sizes = [8, 128], strides = [1, 1]} : vector<8x384xf32> to vector<8x128xf32>
    %286 = vector.extract_strided_slice %261 {offsets = [0, 256], sizes = [8, 128], strides = [1, 1]} : vector<8x384xf32> to vector<8x128xf32>
    %287 = arith.addf %286, %5 : vector<8x128xf32>
    %288 = arith.mulf %274, %287 : vector<8x128xf32>
    %289 = arith.addf %285, %288 : vector<8x128xf32>
    %290 = math.tanh %289 : vector<8x128xf32>
    %291 = arith.subf %258, %290 : vector<8x128xf32>
    %292 = arith.mulf %284, %291 : vector<8x128xf32>
    %293 = arith.addf %290, %292 : vector<8x128xf32>
    %c0_117 = arith.constant 0 : index
    %c0_118 = arith.constant 0 : index
    %294 = vector.load %arg8[%c0_117, %c0_118] : memref<8x128xf32, #tpu.memory_space<vmem>>, vector<8x128xf32>
    tpu.vector_store %arg8[%c0_117, %c0_118], %293 {strides = array<i32>} : memref<8x128xf32, #tpu.memory_space<vmem>>, vector<8x128xf32>,
    %295 = arith.truncf %293 : vector<8x128xf32> to vector<8x128xbf16>
    %296 = arith.index_cast %c6_i32 : i32 to index
    %c0_119 = arith.constant 0 : index
    %c0_120 = arith.constant 0 : index
    %297 = vector.load %arg5[%296, %c0_119, %c0_120] : memref<8x8x128xbf16, #tpu.memory_space<vmem>>, vector<1x8x128xbf16>
    %298 = vector.shape_cast %297 : vector<1x8x128xbf16> to vector<8x128xbf16>
    %299 = vector.shape_cast %295 : vector<8x128xbf16> to vector<1x8x128xbf16>
    tpu.vector_store %arg5[%296, %c0_119, %c0_120], %299 {strides = array<i32>} : memref<8x8x128xbf16, #tpu.memory_space<vmem>>, vector<1x8x128xbf16>,
    %c7_i32 = arith.constant 7 : i32
    %c0_121 = arith.constant 0 : index
    %c0_122 = arith.constant 0 : index
    %300 = vector.load %arg8[%c0_121, %c0_122] : memref<8x128xf32, #tpu.memory_space<vmem>>, vector<8x128xf32>
    %301 = arith.truncf %300 : vector<8x128xf32> to vector<8x128xbf16>
    %c0_123 = arith.constant 0 : index
    %c0_124 = arith.constant 0 : index
    %302 = vector.load %arg6[%c0_123, %c0_124] : memref<128x384xbf16, #tpu.memory_space<vmem>>, vector<128x384xbf16>
    %cst_125 = arith.constant dense<0.000000e+00> : vector<8x384xf32>
    %303 = tpu.matmul %301, %302, %cst_125 {dimension_numbers = #tpu.dot_dimension_numbers<[1], [0], [0], [1], [0, 0, 1, 1], [], []>} : vector<8x128xbf16>, vector<128x384xbf16>, vector<8x384xf32> -> vector<8x384xf32>
    %304 = arith.index_cast %c7_i32 : i32 to index
    %c0_126 = arith.constant 0 : index
    %c0_127 = arith.constant 0 : index
    %305 = vector.load %arg2[%304, %c0_126, %c0_127] : memref<8x8x384xf32, #tpu.memory_space<vmem>>, vector<1x8x384xf32>
    %306 = vector.shape_cast %305 : vector<1x8x384xf32> to vector<8x384xf32>
    %307 = vector.extract_strided_slice %306 {offsets = [0, 0], sizes = [8, 128], strides = [1, 1]} : vector<8x384xf32> to vector<8x128xf32>
    %308 = vector.extract_strided_slice %303 {offsets = [0, 0], sizes = [8, 128], strides = [1, 1]} : vector<8x384xf32> to vector<8x128xf32>
    %309 = arith.addf %307, %308 : vector<8x128xf32>
    %cst_128 = arith.constant 5.000000e-01 : f32
    %310 = vector.broadcast %cst_128 : f32 to vector<8x128xf32>
    %311 = arith.mulf %310, %309 : vector<8x128xf32>
    %312 = math.tanh %311 : vector<8x128xf32>
    %cst_129 = arith.constant 5.000000e-01 : f32
    %313 = vector.broadcast %cst_129 : f32 to vector<8x128xf32>
    %314 = arith.mulf %313, %312 : vector<8x128xf32>
    %cst_130 = arith.constant 5.000000e-01 : f32
    %315 = vector.broadcast %cst_130 : f32 to vector<8x128xf32>
    %316 = arith.addf %314, %315 : vector<8x128xf32>
    %317 = vector.extract_strided_slice %306 {offsets = [0, 128], sizes = [8, 128], strides = [1, 1]} : vector<8x384xf32> to vector<8x128xf32>
    %318 = vector.extract_strided_slice %303 {offsets = [0, 128], sizes = [8, 128], strides = [1, 1]} : vector<8x384xf32> to vector<8x128xf32>
    %319 = arith.addf %317, %318 : vector<8x128xf32>
    %cst_131 = arith.constant 5.000000e-01 : f32
    %320 = vector.broadcast %cst_131 : f32 to vector<8x128xf32>
    %321 = arith.mulf %320, %319 : vector<8x128xf32>
    %322 = math.tanh %321 : vector<8x128xf32>
    %cst_132 = arith.constant 5.000000e-01 : f32
    %323 = vector.broadcast %cst_132 : f32 to vector<8x128xf32>
    %324 = arith.mulf %323, %322 : vector<8x128xf32>
    %cst_133 = arith.constant 5.000000e-01 : f32
    %325 = vector.broadcast %cst_133 : f32 to vector<8x128xf32>
    %326 = arith.addf %324, %325 : vector<8x128xf32>
    %327 = vector.extract_strided_slice %306 {offsets = [0, 256], sizes = [8, 128], strides = [1, 1]} : vector<8x384xf32> to vector<8x128xf32>
    %328 = vector.extract_strided_slice %303 {offsets = [0, 256], sizes = [8, 128], strides = [1, 1]} : vector<8x384xf32> to vector<8x128xf32>
    %329 = arith.addf %328, %5 : vector<8x128xf32>
    %330 = arith.mulf %316, %329 : vector<8x128xf32>
    %331 = arith.addf %327, %330 : vector<8x128xf32>
    %332 = math.tanh %331 : vector<8x128xf32>
    %333 = arith.subf %300, %332 : vector<8x128xf32>
    %334 = arith.mulf %326, %333 : vector<8x128xf32>
    %335 = arith.addf %332, %334 : vector<8x128xf32>
    %c0_134 = arith.constant 0 : index
    %c0_135 = arith.constant 0 : index
    %336 = vector.load %arg8[%c0_134, %c0_135] : memref<8x128xf32, #tpu.memory_space<vmem>>, vector<8x128xf32>
    tpu.vector_store %arg8[%c0_134, %c0_135], %335 {strides = array<i32>} : memref<8x128xf32, #tpu.memory_space<vmem>>, vector<8x128xf32>,
    %337 = arith.truncf %335 : vector<8x128xf32> to vector<8x128xbf16>
    %338 = arith.index_cast %c7_i32 : i32 to index
    %c0_136 = arith.constant 0 : index
    %c0_137 = arith.constant 0 : index
    %339 = vector.load %arg5[%338, %c0_136, %c0_137] : memref<8x8x128xbf16, #tpu.memory_space<vmem>>, vector<1x8x128xbf16>
    %340 = vector.shape_cast %339 : vector<1x8x128xbf16> to vector<8x128xbf16>
    %341 = vector.shape_cast %337 : vector<8x128xbf16> to vector<1x8x128xbf16>
    tpu.vector_store %arg5[%338, %c0_136, %c0_137], %341 {strides = array<i32>} : memref<8x8x128xbf16, #tpu.memory_space<vmem>>, vector<1x8x128xbf16>,
    %c8_i32 = arith.constant 8 : i32
    return
  }
  func.func @transform_0(%arg0: i32, %arg1: i32) -> (i32, i32, i32) {
    %c0_i32 = arith.constant 0 : i32
    %c0_i32_0 = arith.constant 0 : i32
    return %arg1, %arg0, %c0_i32 : i32, i32, i32
  }
  func.func @transform_2(%arg0: i32, %arg1: i32) -> (i32, i32) {
    %c0_i32 = arith.constant 0 : i32
    %c0_i32_0 = arith.constant 0 : i32
    %c0_i32_1 = arith.constant 0 : i32
    return %c0_i32, %c0_i32_0 : i32, i32
  }
  func.func @transform_3(%arg0: i32, %arg1: i32) -> (i32, i32, i32) {
    %c0_i32 = arith.constant 0 : i32
    %c0_i32_0 = arith.constant 0 : i32
    return %arg1, %arg0, %c0_i32 : i32, i32, i32
  }
}

</mosaic_0001>

<llo_original>
// kernel: rnn_model_forward.5
$region0: #{rnn_model_forward.5}
  #allocation0 [shape = 'u32[]', space=smem, size = 0x4, offset = 0x4, fixed_abs, tag = 'smem constant byte address 0x4 - core index']
  #allocation1 [shape = 'u32[144,128]{1,0:T(1,128)}', space=vmem, size = 0x12000, scoped, tag = 'internal scratch']
  %s0 = inlined_call_operand.vmem [shape: bf16[64,16], index: 0, kind: input, shape index: {}]
  %s1 = inlined_call_operand.vmem [shape: bf16[16,384], index: 1, kind: input, shape index: {}]
  %s2 = inlined_call_operand.hbm [shape: f32[1,384], index: 2, kind: input, shape index: {}]
  %s3 = inlined_call_operand.vmem [shape: f32[64,384], index: 3, kind: output, shape index: {}]
  %s4 = sld [smem:[#allocation0]]
  $region26: #{rnn_model_forward.5} parent=0
    _
  %s6 = ssub.s32 1, %s4
  %s7 = scalar_select 0, %s6, %s4
  $region1: #{rnn_model_forward.5} parent=0
    #allocation2 [shape = 'u8[1536]{0}', space=vmem, size = 0x800, scoped, tag = 'input window, operand 2, single buffered']
    #allocation3 [shape = 's32[1]{0}', space=sflag, size = 0x4, scoped, tag = 'scoped memory for rnn_model_forward.5']
    %8 = vsyncpa [#allocation3], 0
    // Predicated region
    $region2: #{rnn_model_forward.5} parent=1 // pred_check
      _
    $region3: #{rnn_model_forward.5} parent=1 // pred_check_branch
      %10 = sbr.rel (0) target = $region5
    $region4: #{rnn_model_forward.5} parent=1 // pred_region
      _
    $region5: #{rnn_model_forward.5} parent=1 // pred_fallthru
      _
    // Predicated region
    $region6: #{rnn_model_forward.5} parent=1 // pred_check
      _
    $region7: #{rnn_model_forward.5} parent=1 // pred_check_branch
      %12 = sbr.rel (0) target = $region9
    $region8: #{rnn_model_forward.5} parent=1 // pred_region
      _
    $region9: #{rnn_model_forward.5} parent=1 // pred_fallthru
      _
    // Predicated region
    $region10: #{rnn_model_forward.5} parent=1 // pred_check
      _
    $region11: #{rnn_model_forward.5} parent=1 // pred_check_branch
      %14 = sbr.rel (0) target = $region13
    $region12: #{rnn_model_forward.5} parent=1 // pred_region
      %s16 = ssub.s32 48, 48
      %17 = vsyncadd [#allocation3], %s16
      %s19 = sshll.u32 [#allocation2], 4
      %s20 = int_to_ptr.vmem [resolvable:$true] %s19
      %22 = dma.hbm_to_vmem [thread:$0]  %s2, 48, %s20, [#allocation3]
    $region13: #{rnn_model_forward.5} parent=1 // pred_fallthru
      _
    // Predicated region
    $region14: #{rnn_model_forward.5} parent=1 // pred_check
      _
    $region15: #{rnn_model_forward.5} parent=1 // pred_check_branch
      %24 = sbr.rel (0) target = $region17
    $region16: #{rnn_model_forward.5} parent=1 // pred_region
      %25 = dma.done [#allocation3], 48
    $region17: #{rnn_model_forward.5} parent=1 // pred_fallthru
      _
    %v27 = vld [vmem:[%s0] sm:$0xf]
    %v28 = vld [vmem:[%s0 + $0x4] sm:$0xf]
    %v29 = vld [vmem:[%s0 + $0x8] sm:$0xf]
    %v30 = vld [vmem:[%s0 + $0xc] sm:$0xf]
    %v31 = vld [vmem:[%s0 + $0x10] sm:$0xf]
    %v32 = vld [vmem:[%s0 + $0x14] sm:$0xf]
    %v33 = vld [vmem:[%s0 + $0x18] sm:$0xf]
    %v34 = vld [vmem:[%s0 + $0x1c] sm:$0xf]
    %v35 = vld [vmem:[%s1] sm:$0xff]
    %v36 = vld [vmem:[%s1 + $0x8] sm:$0xf]
    %v37 = vld [vmem:[%s1 + $0xc] sm:$0xff]
    %v38 = vld [vmem:[%s1 + $0x14] sm:$0xf]
    %v39 = vld [vmem:[#allocation2] sm:$0x7]
    %v41 = vlaneseq
    %v42 = vshrl.u32 %v41, 7
    %v43 = vsub.s32 0, %v42
    %v44 = vrot.slane %v39, %v43
    %v45 = vlaneseq
    %v46 = vshrl.u32 %v45, 7
    %v47 = vsub.s32 1, %v46
    %v48 = vrot.slane %v39, %v47
    %v49 = vlaneseq
    %v50 = vshrl.u32 %v49, 7
    %v51 = vsub.s32 2, %v50
    %v52 = vrot.slane %v39, %v51
    %v64 = vunpack.c.l.b16 %v27
    %v65 = vunpack.c.l.b16 %v28
    %v66 = vunpack.c.l.b16 %v29
    %v67 = vunpack.c.l.b16 %v30
    %v68 = vunpack.c.l.b16 %v31
    %v69 = vunpack.c.l.b16 %v32
    %v70 = vunpack.c.l.b16 %v33
    %v71 = vunpack.c.l.b16 %v34
    %v72 = vpack.c.b16 %v65, %v64
    %v73 = vpack.c.b16 %v67, %v66
    %v74 = vpack.c.b16 %v69, %v68
    %v75 = vpack.c.b16 %v71, %v70
    %v80 = vunpack.c.l.b16 %v35
    %v81 = vunpack.c.h.b16 %v35
    %v82 = vunpack.c.l.b16 %v36
    %v83 = vunpack.c.l.b16 %v37
    %v84 = vunpack.c.h.b16 %v37
    %v85 = vunpack.c.l.b16 %v38
    %v86 = vpack.c.b16 %v83, %v80
    %v87 = vpack.c.b16 %v84, %v81
    %v88 = vpack.c.b16 %v85, %v82
    %vm92 = vcmask 130048
    %v94 = vsel %vm92, %v72, 0
    %v97 = vsel %vm92, %v73, 0
    %v100 = vsel %vm92, %v74, 0
    %v103 = vsel %vm92, %v75, 0
    %105 = vmatprep.subr.bf16.mxu0 %v87
    %106 = vmatpush1.bf16.msra.mxu0 %v86
    %107 = vmatprep.subr.bf16.mxu0 0
    %108 = vmatpush1.bf16.msra.mxu0 0
    %109 = vmatprep.subr.bf16.mxu0 0
    %110 = vmatpush1.bf16.msra.mxu0 0
    %111 = vmatprep.subr.bf16.mxu0 0
    %112 = vmatpush1.bf16.msra.mxu0 0
    %113 = vmatprep.subr.bf16.mxu0 0
    %114 = vmatpush1.bf16.msra.mxu0 0
    %115 = vmatprep.subr.bf16.mxu0 0
    %116 = vmatpush1.bf16.msra.mxu0 0
    %117 = vmatprep.subr.bf16.mxu0 0
    %118 = vmatpush1.bf16.msra.mxu0 0
    %119 = vmatprep.subr.bf16.mxu0 0
    %120 = vmatpush1.bf16.msra.mxu0 0
    %121 = vmatprep.subr.bf16.mxu0 0
    %122 = vmatpush1.bf16.msra.mxu0 0
    %123 = vmatprep.subr.bf16.mxu0 0
    %124 = vmatpush1.bf16.msra.mxu0 0
    %125 = vmatprep.subr.bf16.mxu0 0
    %126 = vmatpush1.bf16.msra.mxu0 0
    %127 = vmatprep.subr.bf16.mxu0 0
    %128 = vmatpush1.bf16.msra.mxu0 0
    %129 = vmatprep.subr.bf16.mxu0 0
    %130 = vmatpush1.bf16.msra.mxu0 0
    %131 = vmatprep.subr.bf16.mxu0 0
    %132 = vmatpush1.bf16.msra.mxu0 0
    %133 = vmatprep.subr.bf16.mxu0 0
    %134 = vmatpush1.bf16.msra.mxu0 0
    %135 = vmatprep.subr.bf16.mxu0 0
    %136 = vmatpush1.bf16.msra.mxu0 0
    %137 = vmatprep.mubr.bf16.mxu0 0
    %138 = vmatmul.mubr.bf16.gmra.mrb[0].mxu0 %v94
    %v139 = vpop.f32.mrb[0].mxu0
    %v140 = vadd.f32 %v44, %v139
    %v141 = vpop.f32.mrb[0].mxu0
    %v142 = vadd.f32 %v48, %v141
    %v143 = vpop.f32.mrb[0].mxu0
    %v144 = vadd.f32 %v44, %v143
    %v145 = vpop.f32.mrb[0].mxu0
    %v146 = vadd.f32 %v48, %v145
    %147 = vmatprep.mubr.bf16.mxu0 0
    %148 = vmatmul.mubr.bf16.gmra.mrb[0].mxu0 %v97
    %v149 = vpop.f32.mrb[0].mxu0
    %v150 = vadd.f32 %v44, %v149
    %v151 = vpop.f32.mrb[0].mxu0
    %v152 = vadd.f32 %v48, %v151
    %v153 = vpop.f32.mrb[0].mxu0
    %v154 = vadd.f32 %v44, %v153
    %v155 = vpop.f32.mrb[0].mxu0
    %v156 = vadd.f32 %v48, %v155
    %157 = vmatprep.mubr.bf16.mxu0 0
    %158 = vmatmul.mubr.bf16.gmra.mrb[0].mxu0 %v100
    %v159 = vpop.f32.mrb[0].mxu0
    %v160 = vadd.f32 %v44, %v159
    %v161 = vpop.f32.mrb[0].mxu0
    %v162 = vadd.f32 %v48, %v161
    %v163 = vpop.f32.mrb[0].mxu0
    %v164 = vadd.f32 %v44, %v163
    %v165 = vpop.f32.mrb[0].mxu0
    %v166 = vadd.f32 %v48, %v165
    %167 = vmatprep.mubr.bf16.mxu0 0
    %168 = vmatmul.mubr.bf16.gmra.mrb[0].mxu0 %v103
    %v169 = vpop.f32.mrb[0].mxu0
    %v170 = vadd.f32 %v44, %v169
    %v171 = vpop.f32.mrb[0].mxu0
    %v172 = vadd.f32 %v48, %v171
    %v173 = vpop.f32.mrb[0].mxu0
    %v174 = vadd.f32 %v44, %v173
    %v175 = vpop.f32.mrb[0].mxu0
    %v176 = vadd.f32 %v48, %v175
    %177 = vdwg.mxu0
    %178 = vmatprep.subr.bf16.mxu0 0
    %179 = vmatpush1.bf16.msra.mxu0 %v88
    %180 = vmatprep.subr.bf16.mxu0 0
    %181 = vmatpush1.bf16.msra.mxu0 0
    %182 = vmatprep.subr.bf16.mxu0 0
    %183 = vmatpush1.bf16.msra.mxu0 0
    %184 = vmatprep.subr.bf16.mxu0 0
    %185 = vmatpush1.bf16.msra.mxu0 0
    %186 = vmatprep.subr.bf16.mxu0 0
    %187 = vmatpush1.bf16.msra.mxu0 0
    %188 = vmatprep.subr.bf16.mxu0 0
    %189 = vmatpush1.bf16.msra.mxu0 0
    %190 = vmatprep.subr.bf16.mxu0 0
    %191 = vmatpush1.bf16.msra.mxu0 0
    %192 = vmatprep.subr.bf16.mxu0 0
    %193 = vmatpush1.bf16.msra.mxu0 0
    %194 = vmatprep.subr.bf16.mxu0 0
    %195 = vmatpush1.bf16.msra.mxu0 0
    %196 = vmatprep.subr.bf16.mxu0 0
    %197 = vmatpush1.bf16.msra.mxu0 0
    %198 = vmatprep.subr.bf16.mxu0 0
    %199 = vmatpush1.bf16.msra.mxu0 0
    %200 = vmatprep.subr.bf16.mxu0 0
    %201 = vmatpush1.bf16.msra.mxu0 0
    %202 = vmatprep.subr.bf16.mxu0 0
    %203 = vmatpush1.bf16.msra.mxu0 0
    %204 = vmatprep.subr.bf16.mxu0 0
    %205 = vmatpush1.bf16.msra.mxu0 0
    %206 = vmatprep.subr.bf16.mxu0 0
    %207 = vmatpush1.bf16.msra.mxu0 0
    %208 = vmatprep.subr.bf16.mxu0 0
    %209 = vmatpush1.bf16.msra.mxu0 0
    %210 = vmatprep.mubr.bf16.mxu0 0
    %211 = vmatmul.mubr.bf16.gmra.mrb[0].mxu0 %v94
    %v212 = vpop.f32.mrb[0].mxu0
    %v213 = vadd.f32 %v52, %v212
    %v214 = vpop.f32.mrb[0].mxu0
    %v215 = vpop.f32.mrb[0].mxu0
    %v216 = vadd.f32 %v52, %v215
    %v217 = vpop.f32.mrb[0].mxu0
    %218 = vmatprep.mubr.bf16.mxu0 0
    %219 = vmatmul.mubr.bf16.gmra.mrb[0].mxu0 %v97
    %v220 = vpop.f32.mrb[0].mxu0
    %v221 = vadd.f32 %v52, %v220
    %v222 = vpop.f32.mrb[0].mxu0
    %v223 = vpop.f32.mrb[0].mxu0
    %v224 = vadd.f32 %v52, %v223
    %v225 = vpop.f32.mrb[0].mxu0
    %226 = vmatprep.mubr.bf16.mxu0 0
    %227 = vmatmul.mubr.bf16.gmra.mrb[0].mxu0 %v100
    %v228 = vpop.f32.mrb[0].mxu0
    %v229 = vadd.f32 %v52, %v228
    %v230 = vpop.f32.mrb[0].mxu0
    %v231 = vpop.f32.mrb[0].mxu0
    %v232 = vadd.f32 %v52, %v231
    %v233 = vpop.f32.mrb[0].mxu0
    %234 = vmatprep.mubr.bf16.mxu0 0
    %235 = vmatmul.mubr.bf16.gmra.mrb[0].mxu0 %v103
    %v236 = vpop.f32.mrb[0].mxu0
    %v237 = vadd.f32 %v52, %v236
    %v238 = vpop.f32.mrb[0].mxu0
    %v239 = vpop.f32.mrb[0].mxu0
    %v240 = vadd.f32 %v52, %v239
    %v241 = vpop.f32.mrb[0].mxu0
    %242 = vdwg.mxu0
    %243 = vst [vmem:[%s3] sm:$0xff] %v140
    %244 = vst [vmem:[%s3 + $0x8] sm:$0xff] %v142
    %245 = vst [vmem:[%s3 + $0x10] sm:$0xff] %v213
    %246 = vst [vmem:[%s3 + $0x18] sm:$0xff] %v144
    %247 = vst [vmem:[%s3 + $0x20] sm:$0xff] %v146
    %248 = vst [vmem:[%s3 + $0x28] sm:$0xff] %v216
    %249 = vst [vmem:[%s3 + $0x30] sm:$0xff] %v150
    %250 = vst [vmem:[%s3 + $0x38] sm:$0xff] %v152
    %251 = vst [vmem:[%s3 + $0x40] sm:$0xff] %v221
    %252 = vst [vmem:[%s3 + $0x48] sm:$0xff] %v154
    %253 = vst [vmem:[%s3 + $0x50] sm:$0xff] %v156
    %254 = vst [vmem:[%s3 + $0x58] sm:$0xff] %v224
    %255 = vst [vmem:[%s3 + $0x60] sm:$0xff] %v160
    %256 = vst [vmem:[%s3 + $0x68] sm:$0xff] %v162
    %257 = vst [vmem:[%s3 + $0x70] sm:$0xff] %v229
    %258 = vst [vmem:[%s3 + $0x78] sm:$0xff] %v164
    %259 = vst [vmem:[%s3 + $0x80] sm:$0xff] %v166
    %260 = vst [vmem:[%s3 + $0x88] sm:$0xff] %v232
    %261 = vst [vmem:[%s3 + $0x90] sm:$0xff] %v170
    %262 = vst [vmem:[%s3 + $0x98] sm:$0xff] %v172
    %263 = vst [vmem:[%s3 + $0xa0] sm:$0xff] %v237
    %264 = vst [vmem:[%s3 + $0xa8] sm:$0xff] %v174
    %265 = vst [vmem:[%s3 + $0xb0] sm:$0xff] %v176
    %266 = vst [vmem:[%s3 + $0xb8] sm:$0xff] %v240
    // Predicated region
    $region18: #{rnn_model_forward.5} parent=1 // pred_check
      _
    $region19: #{rnn_model_forward.5} parent=1 // pred_check_branch
      %268 = sbr.rel (0) target = $region21
    $region20: #{rnn_model_forward.5} parent=1 // pred_region
      _
    $region21: #{rnn_model_forward.5} parent=1 // pred_fallthru
      _
    // Predicated region
    $region22: #{rnn_model_forward.5} parent=1 // pred_check
      _
    $region23: #{rnn_model_forward.5} parent=1 // pred_check_branch
      %270 = sbr.rel (0) target = $region25
    $region24: #{rnn_model_forward.5} parent=1 // pred_region
      _
    $region25: #{rnn_model_forward.5} parent=1 // pred_fallthru
      _
    %271 = vsyncpa [#allocation3], 1

// kernel: rnn_model_forward.9
$region0: #{rnn_model_forward.9}
  #allocation0 [shape = 'u32[]', space=smem, size = 0x4, offset = 0x4, fixed_abs, tag = 'smem constant byte address 0x4 - core index']
  #allocation1 [shape = 'u32[144,128]{1,0:T(1,128)}', space=vmem, size = 0x12000, scoped, tag = 'internal scratch']
  %s0 = inlined_call_operand.vmem [shape: bf16[64,128], index: 0, kind: input, shape index: {}]
  %s1 = inlined_call_operand.vmem [shape: bf16[128,128], index: 1, kind: input, shape index: {}]
  %s2 = inlined_call_operand.vmem [shape: f32[1,128], index: 2, kind: input, shape index: {}]
  %s3 = inlined_call_operand.vmem [shape: f32[64,128], index: 3, kind: output, shape index: {}]
  %s4 = sld [smem:[#allocation0]]
  $region22: #{rnn_model_forward.9} parent=0
    _
  %s6 = ssub.s32 1, %s4
  %s7 = scalar_select 0, %s6, %s4
  // Predicated region
  $region2: #{rnn_model_forward.9} parent=0 // pred_check
    _
  $region3: #{rnn_model_forward.9} parent=0 // pred_check_branch
    %9 = sbr.rel (0) target = $region5
  $region4: #{rnn_model_forward.9} parent=0 // pred_region
    _
  $region5: #{rnn_model_forward.9} parent=0 // pred_fallthru
    _
  // Predicated region
  $region6: #{rnn_model_forward.9} parent=0 // pred_check
    _
  $region7: #{rnn_model_forward.9} parent=0 // pred_check_branch
    %11 = sbr.rel (0) target = $region9
  $region8: #{rnn_model_forward.9} parent=0 // pred_region
    _
  $region9: #{rnn_model_forward.9} parent=0 // pred_fallthru
    _
  // Predicated region
  $region10: #{rnn_model_forward.9} parent=0 // pred_check
    _
  $region11: #{rnn_model_forward.9} parent=0 // pred_check_branch
    %13 = sbr.rel (0) target = $region13
  $region12: #{rnn_model_forward.9} parent=0 // pred_region
    _
  $region13: #{rnn_model_forward.9} parent=0 // pred_fallthru
    _
  %v15 = vld [vmem:[%s0] sm:$0xf]
  %v16 = vld [vmem:[%s0 + $0x4] sm:$0xf]
  %v17 = vld [vmem:[%s0 + $0x8] sm:$0xf]
  %v18 = vld [vmem:[%s0 + $0xc] sm:$0xf]
  %v19 = vld [vmem:[%s0 + $0x10] sm:$0xf]
  %v20 = vld [vmem:[%s0 + $0x14] sm:$0xf]
  %v21 = vld [vmem:[%s0 + $0x18] sm:$0xf]
  %v22 = vld [vmem:[%s0 + $0x1c] sm:$0xf]
  %v23 = vld [vmem:[%s1] sm:$0xf]
  %v24 = vld [vmem:[%s1 + $0x4] sm:$0xf]
  %v25 = vld [vmem:[%s1 + $0x8] sm:$0xf]
  %v26 = vld [vmem:[%s1 + $0xc] sm:$0xf]
  %v27 = vld [vmem:[%s1 + $0x10] sm:$0xf]
  %v28 = vld [vmem:[%s1 + $0x14] sm:$0xf]
  %v29 = vld [vmem:[%s1 + $0x18] sm:$0xf]
  %v30 = vld [vmem:[%s1 + $0x1c] sm:$0xf]
  %v31 = vld [vmem:[%s1 + $0x20] sm:$0xf]
  %v32 = vld [vmem:[%s1 + $0x24] sm:$0xf]
  %v33 = vld [vmem:[%s1 + $0x28] sm:$0xf]
  %v34 = vld [vmem:[%s1 + $0x2c] sm:$0xf]
  %v35 = vld [vmem:[%s1 + $0x30] sm:$0xf]
  %v36 = vld [vmem:[%s1 + $0x34] sm:$0xf]
  %v37 = vld [vmem:[%s1 + $0x38] sm:$0xf]
  %v38 = vld [vmem:[%s1 + $0x3c] sm:$0xf]
  %v39 = vld [vmem:[%s2] sm:$0x1]
  %v41 = vlaneseq
  %v42 = vshrl.u32 %v41, 7
  %v43 = vsub.s32 0, %v42
  %v44 = vrot.slane %v39, %v43
  %v54 = vunpack.c.l.b16 %v15
  %v55 = vunpack.c.l.b16 %v16
  %v56 = vunpack.c.l.b16 %v17
  %v57 = vunpack.c.l.b16 %v18
  %v58 = vunpack.c.l.b16 %v19
  %v59 = vunpack.c.l.b16 %v20
  %v60 = vunpack.c.l.b16 %v21
  %v61 = vunpack.c.l.b16 %v22
  %v62 = vpack.c.b16 %v55, %v54
  %v63 = vpack.c.b16 %v57, %v56
  %v64 = vpack.c.b16 %v59, %v58
  %v65 = vpack.c.b16 %v61, %v60
  %v86 = vunpack.c.l.b16 %v23
  %v87 = vunpack.c.l.b16 %v24
  %v88 = vunpack.c.l.b16 %v25
  %v89 = vunpack.c.l.b16 %v26
  %v90 = vunpack.c.l.b16 %v27
  %v91 = vunpack.c.l.b16 %v28
  %v92 = vunpack.c.l.b16 %v29
  %v93 = vunpack.c.l.b16 %v30
  %v94 = vunpack.c.l.b16 %v31
  %v95 = vunpack.c.l.b16 %v32
  %v96 = vunpack.c.l.b16 %v33
  %v97 = vunpack.c.l.b16 %v34
  %v98 = vunpack.c.l.b16 %v35
  %v99 = vunpack.c.l.b16 %v36
  %v100 = vunpack.c.l.b16 %v37
  %v101 = vunpack.c.l.b16 %v38
  %v102 = vpack.c.b16 %v87, %v86
  %v103 = vpack.c.b16 %v89, %v88
  %v104 = vpack.c.b16 %v91, %v90
  %v105 = vpack.c.b16 %v93, %v92
  %v106 = vpack.c.b16 %v95, %v94
  %v107 = vpack.c.b16 %v97, %v96
  %v108 = vpack.c.b16 %v99, %v98
  %v109 = vpack.c.b16 %v101, %v100
  %118 = vmatprep.subr.bf16.mxu0 0
  %119 = vmatpush1.bf16.msra.mxu0 %v102
  %120 = vmatprep.subr.bf16.mxu0 0
  %121 = vmatpush1.bf16.msra.mxu0 %v103
  %122 = vmatprep.subr.bf16.mxu0 0
  %123 = vmatpush1.bf16.msra.mxu0 %v104
  %124 = vmatprep.subr.bf16.mxu0 0
  %125 = vmatpush1.bf16.msra.mxu0 %v105
  %126 = vmatprep.subr.bf16.mxu0 0
  %127 = vmatpush1.bf16.msra.mxu0 %v106
  %128 = vmatprep.subr.bf16.mxu0 0
  %129 = vmatpush1.bf16.msra.mxu0 %v107
  %130 = vmatprep.subr.bf16.mxu0 0
  %131 = vmatpush1.bf16.msra.mxu0 %v108
  %132 = vmatprep.subr.bf16.mxu0 0
  %133 = vmatpush1.bf16.msra.mxu0 %v109
  %134 = vmatprep.subr.bf16.mxu0 0
  %135 = vmatpush1.bf16.msra.mxu0 0
  %136 = vmatprep.subr.bf16.mxu0 0
  %137 = vmatpush1.bf16.msra.mxu0 0
  %138 = vmatprep.subr.bf16.mxu0 0
  %139 = vmatpush1.bf16.msra.mxu0 0
  %140 = vmatprep.subr.bf16.mxu0 0
  %141 = vmatpush1.bf16.msra.mxu0 0
  %142 = vmatprep.subr.bf16.mxu0 0
  %143 = vmatpush1.bf16.msra.mxu0 0
  %144 = vmatprep.subr.bf16.mxu0 0
  %145 = vmatpush1.bf16.msra.mxu0 0
  %146 = vmatprep.subr.bf16.mxu0 0
  %147 = vmatpush1.bf16.msra.mxu0 0
  %148 = vmatprep.subr.bf16.mxu0 0
  %149 = vmatpush1.bf16.msra.mxu0 0
  %150 = vmatprep.mubr.bf16.mxu0 0
  %151 = vmatmul.mubr.bf16.gmra.mrb[0].mxu0 %v62
  %v152 = vpop.f32.mrb[0].mxu0
  %v153 = vadd.f32 %v44, %v152
  %v154 = vpop.f32.mrb[0].mxu0
  %v155 = vpop.f32.mrb[0].mxu0
  %v156 = vadd.f32 %v44, %v155
  %v157 = vpop.f32.mrb[0].mxu0
  %158 = vmatprep.mubr.bf16.mxu0 0
  %159 = vmatmul.mubr.bf16.gmra.mrb[0].mxu0 %v63
  %v160 = vpop.f32.mrb[0].mxu0
  %v161 = vadd.f32 %v44, %v160
  %v162 = vpop.f32.mrb[0].mxu0
  %v163 = vpop.f32.mrb[0].mxu0
  %v164 = vadd.f32 %v44, %v163
  %v165 = vpop.f32.mrb[0].mxu0
  %166 = vmatprep.mubr.bf16.mxu0 0
  %167 = vmatmul.mubr.bf16.gmra.mrb[0].mxu0 %v64
  %v168 = vpop.f32.mrb[0].mxu0
  %v169 = vadd.f32 %v44, %v168
  %v170 = vpop.f32.mrb[0].mxu0
  %v171 = vpop.f32.mrb[0].mxu0
  %v172 = vadd.f32 %v44, %v171
  %v173 = vpop.f32.mrb[0].mxu0
  %174 = vmatprep.mubr.bf16.mxu0 0
  %175 = vmatmul.mubr.bf16.gmra.mrb[0].mxu0 %v65
  %v176 = vpop.f32.mrb[0].mxu0
  %v177 = vadd.f32 %v44, %v176
  %v178 = vpop.f32.mrb[0].mxu0
  %v179 = vpop.f32.mrb[0].mxu0
  %v180 = vadd.f32 %v44, %v179
  %v181 = vpop.f32.mrb[0].mxu0
  %182 = vdwg.mxu0
  %183 = vst [vmem:[%s3] sm:$0xff] %v153
  %184 = vst [vmem:[%s3 + $0x8] sm:$0xff] %v156
  %185 = vst [vmem:[%s3 + $0x10] sm:$0xff] %v161
  %186 = vst [vmem:[%s3 + $0x18] sm:$0xff] %v164
  %187 = vst [vmem:[%s3 + $0x20] sm:$0xff] %v169
  %188 = vst [vmem:[%s3 + $0x28] sm:$0xff] %v172
  %189 = vst [vmem:[%s3 + $0x30] sm:$0xff] %v177
  %190 = vst [vmem:[%s3 + $0x38] sm:$0xff] %v180
  // Predicated region
  $region14: #{rnn_model_forward.9} parent=0 // pred_check
    _
  $region15: #{rnn_model_forward.9} parent=0 // pred_check_branch
    %192 = sbr.rel (0) target = $region17
  $region16: #{rnn_model_forward.9} parent=0 // pred_region
    _
  $region17: #{rnn_model_forward.9} parent=0 // pred_fallthru
    _
  // Predicated region
  $region18: #{rnn_model_forward.9} parent=0 // pred_check
    _
  $region19: #{rnn_model_forward.9} parent=0 // pred_check_branch
    %194 = sbr.rel (0) target = $region21
  $region20: #{rnn_model_forward.9} parent=0 // pred_region
    _
  $region21: #{rnn_model_forward.9} parent=0 // pred_fallthru
    _

// kernel: rnn_model_forward.7
$region0: #{rnn_model_forward.7}
  #allocation0 [shape = 'u32[]', space=smem, size = 0x4, offset = 0x4, fixed_abs, tag = 'smem constant byte address 0x4 - core index']
  #allocation1 [shape = 'u32[144,128]{1,0:T(1,128)}', space=vmem, size = 0x12000, scoped, tag = 'internal scratch']
  %s0 = inlined_call_operand.vmem [shape: bf16[64,128], index: 0, kind: input, shape index: {}]
  %s1 = inlined_call_operand.vmem [shape: bf16[128,384], index: 1, kind: input, shape index: {}]
  %s2 = inlined_call_operand.vmem [shape: f32[1,384], index: 2, kind: input, shape index: {}]
  %s3 = inlined_call_operand.vmem [shape: f32[64,384], index: 3, kind: output, shape index: {}]
  %s4 = sld [smem:[#allocation0]]
  $region22: #{rnn_model_forward.7} parent=0
    _
  %s6 = ssub.s32 1, %s4
  %s7 = scalar_select 0, %s6, %s4
  // Predicated region
  $region2: #{rnn_model_forward.7} parent=0 // pred_check
    _
  $region3: #{rnn_model_forward.7} parent=0 // pred_check_branch
    %9 = sbr.rel (0) target = $region5
  $region4: #{rnn_model_forward.7} parent=0 // pred_region
    _
  $region5: #{rnn_model_forward.7} parent=0 // pred_fallthru
    _
  // Predicated region
  $region6: #{rnn_model_forward.7} parent=0 // pred_check
    _
  $region7: #{rnn_model_forward.7} parent=0 // pred_check_branch
    %11 = sbr.rel (0) target = $region9
  $region8: #{rnn_model_forward.7} parent=0 // pred_region
    _
  $region9: #{rnn_model_forward.7} parent=0 // pred_fallthru
    _
  // Predicated region
  $region10: #{rnn_model_forward.7} parent=0 // pred_check
    _
  $region11: #{rnn_model_forward.7} parent=0 // pred_check_branch
    %13 = sbr.rel (0) target = $region13
  $region12: #{rnn_model_forward.7} parent=0 // pred_region
    _
  $region13: #{rnn_model_forward.7} parent=0 // pred_fallthru
    _
  %v15 = vld [vmem:[%s0] sm:$0xf]
  %v16 = vld [vmem:[%s0 + $0x4] sm:$0xf]
  %v17 = vld [vmem:[%s0 + $0x8] sm:$0xf]
  %v18 = vld [vmem:[%s0 + $0xc] sm:$0xf]
  %v19 = vld [vmem:[%s0 + $0x10] sm:$0xf]
  %v20 = vld [vmem:[%s0 + $0x14] sm:$0xf]
  %v21 = vld [vmem:[%s0 + $0x18] sm:$0xf]
  %v22 = vld [vmem:[%s0 + $0x1c] sm:$0xf]
  %v23 = vld [vmem:[%s1] sm:$0xff]
  %v24 = vld [vmem:[%s1 + $0x8] sm:$0xf]
  %v25 = vld [vmem:[%s1 + $0xc] sm:$0xff]
  %v26 = vld [vmem:[%s1 + $0x14] sm:$0xf]
  %v27 = vld [vmem:[%s1 + $0x18] sm:$0xff]
  %v28 = vld [vmem:[%s1 + $0x20] sm:$0xf]
  %v29 = vld [vmem:[%s1 + $0x24] sm:$0xff]
  %v30 = vld [vmem:[%s1 + $0x2c] sm:$0xf]
  %v31 = vld [vmem:[%s1 + $0x30] sm:$0xff]
  %v32 = vld [vmem:[%s1 + $0x38] sm:$0xf]
  %v33 = vld [vmem:[%s1 + $0x3c] sm:$0xff]
  %v34 = vld [vmem:[%s1 + $0x44] sm:$0xf]
  %v35 = vld [vmem:[%s1 + $0x48] sm:$0xff]
  %v36 = vld [vmem:[%s1 + $0x50] sm:$0xf]
  %v37 = vld [vmem:[%s1 + $0x54] sm:$0xff]
  %v38 = vld [vmem:[%s1 + $0x5c] sm:$0xf]
  %v39 = vld [vmem:[%s1 + $0x60] sm:$0xff]
  %v40 = vld [vmem:[%s1 + $0x68] sm:$0xf]
  %v41 = vld [vmem:[%s1 + $0x6c] sm:$0xff]
  %v42 = vld [vmem:[%s1 + $0x74] sm:$0xf]
  %v43 = vld [vmem:[%s1 + $0x78] sm:$0xff]
  %v44 = vld [vmem:[%s1 + $0x80] sm:$0xf]
  %v45 = vld [vmem:[%s1 + $0x84] sm:$0xff]
  %v46 = vld [vmem:[%s1 + $0x8c] sm:$0xf]
  %v47 = vld [vmem:[%s1 + $0x90] sm:$0xff]
  %v48 = vld [vmem:[%s1 + $0x98] sm:$0xf]
  %v49 = vld [vmem:[%s1 + $0x9c] sm:$0xff]
  %v50 = vld [vmem:[%s1 + $0xa4] sm:$0xf]
  %v51 = vld [vmem:[%s1 + $0xa8] sm:$0xff]
  %v52 = vld [vmem:[%s1 + $0xb0] sm:$0xf]
  %v53 = vld [vmem:[%s1 + $0xb4] sm:$0xff]
  %v54 = vld [vmem:[%s1 + $0xbc] sm:$0xf]
  %v55 = vld [vmem:[%s2] sm:$0x7]
  %v57 = vlaneseq
  %v58 = vshrl.u32 %v57, 7
  %v59 = vsub.s32 0, %v58
  %v60 = vrot.slane %v55, %v59
  %v61 = vlaneseq
  %v62 = vshrl.u32 %v61, 7
  %v63 = vsub.s32 1, %v62
  %v64 = vrot.slane %v55, %v63
  %v65 = vlaneseq
  %v66 = vshrl.u32 %v65, 7
  %v67 = vsub.s32 2, %v66
  %v68 = vrot.slane %v55, %v67
  %v80 = vunpack.c.l.b16 %v15
  %v81 = vunpack.c.l.b16 %v16
  %v82 = vunpack.c.l.b16 %v17
  %v83 = vunpack.c.l.b16 %v18
  %v84 = vunpack.c.l.b16 %v19
  %v85 = vunpack.c.l.b16 %v20
  %v86 = vunpack.c.l.b16 %v21
  %v87 = vunpack.c.l.b16 %v22
  %v88 = vpack.c.b16 %v81, %v80
  %v89 = vpack.c.b16 %v83, %v82
  %v90 = vpack.c.b16 %v85, %v84
  %v91 = vpack.c.b16 %v87, %v86
  %v128 = vunpack.c.l.b16 %v23
  %v129 = vunpack.c.h.b16 %v23
  %v130 = vunpack.c.l.b16 %v24
  %v131 = vunpack.c.l.b16 %v25
  %v132 = vunpack.c.h.b16 %v25
  %v133 = vunpack.c.l.b16 %v26
  %v134 = vunpack.c.l.b16 %v27
  %v135 = vunpack.c.h.b16 %v27
  %v136 = vunpack.c.l.b16 %v28
  %v137 = vunpack.c.l.b16 %v29
  %v138 = vunpack.c.h.b16 %v29
  %v139 = vunpack.c.l.b16 %v30
  %v140 = vunpack.c.l.b16 %v31
  %v141 = vunpack.c.h.b16 %v31
  %v142 = vunpack.c.l.b16 %v32
  %v143 = vunpack.c.l.b16 %v33
  %v144 = vunpack.c.h.b16 %v33
  %v145 = vunpack.c.l.b16 %v34
  %v146 = vunpack.c.l.b16 %v35
  %v147 = vunpack.c.h.b16 %v35
  %v148 = vunpack.c.l.b16 %v36
  %v149 = vunpack.c.l.b16 %v37
  %v150 = vunpack.c.h.b16 %v37
  %v151 = vunpack.c.l.b16 %v38
  %v152 = vunpack.c.l.b16 %v39
  %v153 = vunpack.c.h.b16 %v39
  %v154 = vunpack.c.l.b16 %v40
  %v155 = vunpack.c.l.b16 %v41
  %v156 = vunpack.c.h.b16 %v41
  %v157 = vunpack.c.l.b16 %v42
  %v158 = vunpack.c.l.b16 %v43
  %v159 = vunpack.c.h.b16 %v43
  %v160 = vunpack.c.l.b16 %v44
  %v161 = vunpack.c.l.b16 %v45
  %v162 = vunpack.c.h.b16 %v45
  %v163 = vunpack.c.l.b16 %v46
  %v164 = vunpack.c.l.b16 %v47
  %v165 = vunpack.c.h.b16 %v47
  %v166 = vunpack.c.l.b16 %v48
  %v167 = vunpack.c.l.b16 %v49
  %v168 = vunpack.c.h.b16 %v49
  %v169 = vunpack.c.l.b16 %v50
  %v170 = vunpack.c.l.b16 %v51
  %v171 = vunpack.c.h.b16 %v51
  %v172 = vunpack.c.l.b16 %v52
  %v173 = vunpack.c.l.b16 %v53
  %v174 = vunpack.c.h.b16 %v53
  %v175 = vunpack.c.l.b16 %v54
  %v176 = vpack.c.b16 %v131, %v128
  %v177 = vpack.c.b16 %v132, %v129
  %v178 = vpack.c.b16 %v133, %v130
  %v179 = vpack.c.b16 %v137, %v134
  %v180 = vpack.c.b16 %v138, %v135
  %v181 = vpack.c.b16 %v139, %v136
  %v182 = vpack.c.b16 %v143, %v140
  %v183 = vpack.c.b16 %v144, %v141
  %v184 = vpack.c.b16 %v145, %v142
  %v185 = vpack.c.b16 %v149, %v146
  %v186 = vpack.c.b16 %v150, %v147
  %v187 = vpack.c.b16 %v151, %v148
  %v188 = vpack.c.b16 %v155, %v152
  %v189 = vpack.c.b16 %v156, %v153
  %v190 = vpack.c.b16 %v157, %v154
  %v191 = vpack.c.b16 %v161, %v158
  %v192 = vpack.c.b16 %v162, %v159
  %v193 = vpack.c.b16 %v163, %v160
  %v194 = vpack.c.b16 %v167, %v164
  %v195 = vpack.c.b16 %v168, %v165
  %v196 = vpack.c.b16 %v169, %v166
  %v197 = vpack.c.b16 %v173, %v170
  %v198 = vpack.c.b16 %v174, %v171
  %v199 = vpack.c.b16 %v175, %v172
  %224 = vmatprep.subr.bf16.mxu0 %v177
  %225 = vmatpush1.bf16.msra.mxu0 %v176
  %226 = vmatprep.subr.bf16.mxu0 %v180
  %227 = vmatpush1.bf16.msra.mxu0 %v179
  %228 = vmatprep.subr.bf16.mxu0 %v183
  %229 = vmatpush1.bf16.msra.mxu0 %v182
  %230 = vmatprep.subr.bf16.mxu0 %v186
  %231 = vmatpush1.bf16.msra.mxu0 %v185
  %232 = vmatprep.subr.bf16.mxu0 %v189
  %233 = vmatpush1.bf16.msra.mxu0 %v188
  %234 = vmatprep.subr.bf16.mxu0 %v192
  %235 = vmatpush1.bf16.msra.mxu0 %v191
  %236 = vmatprep.subr.bf16.mxu0 %v195
  %237 = vmatpush1.bf16.msra.mxu0 %v194
  %238 = vmatprep.subr.bf16.mxu0 %v198
  %239 = vmatpush1.bf16.msra.mxu0 %v197
  %240 = vmatprep.subr.bf16.mxu0 0
  %241 = vmatpush1.bf16.msra.mxu0 0
  %242 = vmatprep.subr.bf16.mxu0 0
  %243 = vmatpush1.bf16.msra.mxu0 0
  %244 = vmatprep.subr.bf16.mxu0 0
  %245 = vmatpush1.bf16.msra.mxu0 0
  %246 = vmatprep.subr.bf16.mxu0 0
  %247 = vmatpush1.bf16.msra.mxu0 0
  %248 = vmatprep.subr.bf16.mxu0 0
  %249 = vmatpush1.bf16.msra.mxu0 0
  %250 = vmatprep.subr.bf16.mxu0 0
  %251 = vmatpush1.bf16.msra.mxu0 0
  %252 = vmatprep.subr.bf16.mxu0 0
  %253 = vmatpush1.bf16.msra.mxu0 0
  %254 = vmatprep.subr.bf16.mxu0 0
  %255 = vmatpush1.bf16.msra.mxu0 0
  %256 = vmatprep.mubr.bf16.mxu0 0
  %257 = vmatmul.mubr.bf16.gmra.mrb[0].mxu0 %v88
  %v258 = vpop.f32.mrb[0].mxu0
  %v259 = vadd.f32 %v60, %v258
  %v260 = vpop.f32.mrb[0].mxu0
  %v261 = vadd.f32 %v64, %v260
  %v262 = vpop.f32.mrb[0].mxu0
  %v263 = vadd.f32 %v60, %v262
  %v264 = vpop.f32.mrb[0].mxu0
  %v265 = vadd.f32 %v64, %v264
  %266 = vmatprep.mubr.bf16.mxu0 0
  %267 = vmatmul.mubr.bf16.gmra.mrb[0].mxu0 %v89
  %v268 = vpop.f32.mrb[0].mxu0
  %v269 = vadd.f32 %v60, %v268
  %v270 = vpop.f32.mrb[0].mxu0
  %v271 = vadd.f32 %v64, %v270
  %v272 = vpop.f32.mrb[0].mxu0
  %v273 = vadd.f32 %v60, %v272
  %v274 = vpop.f32.mrb[0].mxu0
  %v275 = vadd.f32 %v64, %v274
  %276 = vmatprep.mubr.bf16.mxu0 0
  %277 = vmatmul.mubr.bf16.gmra.mrb[0].mxu0 %v90
  %v278 = vpop.f32.mrb[0].mxu0
  %v279 = vadd.f32 %v60, %v278
  %v280 = vpop.f32.mrb[0].mxu0
  %v281 = vadd.f32 %v64, %v280
  %v282 = vpop.f32.mrb[0].mxu0
  %v283 = vadd.f32 %v60, %v282
  %v284 = vpop.f32.mrb[0].mxu0
  %v285 = vadd.f32 %v64, %v284
  %286 = vmatprep.mubr.bf16.mxu0 0
  %287 = vmatmul.mubr.bf16.gmra.mrb[0].mxu0 %v91
  %v288 = vpop.f32.mrb[0].mxu0
  %v289 = vadd.f32 %v60, %v288
  %v290 = vpop.f32.mrb[0].mxu0
  %v291 = vadd.f32 %v64, %v290
  %v292 = vpop.f32.mrb[0].mxu0
  %v293 = vadd.f32 %v60, %v292
  %v294 = vpop.f32.mrb[0].mxu0
  %v295 = vadd.f32 %v64, %v294
  %296 = vdwg.mxu0
  %297 = vmatprep.subr.bf16.mxu0 0
  %298 = vmatpush1.bf16.msra.mxu0 %v178
  %299 = vmatprep.subr.bf16.mxu0 0
  %300 = vmatpush1.bf16.msra.mxu0 %v181
  %301 = vmatprep.subr.bf16.mxu0 0
  %302 = vmatpush1.bf16.msra.mxu0 %v184
  %303 = vmatprep.subr.bf16.mxu0 0
  %304 = vmatpush1.bf16.msra.mxu0 %v187
  %305 = vmatprep.subr.bf16.mxu0 0
  %306 = vmatpush1.bf16.msra.mxu0 %v190
  %307 = vmatprep.subr.bf16.mxu0 0
  %308 = vmatpush1.bf16.msra.mxu0 %v193
  %309 = vmatprep.subr.bf16.mxu0 0
  %310 = vmatpush1.bf16.msra.mxu0 %v196
  %311 = vmatprep.subr.bf16.mxu0 0
  %312 = vmatpush1.bf16.msra.mxu0 %v199
  %313 = vmatprep.subr.bf16.mxu0 0
  %314 = vmatpush1.bf16.msra.mxu0 0
  %315 = vmatprep.subr.bf16.mxu0 0
  %316 = vmatpush1.bf16.msra.mxu0 0
  %317 = vmatprep.subr.bf16.mxu0 0
  %318 = vmatpush1.bf16.msra.mxu0 0
  %319 = vmatprep.subr.bf16.mxu0 0
  %320 = vmatpush1.bf16.msra.mxu0 0
  %321 = vmatprep.subr.bf16.mxu0 0
  %322 = vmatpush1.bf16.msra.mxu0 0
  %323 = vmatprep.subr.bf16.mxu0 0
  %324 = vmatpush1.bf16.msra.mxu0 0
  %325 = vmatprep.subr.bf16.mxu0 0
  %326 = vmatpush1.bf16.msra.mxu0 0
  %327 = vmatprep.subr.bf16.mxu0 0
  %328 = vmatpush1.bf16.msra.mxu0 0
  %329 = vmatprep.mubr.bf16.mxu0 0
  %330 = vmatmul.mubr.bf16.gmra.mrb[0].mxu0 %v88
  %v331 = vpop.f32.mrb[0].mxu0
  %v332 = vadd.f32 %v68, %v331
  %v333 = vpop.f32.mrb[0].mxu0
  %v334 = vpop.f32.mrb[0].mxu0
  %v335 = vadd.f32 %v68, %v334
  %v336 = vpop.f32.mrb[0].mxu0
  %337 = vmatprep.mubr.bf16.mxu0 0
  %338 = vmatmul.mubr.bf16.gmra.mrb[0].mxu0 %v89
  %v339 = vpop.f32.mrb[0].mxu0
  %v340 = vadd.f32 %v68, %v339
  %v341 = vpop.f32.mrb[0].mxu0
  %v342 = vpop.f32.mrb[0].mxu0
  %v343 = vadd.f32 %v68, %v342
  %v344 = vpop.f32.mrb[0].mxu0
  %345 = vmatprep.mubr.bf16.mxu0 0
  %346 = vmatmul.mubr.bf16.gmra.mrb[0].mxu0 %v90
  %v347 = vpop.f32.mrb[0].mxu0
  %v348 = vadd.f32 %v68, %v347
  %v349 = vpop.f32.mrb[0].mxu0
  %v350 = vpop.f32.mrb[0].mxu0
  %v351 = vadd.f32 %v68, %v350
  %v352 = vpop.f32.mrb[0].mxu0
  %353 = vmatprep.mubr.bf16.mxu0 0
  %354 = vmatmul.mubr.bf16.gmra.mrb[0].mxu0 %v91
  %v355 = vpop.f32.mrb[0].mxu0
  %v356 = vadd.f32 %v68, %v355
  %v357 = vpop.f32.mrb[0].mxu0
  %v358 = vpop.f32.mrb[0].mxu0
  %v359 = vadd.f32 %v68, %v358
  %v360 = vpop.f32.mrb[0].mxu0
  %361 = vdwg.mxu0
  %362 = vst [vmem:[%s3] sm:$0xff] %v259
  %363 = vst [vmem:[%s3 + $0x8] sm:$0xff] %v261
  %364 = vst [vmem:[%s3 + $0x10] sm:$0xff] %v332
  %365 = vst [vmem:[%s3 + $0x18] sm:$0xff] %v263
  %366 = vst [vmem:[%s3 + $0x20] sm:$0xff] %v265
  %367 = vst [vmem:[%s3 + $0x28] sm:$0xff] %v335
  %368 = vst [vmem:[%s3 + $0x30] sm:$0xff] %v269
  %369 = vst [vmem:[%s3 + $0x38] sm:$0xff] %v271
  %370 = vst [vmem:[%s3 + $0x40] sm:$0xff] %v340
  %371 = vst [vmem:[%s3 + $0x48] sm:$0xff] %v273
  %372 = vst [vmem:[%s3 + $0x50] sm:$0xff] %v275
  %373 = vst [vmem:[%s3 + $0x58] sm:$0xff] %v343
  %374 = vst [vmem:[%s3 + $0x60] sm:$0xff] %v279
  %375 = vst [vmem:[%s3 + $0x68] sm:$0xff] %v281
  %376 = vst [vmem:[%s3 + $0x70] sm:$0xff] %v348
  %377 = vst [vmem:[%s3 + $0x78] sm:$0xff] %v283
  %378 = vst [vmem:[%s3 + $0x80] sm:$0xff] %v285
  %379 = vst [vmem:[%s3 + $0x88] sm:$0xff] %v351
  %380 = vst [vmem:[%s3 + $0x90] sm:$0xff] %v289
  %381 = vst [vmem:[%s3 + $0x98] sm:$0xff] %v291
  %382 = vst [vmem:[%s3 + $0xa0] sm:$0xff] %v356
  %383 = vst [vmem:[%s3 + $0xa8] sm:$0xff] %v293
  %384 = vst [vmem:[%s3 + $0xb0] sm:$0xff] %v295
  %385 = vst [vmem:[%s3 + $0xb8] sm:$0xff] %v359
  // Predicated region
  $region14: #{rnn_model_forward.7} parent=0 // pred_check
    _
  $region15: #{rnn_model_forward.7} parent=0 // pred_check_branch
    %387 = sbr.rel (0) target = $region17
  $region16: #{rnn_model_forward.7} parent=0 // pred_region
    _
  $region17: #{rnn_model_forward.7} parent=0 // pred_fallthru
    _
  // Predicated region
  $region18: #{rnn_model_forward.7} parent=0 // pred_check
    _
  $region19: #{rnn_model_forward.7} parent=0 // pred_check_branch
    %389 = sbr.rel (0) target = $region21
  $region20: #{rnn_model_forward.7} parent=0 // pred_region
    _
  $region21: #{rnn_model_forward.7} parent=0 // pred_fallthru
    _

// kernel: rnn_model_forward.6
$region0: #{rnn_model_forward.6}
  #allocation0 [shape = 'u32[]', space=smem, size = 0x4, offset = 0x4, fixed_abs, tag = 'smem constant byte address 0x4 - core index']
  #allocation1 [shape = 'u32[144,128]{1,0:T(1,128)}', space=vmem, size = 0x12000, scoped, tag = 'internal scratch']
  #allocation2 [shape = 'bf16[128,384]{1,0:T(16,128)(2,1)}', space=vmem, size = 0x18000, scoped, tag = 'scratch operand']
  #allocation3 [shape = 's32[1]{0}', space=sflag, size = 0x4, scoped, tag = 'scratch operand']
  #allocation4 [shape = 'f32[8,128]{1,0:T(8,128)}', space=vmem, size = 0x1000, scoped, tag = 'scratch operand']
  #allocation5 [shape = 's32[]', space=sflag, size = 0x4, offset = 0, fixed_abs, tag = 'sflag constant byte address 0x0 - dummy sync flag']
  %s0 = inlined_call_operand.vmem [shape: f32[8,8,384], index: 0, kind: input, shape index: {}]
  %s1 = inlined_call_operand.vmem [shape: bf16[128,384], index: 1, kind: input, shape index: {}]
  %s2 = inlined_call_operand.vmem [shape: f32[1,128], index: 2, kind: input, shape index: {}]
  %s3 = inlined_call_operand.vmem [shape: bf16[8,8,128], index: 3, kind: output, shape index: {}]
  %s4 = sld [smem:[#allocation0]]
  $region59: #{rnn_model_forward.6} parent=0
    _
  %s6 = ssub.s32 1, %s4
  %s7 = scalar_select 0, %s6, %s4
  // Predicated region
  $region2: #{rnn_model_forward.6} parent=0 // pred_check
    _
  $region3: #{rnn_model_forward.6} parent=0 // pred_check_branch
    %9 = sbr.rel (0) target = $region5
  $region4: #{rnn_model_forward.6} parent=0 // pred_region
    _
  $region5: #{rnn_model_forward.6} parent=0 // pred_fallthru
    _
  // Predicated region
  $region6: #{rnn_model_forward.6} parent=0 // pred_check
    _
  $region7: #{rnn_model_forward.6} parent=0 // pred_check_branch
    %11 = sbr.rel (0) target = $region9
  $region8: #{rnn_model_forward.6} parent=0 // pred_region
    _
  $region9: #{rnn_model_forward.6} parent=0 // pred_fallthru
    _
  %p13 = scmp.eq.s32.totalorder 0, 0
  // Predicated region
  $region10: #{rnn_model_forward.6} parent=0 // pred_check
    %p14 = pneg %p13
  $region11: #{rnn_model_forward.6} parent=0 // pred_check_branch
    %16 = sbr.rel (%p14) target = $region13
  $region12: #{rnn_model_forward.6} parent=0 // pred_region
    %p18 = scmp.lt.u32.totalorder 4, 8
    %p19 = pneg %p18
    // Predicated region
    $region14: #{rnn_model_forward.6} parent=12 // pred_check
      _
    $region15: #{rnn_model_forward.6} parent=12 // pred_check_branch
      %21 = sbr.rel (%p18) target = $region17
    $region16: #{rnn_model_forward.6} parent=12 // pred_region
      %s130 = sand.u32 4, 7
      %p131 = scmp.eq.s32.totalorder %s130, 0
      %p132 = pneg %p131
      // Predicated region
      $region29: #{rnn_model_forward.6} parent=16 // pred_check
        _
      $region30: #{rnn_model_forward.6} parent=16 // pred_check_branch
        %134 = sbr.rel (%p131) target = $region32
      $region31: #{rnn_model_forward.6} parent=16 // pred_region
        %s135 = sand.u32 4, 7
        %s136 = ssub.s32 4, %s135
        %s137 = scalar_lea.vmem %s1, %s136
        %s138 = ssub.s32 4, %s135
        %s139 = scalar_lea.vmem [#allocation2], %s138
        loop: start=0, step=1, limit=1
        $region33: #{rnn_model_forward.6} parent=31 // loop_pre_header
          _
        $region34: #{rnn_model_forward.6} parent=31 // loop_header
          %s141 = sphi 0, %s145
          %p142 = scmp.ge.s32.totalorder %s141, 1
          %s146 = sphi %s1, %s1
          %s147 = sphi [#allocation2], [#allocation2]
        $region35: #{rnn_model_forward.6} parent=31 // loop_header_branch
          %144 = sbr.rel (%p142) target = $region39
        $region36: #{rnn_model_forward.6} parent=31 // loop_body
          _
        $region37: #{rnn_model_forward.6} parent=31 // loop_footer
          %s145 = sadd.s32 1, %s141
        $region38: #{rnn_model_forward.6} parent=31 // loop_footer_branch
          %140 = sbr.rel target = $region34
        $region39: #{rnn_model_forward.6} parent=31 // loop_exit
          _
        %s148 = sshllo.u32 0, %s135
        loop: start=0, step=1, limit=1
        $region40: #{rnn_model_forward.6} parent=31 // loop_pre_header
          _
        $region41: #{rnn_model_forward.6} parent=31 // loop_header
          %s150 = sphi 0, %s154
          %p151 = scmp.ge.s32.totalorder %s150, 1
          %s155 = sphi %s137, %s137
          %s156 = sphi %s139, %s139
        $region42: #{rnn_model_forward.6} parent=31 // loop_header_branch
          %153 = sbr.rel (%p151) target = $region46
        $region43: #{rnn_model_forward.6} parent=31 // loop_body
          %v157 = vld [vmem:[%s155] sm:%s148]
          %158 = vst [vmem:[%s156] sm:%s148] %v157
          %v159 = vld [vmem:[%s155 + $0xc] sm:%s148]
          %160 = vst [vmem:[%s156 + $0x4] sm:%s148] %v159
          %v161 = vld [vmem:[%s155 + $0x4] sm:%s148]
          %162 = vst [vmem:[%s156 + $0x8] sm:%s148] %v161
          %v163 = vld [vmem:[%s155 + $0x10] sm:%s148]
          %164 = vst [vmem:[%s156 + $0xc] sm:%s148] %v163
          %v165 = vld [vmem:[%s155 + $0x8] sm:%s148]
          %166 = vst [vmem:[%s156 + $0x10] sm:%s148] %v165
          %v167 = vld [vmem:[%s155 + $0x14] sm:%s148]
          %168 = vst [vmem:[%s156 + $0x14] sm:%s148] %v167
          %v169 = vld [vmem:[%s155 + $0x18] sm:%s148]
          %170 = vst [vmem:[%s156 + $0x18] sm:%s148] %v169
          %v171 = vld [vmem:[%s155 + $0x24] sm:%s148]
          %172 = vst [vmem:[%s156 + $0x1c] sm:%s148] %v171
          %v173 = vld [vmem:[%s155 + $0x1c] sm:%s148]
          %174 = vst [vmem:[%s156 + $0x20] sm:%s148] %v173
          %v175 = vld [vmem:[%s155 + $0x28] sm:%s148]
          %176 = vst [vmem:[%s156 + $0x24] sm:%s148] %v175
          %v177 = vld [vmem:[%s155 + $0x20] sm:%s148]
          %178 = vst [vmem:[%s156 + $0x28] sm:%s148] %v177
          %v179 = vld [vmem:[%s155 + $0x2c] sm:%s148]
          %180 = vst [vmem:[%s156 + $0x2c] sm:%s148] %v179
          %v181 = vld [vmem:[%s155 + $0x30] sm:%s148]
          %182 = vst [vmem:[%s156 + $0x30] sm:%s148] %v181
          %v183 = vld [vmem:[%s155 + $0x3c] sm:%s148]
          %184 = vst [vmem:[%s156 + $0x34] sm:%s148] %v183
          %v185 = vld [vmem:[%s155 + $0x34] sm:%s148]
          %186 = vst [vmem:[%s156 + $0x38] sm:%s148] %v185
          %v187 = vld [vmem:[%s155 + $0x40] sm:%s148]
          %188 = vst [vmem:[%s156 + $0x3c] sm:%s148] %v187
          %v189 = vld [vmem:[%s155 + $0x38] sm:%s148]
          %190 = vst [vmem:[%s156 + $0x40] sm:%s148] %v189
          %v191 = vld [vmem:[%s155 + $0x44] sm:%s148]
          %192 = vst [vmem:[%s156 + $0x44] sm:%s148] %v191
          %v193 = vld [vmem:[%s155 + $0x48] sm:%s148]
          %194 = vst [vmem:[%s156 + $0x48] sm:%s148] %v193
          %v195 = vld [vmem:[%s155 + $0x54] sm:%s148]
          %196 = vst [vmem:[%s156 + $0x4c] sm:%s148] %v195
          %v197 = vld [vmem:[%s155 + $0x4c] sm:%s148]
          %198 = vst [vmem:[%s156 + $0x50] sm:%s148] %v197
          %v199 = vld [vmem:[%s155 + $0x58] sm:%s148]
          %200 = vst [vmem:[%s156 + $0x54] sm:%s148] %v199
          %v201 = vld [vmem:[%s155 + $0x50] sm:%s148]
          %202 = vst [vmem:[%s156 + $0x58] sm:%s148] %v201
          %v203 = vld [vmem:[%s155 + $0x5c] sm:%s148]
          %204 = vst [vmem:[%s156 + $0x5c] sm:%s148] %v203
          %v205 = vld [vmem:[%s155 + $0x60] sm:%s148]
          %206 = vst [vmem:[%s156 + $0x60] sm:%s148] %v205
          %v207 = vld [vmem:[%s155 + $0x6c] sm:%s148]
          %208 = vst [vmem:[%s156 + $0x64] sm:%s148] %v207
          %v209 = vld [vmem:[%s155 + $0x64] sm:%s148]
          %210 = vst [vmem:[%s156 + $0x68] sm:%s148] %v209
          %v211 = vld [vmem:[%s155 + $0x70] sm:%s148]
          %212 = vst [vmem:[%s156 + $0x6c] sm:%s148] %v211
          %v213 = vld [vmem:[%s155 + $0x68] sm:%s148]
          %214 = vst [vmem:[%s156 + $0x70] sm:%s148] %v213
          %v215 = vld [vmem:[%s155 + $0x74] sm:%s148]
          %216 = vst [vmem:[%s156 + $0x74] sm:%s148] %v215
          %v217 = vld [vmem:[%s155 + $0x78] sm:%s148]
          %218 = vst [vmem:[%s156 + $0x78] sm:%s148] %v217
          %v219 = vld [vmem:[%s155 + $0x84] sm:%s148]
          %220 = vst [vmem:[%s156 + $0x7c] sm:%s148] %v219
          %v221 = vld [vmem:[%s155 + $0x7c] sm:%s148]
          %222 = vst [vmem:[%s156 + $0x80] sm:%s148] %v221
          %v223 = vld [vmem:[%s155 + $0x88] sm:%s148]
          %224 = vst [vmem:[%s156 + $0x84] sm:%s148] %v223
          %v225 = vld [vmem:[%s155 + $0x80] sm:%s148]
          %226 = vst [vmem:[%s156 + $0x88] sm:%s148] %v225
          %v227 = vld [vmem:[%s155 + $0x8c] sm:%s148]
          %228 = vst [vmem:[%s156 + $0x8c] sm:%s148] %v227
          %v229 = vld [vmem:[%s155 + $0x90] sm:%s148]
          %230 = vst [vmem:[%s156 + $0x90] sm:%s148] %v229
          %v231 = vld [vmem:[%s155 + $0x9c] sm:%s148]
          %232 = vst [vmem:[%s156 + $0x94] sm:%s148] %v231
          %v233 = vld [vmem:[%s155 + $0x94] sm:%s148]
          %234 = vst [vmem:[%s156 + $0x98] sm:%s148] %v233
          %v235 = vld [vmem:[%s155 + $0xa0] sm:%s148]
          %236 = vst [vmem:[%s156 + $0x9c] sm:%s148] %v235
          %v237 = vld [vmem:[%s155 + $0x98] sm:%s148]
          %238 = vst [vmem:[%s156 + $0xa0] sm:%s148] %v237
          %v239 = vld [vmem:[%s155 + $0xa4] sm:%s148]
          %240 = vst [vmem:[%s156 + $0xa4] sm:%s148] %v239
          %v241 = vld [vmem:[%s155 + $0xa8] sm:%s148]
          %242 = vst [vmem:[%s156 + $0xa8] sm:%s148] %v241
          %v243 = vld [vmem:[%s155 + $0xb4] sm:%s148]
          %244 = vst [vmem:[%s156 + $0xac] sm:%s148] %v243
          %v245 = vld [vmem:[%s155 + $0xac] sm:%s148]
          %246 = vst [vmem:[%s156 + $0xb0] sm:%s148] %v245
          %v247 = vld [vmem:[%s155 + $0xb8] sm:%s148]
          %248 = vst [vmem:[%s156 + $0xb4] sm:%s148] %v247
          %v249 = vld [vmem:[%s155 + $0xb0] sm:%s148]
          %250 = vst [vmem:[%s156 + $0xb8] sm:%s148] %v249
          %v251 = vld [vmem:[%s155 + $0xbc] sm:%s148]
          %252 = vst [vmem:[%s156 + $0xbc] sm:%s148] %v251
        $region44: #{rnn_model_forward.6} parent=31 // loop_footer
          %s154 = sadd.s32 1, %s150
        $region45: #{rnn_model_forward.6} parent=31 // loop_footer_branch
          %149 = sbr.rel target = $region41
        $region46: #{rnn_model_forward.6} parent=31 // loop_exit
          _
      $region32: #{rnn_model_forward.6} parent=16 // pred_fallthru
        _
    $region17: #{rnn_model_forward.6} parent=12 // pred_fallthru
      _
    // Predicated region
    $region18: #{rnn_model_forward.6} parent=12 // pred_check
      %p22 = pneg %p18
    $region19: #{rnn_model_forward.6} parent=12 // pred_check_branch
      %24 = sbr.rel (%p22) target = $region21
    $region20: #{rnn_model_forward.6} parent=12 // pred_region
      %s25 = sshllo.u32 0, 4
      loop: start=0, step=1, limit=1
      $region22: #{rnn_model_forward.6} parent=20 // loop_pre_header
        _
      $region23: #{rnn_model_forward.6} parent=20 // loop_header
        %s27 = sphi 0, %s31
        %p28 = scmp.ge.s32.totalorder %s27, 1
        %s32 = sphi %s1, %s1
        %s33 = sphi [#allocation2], [#allocation2]
      $region24: #{rnn_model_forward.6} parent=20 // loop_header_branch
        %30 = sbr.rel (%p28) target = $region28
      $region25: #{rnn_model_forward.6} parent=20 // loop_body
        %v34 = vld [vmem:[%s32] sm:%s25]
        %35 = vst [vmem:[%s33] sm:%s25] %v34
        %v36 = vld [vmem:[%s32 + $0xc] sm:%s25]
        %37 = vst [vmem:[%s33 + $0x4] sm:%s25] %v36
        %v38 = vld [vmem:[%s32 + $0x4] sm:%s25]
        %39 = vst [vmem:[%s33 + $0x8] sm:%s25] %v38
        %v40 = vld [vmem:[%s32 + $0x10] sm:%s25]
        %41 = vst [vmem:[%s33 + $0xc] sm:%s25] %v40
        %v42 = vld [vmem:[%s32 + $0x8] sm:%s25]
        %43 = vst [vmem:[%s33 + $0x10] sm:%s25] %v42
        %v44 = vld [vmem:[%s32 + $0x14] sm:%s25]
        %45 = vst [vmem:[%s33 + $0x14] sm:%s25] %v44
        %v46 = vld [vmem:[%s32 + $0x18] sm:%s25]
        %47 = vst [vmem:[%s33 + $0x18] sm:%s25] %v46
        %v48 = vld [vmem:[%s32 + $0x24] sm:%s25]
        %49 = vst [vmem:[%s33 + $0x1c] sm:%s25] %v48
        %v50 = vld [vmem:[%s32 + $0x1c] sm:%s25]
        %51 = vst [vmem:[%s33 + $0x20] sm:%s25] %v50
        %v52 = vld [vmem:[%s32 + $0x28] sm:%s25]
        %53 = vst [vmem:[%s33 + $0x24] sm:%s25] %v52
        %v54 = vld [vmem:[%s32 + $0x20] sm:%s25]
        %55 = vst [vmem:[%s33 + $0x28] sm:%s25] %v54
        %v56 = vld [vmem:[%s32 + $0x2c] sm:%s25]
        %57 = vst [vmem:[%s33 + $0x2c] sm:%s25] %v56
        %v58 = vld [vmem:[%s32 + $0x30] sm:%s25]
        %59 = vst [vmem:[%s33 + $0x30] sm:%s25] %v58
        %v60 = vld [vmem:[%s32 + $0x3c] sm:%s25]
        %61 = vst [vmem:[%s33 + $0x34] sm:%s25] %v60
        %v62 = vld [vmem:[%s32 + $0x34] sm:%s25]
        %63 = vst [vmem:[%s33 + $0x38] sm:%s25] %v62
        %v64 = vld [vmem:[%s32 + $0x40] sm:%s25]
        %65 = vst [vmem:[%s33 + $0x3c] sm:%s25] %v64
        %v66 = vld [vmem:[%s32 + $0x38] sm:%s25]
        %67 = vst [vmem:[%s33 + $0x40] sm:%s25] %v66
        %v68 = vld [vmem:[%s32 + $0x44] sm:%s25]
        %69 = vst [vmem:[%s33 + $0x44] sm:%s25] %v68
        %v70 = vld [vmem:[%s32 + $0x48] sm:%s25]
        %71 = vst [vmem:[%s33 + $0x48] sm:%s25] %v70
        %v72 = vld [vmem:[%s32 + $0x54] sm:%s25]
        %73 = vst [vmem:[%s33 + $0x4c] sm:%s25] %v72
        %v74 = vld [vmem:[%s32 + $0x4c] sm:%s25]
        %75 = vst [vmem:[%s33 + $0x50] sm:%s25] %v74
        %v76 = vld [vmem:[%s32 + $0x58] sm:%s25]
        %77 = vst [vmem:[%s33 + $0x54] sm:%s25] %v76
        %v78 = vld [vmem:[%s32 + $0x50] sm:%s25]
        %79 = vst [vmem:[%s33 + $0x58] sm:%s25] %v78
        %v80 = vld [vmem:[%s32 + $0x5c] sm:%s25]
        %81 = vst [vmem:[%s33 + $0x5c] sm:%s25] %v80
        %v82 = vld [vmem:[%s32 + $0x60] sm:%s25]
        %83 = vst [vmem:[%s33 + $0x60] sm:%s25] %v82
        %v84 = vld [vmem:[%s32 + $0x6c] sm:%s25]
        %85 = vst [vmem:[%s33 + $0x64] sm:%s25] %v84
        %v86 = vld [vmem:[%s32 + $0x64] sm:%s25]
        %87 = vst [vmem:[%s33 + $0x68] sm:%s25] %v86
        %v88 = vld [vmem:[%s32 + $0x70] sm:%s25]
        %89 = vst [vmem:[%s33 + $0x6c] sm:%s25] %v88
        %v90 = vld [vmem:[%s32 + $0x68] sm:%s25]
        %91 = vst [vmem:[%s33 + $0x70] sm:%s25] %v90
        %v92 = vld [vmem:[%s32 + $0x74] sm:%s25]
        %93 = vst [vmem:[%s33 + $0x74] sm:%s25] %v92
        %v94 = vld [vmem:[%s32 + $0x78] sm:%s25]
        %95 = vst [vmem:[%s33 + $0x78] sm:%s25] %v94
        %v96 = vld [vmem:[%s32 + $0x84] sm:%s25]
        %97 = vst [vmem:[%s33 + $0x7c] sm:%s25] %v96
        %v98 = vld [vmem:[%s32 + $0x7c] sm:%s25]
        %99 = vst [vmem:[%s33 + $0x80] sm:%s25] %v98
        %v100 = vld [vmem:[%s32 + $0x88] sm:%s25]
        %101 = vst [vmem:[%s33 + $0x84] sm:%s25] %v100
        %v102 = vld [vmem:[%s32 + $0x80] sm:%s25]
        %103 = vst [vmem:[%s33 + $0x88] sm:%s25] %v102
        %v104 = vld [vmem:[%s32 + $0x8c] sm:%s25]
        %105 = vst [vmem:[%s33 + $0x8c] sm:%s25] %v104
        %v106 = vld [vmem:[%s32 + $0x90] sm:%s25]
        %107 = vst [vmem:[%s33 + $0x90] sm:%s25] %v106
        %v108 = vld [vmem:[%s32 + $0x9c] sm:%s25]
        %109 = vst [vmem:[%s33 + $0x94] sm:%s25] %v108
        %v110 = vld [vmem:[%s32 + $0x94] sm:%s25]
        %111 = vst [vmem:[%s33 + $0x98] sm:%s25] %v110
        %v112 = vld [vmem:[%s32 + $0xa0] sm:%s25]
        %113 = vst [vmem:[%s33 + $0x9c] sm:%s25] %v112
        %v114 = vld [vmem:[%s32 + $0x98] sm:%s25]
        %115 = vst [vmem:[%s33 + $0xa0] sm:%s25] %v114
        %v116 = vld [vmem:[%s32 + $0xa4] sm:%s25]
        %117 = vst [vmem:[%s33 + $0xa4] sm:%s25] %v116
        %v118 = vld [vmem:[%s32 + $0xa8] sm:%s25]
        %119 = vst [vmem:[%s33 + $0xa8] sm:%s25] %v118
        %v120 = vld [vmem:[%s32 + $0xb4] sm:%s25]
        %121 = vst [vmem:[%s33 + $0xac] sm:%s25] %v120
        %v122 = vld [vmem:[%s32 + $0xac] sm:%s25]
        %123 = vst [vmem:[%s33 + $0xb0] sm:%s25] %v122
        %v124 = vld [vmem:[%s32 + $0xb8] sm:%s25]
        %125 = vst [vmem:[%s33 + $0xb4] sm:%s25] %v124
        %v126 = vld [vmem:[%s32 + $0xb0] sm:%s25]
        %127 = vst [vmem:[%s33 + $0xb8] sm:%s25] %v126
        %v128 = vld [vmem:[%s32 + $0xbc] sm:%s25]
        %129 = vst [vmem:[%s33 + $0xbc] sm:%s25] %v128
      $region26: #{rnn_model_forward.6} parent=20 // loop_footer
        %s31 = sadd.s32 1, %s27
      $region27: #{rnn_model_forward.6} parent=20 // loop_footer_branch
        %26 = sbr.rel target = $region23
      $region28: #{rnn_model_forward.6} parent=20 // loop_exit
        _
    $region21: #{rnn_model_forward.6} parent=12 // pred_fallthru
      _
    // Predicated region
    $region47: #{rnn_model_forward.6} parent=12 // pred_check
      _
    $region48: #{rnn_model_forward.6} parent=12 // pred_check_branch
      %255 = sbr.rel (0) target = $region50
    $region49: #{rnn_model_forward.6} parent=12 // pred_region
      %256 = vsyncadd [#allocation3], 3072
    $region50: #{rnn_model_forward.6} parent=12 // pred_fallthru
      _
    %s257 = smul.u32 4, 16
    %s258 = smul.u32 %s257, 3
    %s259 = sshll.u32 %s258, 4
    %260 = dma.done [#allocation3], %s259
    %261 = vst [vmem:[#allocation4] sm:$0xff] 0.0
  $region13: #{rnn_model_forward.6} parent=0 // pred_fallthru
    _
  %v262 = vld [vmem:[%s2] sm:$0x1]
  %v264 = vlaneseq
  %v265 = vshrl.u32 %v264, 7
  %v266 = vsub.s32 0, %v265
  %v267 = vrot.slane %v262, %v266
  %v269 = vld [vmem:[#allocation4] sm:$0xff]
  %v270 = vpack.c.bf16 %v269, %v269
  %v271 = vld [vmem:[#allocation2] sm:$0xff]
  %v272 = vld [vmem:[#allocation2 + $0x8] sm:$0xff]
  %v273 = vld [vmem:[#allocation2 + $0x10] sm:$0xff]
  %v274 = vld [vmem:[#allocation2 + $0x18] sm:$0xff]
  %v275 = vld [vmem:[#allocation2 + $0x20] sm:$0xff]
  %v276 = vld [vmem:[#allocation2 + $0x28] sm:$0xff]
  %v277 = vld [vmem:[#allocation2 + $0x30] sm:$0xff]
  %v278 = vld [vmem:[#allocation2 + $0x38] sm:$0xff]
  %v279 = vld [vmem:[#allocation2 + $0x40] sm:$0xff]
  %v280 = vld [vmem:[#allocation2 + $0x48] sm:$0xff]
  %v281 = vld [vmem:[#allocation2 + $0x50] sm:$0xff]
  %v282 = vld [vmem:[#allocation2 + $0x58] sm:$0xff]
  %v283 = vld [vmem:[#allocation2 + $0x60] sm:$0xff]
  %v284 = vld [vmem:[#allocation2 + $0x68] sm:$0xff]
  %v285 = vld [vmem:[#allocation2 + $0x70] sm:$0xff]
  %v286 = vld [vmem:[#allocation2 + $0x78] sm:$0xff]
  %v287 = vld [vmem:[#allocation2 + $0x80] sm:$0xff]
  %v288 = vld [vmem:[#allocation2 + $0x88] sm:$0xff]
  %v289 = vld [vmem:[#allocation2 + $0x90] sm:$0xff]
  %v290 = vld [vmem:[#allocation2 + $0x98] sm:$0xff]
  %v291 = vld [vmem:[#allocation2 + $0xa0] sm:$0xff]
  %v292 = vld [vmem:[#allocation2 + $0xa8] sm:$0xff]
  %v293 = vld [vmem:[#allocation2 + $0xb0] sm:$0xff]
  %v294 = vld [vmem:[#allocation2 + $0xb8] sm:$0xff]
  %295 = vmatprep.subr.bf16.mxu0 %v272
  %296 = vmatpush1.bf16.msra.mxu0 %v271
  %297 = vmatprep.subr.bf16.mxu0 %v275
  %298 = vmatpush1.bf16.msra.mxu0 %v274
  %299 = vmatprep.subr.bf16.mxu0 %v278
  %300 = vmatpush1.bf16.msra.mxu0 %v277
  %301 = vmatprep.subr.bf16.mxu0 %v281
  %302 = vmatpush1.bf16.msra.mxu0 %v280
  %303 = vmatprep.subr.bf16.mxu0 %v284
  %304 = vmatpush1.bf16.msra.mxu0 %v283
  %305 = vmatprep.subr.bf16.mxu0 %v287
  %306 = vmatpush1.bf16.msra.mxu0 %v286
  %307 = vmatprep.subr.bf16.mxu0 %v290
  %308 = vmatpush1.bf16.msra.mxu0 %v289
  %309 = vmatprep.subr.bf16.mxu0 %v293
  %310 = vmatpush1.bf16.msra.mxu0 %v292
  %311 = vmatprep.subr.bf16.mxu0 0
  %312 = vmatpush1.bf16.msra.mxu0 0
  %313 = vmatprep.subr.bf16.mxu0 0
  %314 = vmatpush1.bf16.msra.mxu0 0
  %315 = vmatprep.subr.bf16.mxu0 0
  %316 = vmatpush1.bf16.msra.mxu0 0
  %317 = vmatprep.subr.bf16.mxu0 0
  %318 = vmatpush1.bf16.msra.mxu0 0
  %319 = vmatprep.subr.bf16.mxu0 0
  %320 = vmatpush1.bf16.msra.mxu0 0
  %321 = vmatprep.subr.bf16.mxu0 0
  %322 = vmatpush1.bf16.msra.mxu0 0
  %323 = vmatprep.subr.bf16.mxu0 0
  %324 = vmatpush1.bf16.msra.mxu0 0
  %325 = vmatprep.subr.bf16.mxu0 0
  %326 = vmatpush1.bf16.msra.mxu0 0
  %327 = vmatprep.mubr.bf16.mxu0 0
  %328 = vmatmul.mubr.bf16.gmra.mrb[0].mxu0 %v270
  %v329 = vpop.f32.mrb[0].mxu0
  %v330 = vadd.f32 0.0, %v329
  %v331 = vpop.f32.mrb[0].mxu0
  %v332 = vadd.f32 0.0, %v331
  %v333 = vpop.f32.mrb[0].mxu0
  %v334 = vpop.f32.mrb[0].mxu0
  %335 = vdwg.mxu0
  %336 = vmatprep.subr.bf16.mxu0 0
  %337 = vmatpush1.bf16.msra.mxu0 %v273
  %338 = vmatprep.subr.bf16.mxu0 0
  %339 = vmatpush1.bf16.msra.mxu0 %v276
  %340 = vmatprep.subr.bf16.mxu0 0
  %341 = vmatpush1.bf16.msra.mxu0 %v279
  %342 = vmatprep.subr.bf16.mxu0 0
  %343 = vmatpush1.bf16.msra.mxu0 %v282
  %344 = vmatprep.subr.bf16.mxu0 0
  %345 = vmatpush1.bf16.msra.mxu0 %v285
  %346 = vmatprep.subr.bf16.mxu0 0
  %347 = vmatpush1.bf16.msra.mxu0 %v288
  %348 = vmatprep.subr.bf16.mxu0 0
  %349 = vmatpush1.bf16.msra.mxu0 %v291
  %350 = vmatprep.subr.bf16.mxu0 0
  %351 = vmatpush1.bf16.msra.mxu0 %v294
  %352 = vmatprep.subr.bf16.mxu0 0
  %353 = vmatpush1.bf16.msra.mxu0 0
  %354 = vmatprep.subr.bf16.mxu0 0
  %355 = vmatpush1.bf16.msra.mxu0 0
  %356 = vmatprep.subr.bf16.mxu0 0
  %357 = vmatpush1.bf16.msra.mxu0 0
  %358 = vmatprep.subr.bf16.mxu0 0
  %359 = vmatpush1.bf16.msra.mxu0 0
  %360 = vmatprep.subr.bf16.mxu0 0
  %361 = vmatpush1.bf16.msra.mxu0 0
  %362 = vmatprep.subr.bf16.mxu0 0
  %363 = vmatpush1.bf16.msra.mxu0 0
  %364 = vmatprep.subr.bf16.mxu0 0
  %365 = vmatpush1.bf16.msra.mxu0 0
  %366 = vmatprep.subr.bf16.mxu0 0
  %367 = vmatpush1.bf16.msra.mxu0 0
  %368 = vmatprep.mubr.bf16.mxu0 0
  %369 = vmatmul.mubr.bf16.gmra.mrb[0].mxu0 %v270
  %v370 = vpop.f32.mrb[0].mxu0
  %v371 = vadd.f32 0.0, %v370
  %v372 = vpop.f32.mrb[0].mxu0
  %v373 = vpop.f32.mrb[0].mxu0
  %v374 = vpop.f32.mrb[0].mxu0
  %375 = vdwg.mxu0
  %v376 = vld [vmem:[%s0] sm:$0xff]
  %v377 = vld [vmem:[%s0 + $0x8] sm:$0xff]
  %v378 = vld [vmem:[%s0 + $0x10] sm:$0xff]
  %v379 = vadd.f32 %v376, %v330
  %v380 = vmul.f32 %v379, 0.5
  %v381 = vtanh.pop %v380
  %v382 = vmul.f32 %v381, 0.5
  %v383 = vadd.f32 %v382, 0.5
  %v384 = vadd.f32 %v377, %v332
  %v385 = vmul.f32 %v384, 0.5
  %v386 = vtanh.pop %v385
  %v387 = vmul.f32 %v386, 0.5
  %v388 = vadd.f32 %v387, 0.5
  %v389 = vadd.f32 %v371, %v267
  %v390 = vmul.f32 %v383, %v389
  %v391 = vadd.f32 %v378, %v390
  %v392 = vtanh.pop %v391
  %v393 = vsub.f32 %v269, %v392
  %v394 = vmul.f32 %v388, %v393
  %v395 = vadd.f32 %v392, %v394
  %396 = vst [vmem:[#allocation4] sm:$0xff] %v395
  %v397 = vpack.c.bf16 %v395, %v395
  %398 = vst [vmem:[%s3] sm:$0xf] %v397
  %v399 = vld [vmem:[#allocation4] sm:$0xff]
  %v400 = vpack.c.bf16 %v399, %v399
  %v401 = vld [vmem:[#allocation2] sm:$0xff]
  %v402 = vld [vmem:[#allocation2 + $0x8] sm:$0xff]
  %v403 = vld [vmem:[#allocation2 + $0x10] sm:$0xff]
  %v404 = vld [vmem:[#allocation2 + $0x18] sm:$0xff]
  %v405 = vld [vmem:[#allocation2 + $0x20] sm:$0xff]
  %v406 = vld [vmem:[#allocation2 + $0x28] sm:$0xff]
  %v407 = vld [vmem:[#allocation2 + $0x30] sm:$0xff]
  %v408 = vld [vmem:[#allocation2 + $0x38] sm:$0xff]
  %v409 = vld [vmem:[#allocation2 + $0x40] sm:$0xff]
  %v410 = vld [vmem:[#allocation2 + $0x48] sm:$0xff]
  %v411 = vld [vmem:[#allocation2 + $0x50] sm:$0xff]
  %v412 = vld [vmem:[#allocation2 + $0x58] sm:$0xff]
  %v413 = vld [vmem:[#allocation2 + $0x60] sm:$0xff]
  %v414 = vld [vmem:[#allocation2 + $0x68] sm:$0xff]
  %v415 = vld [vmem:[#allocation2 + $0x70] sm:$0xff]
  %v416 = vld [vmem:[#allocation2 + $0x78] sm:$0xff]
  %v417 = vld [vmem:[#allocation2 + $0x80] sm:$0xff]
  %v418 = vld [vmem:[#allocation2 + $0x88] sm:$0xff]
  %v419 = vld [vmem:[#allocation2 + $0x90] sm:$0xff]
  %v420 = vld [vmem:[#allocation2 + $0x98] sm:$0xff]
  %v421 = vld [vmem:[#allocation2 + $0xa0] sm:$0xff]
  %v422 = vld [vmem:[#allocation2 + $0xa8] sm:$0xff]
  %v423 = vld [vmem:[#allocation2 + $0xb0] sm:$0xff]
  %v424 = vld [vmem:[#allocation2 + $0xb8] sm:$0xff]
  %425 = vmatprep.subr.bf16.mxu0 %v402
  %426 = vmatpush1.bf16.msra.mxu0 %v401
  %427 = vmatprep.subr.bf16.mxu0 %v405
  %428 = vmatpush1.bf16.msra.mxu0 %v404
  %429 = vmatprep.subr.bf16.mxu0 %v408
  %430 = vmatpush1.bf16.msra.mxu0 %v407
  %431 = vmatprep.subr.bf16.mxu0 %v411
  %432 = vmatpush1.bf16.msra.mxu0 %v410
  %433 = vmatprep.subr.bf16.mxu0 %v414
  %434 = vmatpush1.bf16.msra.mxu0 %v413
  %435 = vmatprep.subr.bf16.mxu0 %v417
  %436 = vmatpush1.bf16.msra.mxu0 %v416
  %437 = vmatprep.subr.bf16.mxu0 %v420
  %438 = vmatpush1.bf16.msra.mxu0 %v419
  %439 = vmatprep.subr.bf16.mxu0 %v423
  %440 = vmatpush1.bf16.msra.mxu0 %v422
  %441 = vmatprep.subr.bf16.mxu0 0
  %442 = vmatpush1.bf16.msra.mxu0 0
  %443 = vmatprep.subr.bf16.mxu0 0
  %444 = vmatpush1.bf16.msra.mxu0 0
  %445 = vmatprep.subr.bf16.mxu0 0
  %446 = vmatpush1.bf16.msra.mxu0 0
  %447 = vmatprep.subr.bf16.mxu0 0
  %448 = vmatpush1.bf16.msra.mxu0 0
  %449 = vmatprep.subr.bf16.mxu0 0
  %450 = vmatpush1.bf16.msra.mxu0 0
  %451 = vmatprep.subr.bf16.mxu0 0
  %452 = vmatpush1.bf16.msra.mxu0 0
  %453 = vmatprep.subr.bf16.mxu0 0
  %454 = vmatpush1.bf16.msra.mxu0 0
  %455 = vmatprep.subr.bf16.mxu0 0
  %456 = vmatpush1.bf16.msra.mxu0 0
  %457 = vmatprep.mubr.bf16.mxu0 0
  %458 = vmatmul.mubr.bf16.gmra.mrb[0].mxu0 %v400
  %v459 = vpop.f32.mrb[0].mxu0
  %v460 = vadd.f32 0.0, %v459
  %v461 = vpop.f32.mrb[0].mxu0
  %v462 = vadd.f32 0.0, %v461
  %v463 = vpop.f32.mrb[0].mxu0
  %v464 = vpop.f32.mrb[0].mxu0
  %465 = vdwg.mxu0
  %466 = vmatprep.subr.bf16.mxu0 0
  %467 = vmatpush1.bf16.msra.mxu0 %v403
  %468 = vmatprep.subr.bf16.mxu0 0
  %469 = vmatpush1.bf16.msra.mxu0 %v406
  %470 = vmatprep.subr.bf16.mxu0 0
  %471 = vmatpush1.bf16.msra.mxu0 %v409
  %472 = vmatprep.subr.bf16.mxu0 0
  %473 = vmatpush1.bf16.msra.mxu0 %v412
  %474 = vmatprep.subr.bf16.mxu0 0
  %475 = vmatpush1.bf16.msra.mxu0 %v415
  %476 = vmatprep.subr.bf16.mxu0 0
  %477 = vmatpush1.bf16.msra.mxu0 %v418
  %478 = vmatprep.subr.bf16.mxu0 0
  %479 = vmatpush1.bf16.msra.mxu0 %v421
  %480 = vmatprep.subr.bf16.mxu0 0
  %481 = vmatpush1.bf16.msra.mxu0 %v424
  %482 = vmatprep.subr.bf16.mxu0 0
  %483 = vmatpush1.bf16.msra.mxu0 0
  %484 = vmatprep.subr.bf16.mxu0 0
  %485 = vmatpush1.bf16.msra.mxu0 0
  %486 = vmatprep.subr.bf16.mxu0 0
  %487 = vmatpush1.bf16.msra.mxu0 0
  %488 = vmatprep.subr.bf16.mxu0 0
  %489 = vmatpush1.bf16.msra.mxu0 0
  %490 = vmatprep.subr.bf16.mxu0 0
  %491 = vmatpush1.bf16.msra.mxu0 0
  %492 = vmatprep.subr.bf16.mxu0 0
  %493 = vmatpush1.bf16.msra.mxu0 0
  %494 = vmatprep.subr.bf16.mxu0 0
  %495 = vmatpush1.bf16.msra.mxu0 0
  %496 = vmatprep.subr.bf16.mxu0 0
  %497 = vmatpush1.bf16.msra.mxu0 0
  %498 = vmatprep.mubr.bf16.mxu0 0
  %499 = vmatmul.mubr.bf16.gmra.mrb[0].mxu0 %v400
  %v500 = vpop.f32.mrb[0].mxu0
  %v501 = vadd.f32 0.0, %v500
  %v502 = vpop.f32.mrb[0].mxu0
  %v503 = vpop.f32.mrb[0].mxu0
  %v504 = vpop.f32.mrb[0].mxu0
  %505 = vdwg.mxu0
  %s506 = scalar_lea.vmem %s0, 24
  %v507 = vld [vmem:[%s506] sm:$0xff]
  %v508 = vld [vmem:[%s506 + $0x8] sm:$0xff]
  %v509 = vld [vmem:[%s506 + $0x10] sm:$0xff]
  %v510 = vadd.f32 %v507, %v460
  %v511 = vmul.f32 %v510, 0.5
  %v512 = vtanh.pop %v511
  %v513 = vmul.f32 %v512, 0.5
  %v514 = vadd.f32 %v513, 0.5
  %v515 = vadd.f32 %v508, %v462
  %v516 = vmul.f32 %v515, 0.5
  %v517 = vtanh.pop %v516
  %v518 = vmul.f32 %v517, 0.5
  %v519 = vadd.f32 %v518, 0.5
  %v520 = vadd.f32 %v501, %v267
  %v521 = vmul.f32 %v514, %v520
  %v522 = vadd.f32 %v509, %v521
  %v523 = vtanh.pop %v522
  %v524 = vsub.f32 %v399, %v523
  %v525 = vmul.f32 %v519, %v524
  %v526 = vadd.f32 %v523, %v525
  %527 = vst [vmem:[#allocation4] sm:$0xff] %v526
  %v528 = vpack.c.bf16 %v526, %v526
  %s529 = scalar_lea.vmem %s3, 4
  %530 = vst [vmem:[%s529] sm:$0xf] %v528
  %v531 = vld [vmem:[#allocation4] sm:$0xff]
  %v532 = vpack.c.bf16 %v531, %v531
  %v533 = vld [vmem:[#allocation2] sm:$0xff]
  %v534 = vld [vmem:[#allocation2 + $0x8] sm:$0xff]
  %v535 = vld [vmem:[#allocation2 + $0x10] sm:$0xff]
  %v536 = vld [vmem:[#allocation2 + $0x18] sm:$0xff]
  %v537 = vld [vmem:[#allocation2 + $0x20] sm:$0xff]
  %v538 = vld [vmem:[#allocation2 + $0x28] sm:$0xff]
  %v539 = vld [vmem:[#allocation2 + $0x30] sm:$0xff]
  %v540 = vld [vmem:[#allocation2 + $0x38] sm:$0xff]
  %v541 = vld [vmem:[#allocation2 + $0x40] sm:$0xff]
  %v542 = vld [vmem:[#allocation2 + $0x48] sm:$0xff]
  %v543 = vld [vmem:[#allocation2 + $0x50] sm:$0xff]
  %v544 = vld [vmem:[#allocation2 + $0x58] sm:$0xff]
  %v545 = vld [vmem:[#allocation2 + $0x60] sm:$0xff]
  %v546 = vld [vmem:[#allocation2 + $0x68] sm:$0xff]
  %v547 = vld [vmem:[#allocation2 + $0x70] sm:$0xff]
  %v548 = vld [vmem:[#allocation2 + $0x78] sm:$0xff]
  %v549 = vld [vmem:[#allocation2 + $0x80] sm:$0xff]
  %v550 = vld [vmem:[#allocation2 + $0x88] sm:$0xff]
  %v551 = vld [vmem:[#allocation2 + $0x90] sm:$0xff]
  %v552 = vld [vmem:[#allocation2 + $0x98] sm:$0xff]
  %v553 = vld [vmem:[#allocation2 + $0xa0] sm:$0xff]
  %v554 = vld [vmem:[#allocation2 + $0xa8] sm:$0xff]
  %v555 = vld [vmem:[#allocation2 + $0xb0] sm:$0xff]
  %v556 = vld [vmem:[#allocation2 + $0xb8] sm:$0xff]
  %557 = vmatprep.subr.bf16.mxu0 %v534
  %558 = vmatpush1.bf16.msra.mxu0 %v533
  %559 = vmatprep.subr.bf16.mxu0 %v537
  %560 = vmatpush1.bf16.msra.mxu0 %v536
  %561 = vmatprep.subr.bf16.mxu0 %v540
  %562 = vmatpush1.bf16.msra.mxu0 %v539
  %563 = vmatprep.subr.bf16.mxu0 %v543
  %564 = vmatpush1.bf16.msra.mxu0 %v542
  %565 = vmatprep.subr.bf16.mxu0 %v546
  %566 = vmatpush1.bf16.msra.mxu0 %v545
  %567 = vmatprep.subr.bf16.mxu0 %v549
  %568 = vmatpush1.bf16.msra.mxu0 %v548
  %569 = vmatprep.subr.bf16.mxu0 %v552
  %570 = vmatpush1.bf16.msra.mxu0 %v551
  %571 = vmatprep.subr.bf16.mxu0 %v555
  %572 = vmatpush1.bf16.msra.mxu0 %v554
  %573 = vmatprep.subr.bf16.mxu0 0
  %574 = vmatpush1.bf16.msra.mxu0 0
  %575 = vmatprep.subr.bf16.mxu0 0
  %576 = vmatpush1.bf16.msra.mxu0 0
  %577 = vmatprep.subr.bf16.mxu0 0
  %578 = vmatpush1.bf16.msra.mxu0 0
  %579 = vmatprep.subr.bf16.mxu0 0
  %580 = vmatpush1.bf16.msra.mxu0 0
  %581 = vmatprep.subr.bf16.mxu0 0
  %582 = vmatpush1.bf16.msra.mxu0 0
  %583 = vmatprep.subr.bf16.mxu0 0
  %584 = vmatpush1.bf16.msra.mxu0 0
  %585 = vmatprep.subr.bf16.mxu0 0
  %586 = vmatpush1.bf16.msra.mxu0 0
  %587 = vmatprep.subr.bf16.mxu0 0
  %588 = vmatpush1.bf16.msra.mxu0 0
  %589 = vmatprep.mubr.bf16.mxu0 0
  %590 = vmatmul.mubr.bf16.gmra.mrb[0].mxu0 %v532
  %v591 = vpop.f32.mrb[0].mxu0
  %v592 = vadd.f32 0.0, %v591
  %v593 = vpop.f32.mrb[0].mxu0
  %v594 = vadd.f32 0.0, %v593
  %v595 = vpop.f32.mrb[0].mxu0
  %v596 = vpop.f32.mrb[0].mxu0
  %597 = vdwg.mxu0
  %598 = vmatprep.subr.bf16.mxu0 0
  %599 = vmatpush1.bf16.msra.mxu0 %v535
  %600 = vmatprep.subr.bf16.mxu0 0
  %601 = vmatpush1.bf16.msra.mxu0 %v538
  %602 = vmatprep.subr.bf16.mxu0 0
  %603 = vmatpush1.bf16.msra.mxu0 %v541
  %604 = vmatprep.subr.bf16.mxu0 0
  %605 = vmatpush1.bf16.msra.mxu0 %v544
  %606 = vmatprep.subr.bf16.mxu0 0
  %607 = vmatpush1.bf16.msra.mxu0 %v547
  %608 = vmatprep.subr.bf16.mxu0 0
  %609 = vmatpush1.bf16.msra.mxu0 %v550
  %610 = vmatprep.subr.bf16.mxu0 0
  %611 = vmatpush1.bf16.msra.mxu0 %v553
  %612 = vmatprep.subr.bf16.mxu0 0
  %613 = vmatpush1.bf16.msra.mxu0 %v556
  %614 = vmatprep.subr.bf16.mxu0 0
  %615 = vmatpush1.bf16.msra.mxu0 0
  %616 = vmatprep.subr.bf16.mxu0 0
  %617 = vmatpush1.bf16.msra.mxu0 0
  %618 = vmatprep.subr.bf16.mxu0 0
  %619 = vmatpush1.bf16.msra.mxu0 0
  %620 = vmatprep.subr.bf16.mxu0 0
  %621 = vmatpush1.bf16.msra.mxu0 0
  %622 = vmatprep.subr.bf16.mxu0 0
  %623 = vmatpush1.bf16.msra.mxu0 0
  %624 = vmatprep.subr.bf16.mxu0 0
  %625 = vmatpush1.bf16.msra.mxu0 0
  %626 = vmatprep.subr.bf16.mxu0 0
  %627 = vmatpush1.bf16.msra.mxu0 0
  %628 = vmatprep.subr.bf16.mxu0 0
  %629 = vmatpush1.bf16.msra.mxu0 0
  %630 = vmatprep.mubr.bf16.mxu0 0
  %631 = vmatmul.mubr.bf16.gmra.mrb[0].mxu0 %v532
  %v632 = vpop.f32.mrb[0].mxu0
  %v633 = vadd.f32 0.0, %v632
  %v634 = vpop.f32.mrb[0].mxu0
  %v635 = vpop.f32.mrb[0].mxu0
  %v636 = vpop.f32.mrb[0].mxu0
  %637 = vdwg.mxu0
  %s638 = scalar_lea.vmem %s0, 48
  %v639 = vld [vmem:[%s638] sm:$0xff]
  %v640 = vld [vmem:[%s638 + $0x8] sm:$0xff]
  %v641 = vld [vmem:[%s638 + $0x10] sm:$0xff]
  %v642 = vadd.f32 %v639, %v592
  %v643 = vmul.f32 %v642, 0.5
  %v644 = vtanh.pop %v643
  %v645 = vmul.f32 %v644, 0.5
  %v646 = vadd.f32 %v645, 0.5
  %v647 = vadd.f32 %v640, %v594
  %v648 = vmul.f32 %v647, 0.5
  %v649 = vtanh.pop %v648
  %v650 = vmul.f32 %v649, 0.5
  %v651 = vadd.f32 %v650, 0.5
  %v652 = vadd.f32 %v633, %v267
  %v653 = vmul.f32 %v646, %v652
  %v654 = vadd.f32 %v641, %v653
  %v655 = vtanh.pop %v654
  %v656 = vsub.f32 %v531, %v655
  %v657 = vmul.f32 %v651, %v656
  %v658 = vadd.f32 %v655, %v657
  %659 = vst [vmem:[#allocation4] sm:$0xff] %v658
  %v660 = vpack.c.bf16 %v658, %v658
  %s661 = scalar_lea.vmem %s3, 8
  %662 = vst [vmem:[%s661] sm:$0xf] %v660
  %v663 = vld [vmem:[#allocation4] sm:$0xff]
  %v664 = vpack.c.bf16 %v663, %v663
  %v665 = vld [vmem:[#allocation2] sm:$0xff]
  %v666 = vld [vmem:[#allocation2 + $0x8] sm:$0xff]
  %v667 = vld [vmem:[#allocation2 + $0x10] sm:$0xff]
  %v668 = vld [vmem:[#allocation2 + $0x18] sm:$0xff]
  %v669 = vld [vmem:[#allocation2 + $0x20] sm:$0xff]
  %v670 = vld [vmem:[#allocation2 + $0x28] sm:$0xff]
  %v671 = vld [vmem:[#allocation2 + $0x30] sm:$0xff]
  %v672 = vld [vmem:[#allocation2 + $0x38] sm:$0xff]
  %v673 = vld [vmem:[#allocation2 + $0x40] sm:$0xff]
  %v674 = vld [vmem:[#allocation2 + $0x48] sm:$0xff]
  %v675 = vld [vmem:[#allocation2 + $0x50] sm:$0xff]
  %v676 = vld [vmem:[#allocation2 + $0x58] sm:$0xff]
  %v677 = vld [vmem:[#allocation2 + $0x60] sm:$0xff]
  %v678 = vld [vmem:[#allocation2 + $0x68] sm:$0xff]
  %v679 = vld [vmem:[#allocation2 + $0x70] sm:$0xff]
  %v680 = vld [vmem:[#allocation2 + $0x78] sm:$0xff]
  %v681 = vld [vmem:[#allocation2 + $0x80] sm:$0xff]
  %v682 = vld [vmem:[#allocation2 + $0x88] sm:$0xff]
  %v683 = vld [vmem:[#allocation2 + $0x90] sm:$0xff]
  %v684 = vld [vmem:[#allocation2 + $0x98] sm:$0xff]
  %v685 = vld [vmem:[#allocation2 + $0xa0] sm:$0xff]
  %v686 = vld [vmem:[#allocation2 + $0xa8] sm:$0xff]
  %v687 = vld [vmem:[#allocation2 + $0xb0] sm:$0xff]
  %v688 = vld [vmem:[#allocation2 + $0xb8] sm:$0xff]
  %689 = vmatprep.subr.bf16.mxu0 %v666
  %690 = vmatpush1.bf16.msra.mxu0 %v665
  %691 = vmatprep.subr.bf16.mxu0 %v669
  %692 = vmatpush1.bf16.msra.mxu0 %v668
  %693 = vmatprep.subr.bf16.mxu0 %v672
  %694 = vmatpush1.bf16.msra.mxu0 %v671
  %695 = vmatprep.subr.bf16.mxu0 %v675
  %696 = vmatpush1.bf16.msra.mxu0 %v674
  %697 = vmatprep.subr.bf16.mxu0 %v678
  %698 = vmatpush1.bf16.msra.mxu0 %v677
  %699 = vmatprep.subr.bf16.mxu0 %v681
  %700 = vmatpush1.bf16.msra.mxu0 %v680
  %701 = vmatprep.subr.bf16.mxu0 %v684
  %702 = vmatpush1.bf16.msra.mxu0 %v683
  %703 = vmatprep.subr.bf16.mxu0 %v687
  %704 = vmatpush1.bf16.msra.mxu0 %v686
  %705 = vmatprep.subr.bf16.mxu0 0
  %706 = vmatpush1.bf16.msra.mxu0 0
  %707 = vmatprep.subr.bf16.mxu0 0
  %708 = vmatpush1.bf16.msra.mxu0 0
  %709 = vmatprep.subr.bf16.mxu0 0
  %710 = vmatpush1.bf16.msra.mxu0 0
  %711 = vmatprep.subr.bf16.mxu0 0
  %712 = vmatpush1.bf16.msra.mxu0 0
  %713 = vmatprep.subr.bf16.mxu0 0
  %714 = vmatpush1.bf16.msra.mxu0 0
  %715 = vmatprep.subr.bf16.mxu0 0
  %716 = vmatpush1.bf16.msra.mxu0 0
  %717 = vmatprep.subr.bf16.mxu0 0
  %718 = vmatpush1.bf16.msra.mxu0 0
  %719 = vmatprep.subr.bf16.mxu0 0
  %720 = vmatpush1.bf16.msra.mxu0 0
  %721 = vmatprep.mubr.bf16.mxu0 0
  %722 = vmatmul.mubr.bf16.gmra.mrb[0].mxu0 %v664
  %v723 = vpop.f32.mrb[0].mxu0
  %v724 = vadd.f32 0.0, %v723
  %v725 = vpop.f32.mrb[0].mxu0
  %v726 = vadd.f32 0.0, %v725
  %v727 = vpop.f32.mrb[0].mxu0
  %v728 = vpop.f32.mrb[0].mxu0
  %729 = vdwg.mxu0
  %730 = vmatprep.subr.bf16.mxu0 0
  %731 = vmatpush1.bf16.msra.mxu0 %v667
  %732 = vmatprep.subr.bf16.mxu0 0
  %733 = vmatpush1.bf16.msra.mxu0 %v670
  %734 = vmatprep.subr.bf16.mxu0 0
  %735 = vmatpush1.bf16.msra.mxu0 %v673
  %736 = vmatprep.subr.bf16.mxu0 0
  %737 = vmatpush1.bf16.msra.mxu0 %v676
  %738 = vmatprep.subr.bf16.mxu0 0
  %739 = vmatpush1.bf16.msra.mxu0 %v679
  %740 = vmatprep.subr.bf16.mxu0 0
  %741 = vmatpush1.bf16.msra.mxu0 %v682
  %742 = vmatprep.subr.bf16.mxu0 0
  %743 = vmatpush1.bf16.msra.mxu0 %v685
  %744 = vmatprep.subr.bf16.mxu0 0
  %745 = vmatpush1.bf16.msra.mxu0 %v688
  %746 = vmatprep.subr.bf16.mxu0 0
  %747 = vmatpush1.bf16.msra.mxu0 0
  %748 = vmatprep.subr.bf16.mxu0 0
  %749 = vmatpush1.bf16.msra.mxu0 0
  %750 = vmatprep.subr.bf16.mxu0 0
  %751 = vmatpush1.bf16.msra.mxu0 0
  %752 = vmatprep.subr.bf16.mxu0 0
  %753 = vmatpush1.bf16.msra.mxu0 0
  %754 = vmatprep.subr.bf16.mxu0 0
  %755 = vmatpush1.bf16.msra.mxu0 0
  %756 = vmatprep.subr.bf16.mxu0 0
  %757 = vmatpush1.bf16.msra.mxu0 0
  %758 = vmatprep.subr.bf16.mxu0 0
  %759 = vmatpush1.bf16.msra.mxu0 0
  %760 = vmatprep.subr.bf16.mxu0 0
  %761 = vmatpush1.bf16.msra.mxu0 0
  %762 = vmatprep.mubr.bf16.mxu0 0
  %763 = vmatmul.mubr.bf16.gmra.mrb[0].mxu0 %v664
  %v764 = vpop.f32.mrb[0].mxu0
  %v765 = vadd.f32 0.0, %v764
  %v766 = vpop.f32.mrb[0].mxu0
  %v767 = vpop.f32.mrb[0].mxu0
  %v768 = vpop.f32.mrb[0].mxu0
  %769 = vdwg.mxu0
  %s770 = scalar_lea.vmem %s0, 72
  %v771 = vld [vmem:[%s770] sm:$0xff]
  %v772 = vld [vmem:[%s770 + $0x8] sm:$0xff]
  %v773 = vld [vmem:[%s770 + $0x10] sm:$0xff]
  %v774 = vadd.f32 %v771, %v724
  %v775 = vmul.f32 %v774, 0.5
  %v776 = vtanh.pop %v775
  %v777 = vmul.f32 %v776, 0.5
  %v778 = vadd.f32 %v777, 0.5
  %v779 = vadd.f32 %v772, %v726
  %v780 = vmul.f32 %v779, 0.5
  %v781 = vtanh.pop %v780
  %v782 = vmul.f32 %v781, 0.5
  %v783 = vadd.f32 %v782, 0.5
  %v784 = vadd.f32 %v765, %v267
  %v785 = vmul.f32 %v778, %v784
  %v786 = vadd.f32 %v773, %v785
  %v787 = vtanh.pop %v786
  %v788 = vsub.f32 %v663, %v787
  %v789 = vmul.f32 %v783, %v788
  %v790 = vadd.f32 %v787, %v789
  %791 = vst [vmem:[#allocation4] sm:$0xff] %v790
  %v792 = vpack.c.bf16 %v790, %v790
  %s793 = scalar_lea.vmem %s3, 12
  %794 = vst [vmem:[%s793] sm:$0xf] %v792
  %v795 = vld [vmem:[#allocation4] sm:$0xff]
  %v796 = vpack.c.bf16 %v795, %v795
  %v797 = vld [vmem:[#allocation2] sm:$0xff]
  %v798 = vld [vmem:[#allocation2 + $0x8] sm:$0xff]
  %v799 = vld [vmem:[#allocation2 + $0x10] sm:$0xff]
  %v800 = vld [vmem:[#allocation2 + $0x18] sm:$0xff]
  %v801 = vld [vmem:[#allocation2 + $0x20] sm:$0xff]
  %v802 = vld [vmem:[#allocation2 + $0x28] sm:$0xff]
  %v803 = vld [vmem:[#allocation2 + $0x30] sm:$0xff]
  %v804 = vld [vmem:[#allocation2 + $0x38] sm:$0xff]
  %v805 = vld [vmem:[#allocation2 + $0x40] sm:$0xff]
  %v806 = vld [vmem:[#allocation2 + $0x48] sm:$0xff]
  %v807 = vld [vmem:[#allocation2 + $0x50] sm:$0xff]
  %v808 = vld [vmem:[#allocation2 + $0x58] sm:$0xff]
  %v809 = vld [vmem:[#allocation2 + $0x60] sm:$0xff]
  %v810 = vld [vmem:[#allocation2 + $0x68] sm:$0xff]
  %v811 = vld [vmem:[#allocation2 + $0x70] sm:$0xff]
  %v812 = vld [vmem:[#allocation2 + $0x78] sm:$0xff]
  %v813 = vld [vmem:[#allocation2 + $0x80] sm:$0xff]
  %v814 = vld [vmem:[#allocation2 + $0x88] sm:$0xff]
  %v815 = vld [vmem:[#allocation2 + $0x90] sm:$0xff]
  %v816 = vld [vmem:[#allocation2 + $0x98] sm:$0xff]
  %v817 = vld [vmem:[#allocation2 + $0xa0] sm:$0xff]
  %v818 = vld [vmem:[#allocation2 + $0xa8] sm:$0xff]
  %v819 = vld [vmem:[#allocation2 + $0xb0] sm:$0xff]
  %v820 = vld [vmem:[#allocation2 + $0xb8] sm:$0xff]
  %821 = vmatprep.subr.bf16.mxu0 %v798
  %822 = vmatpush1.bf16.msra.mxu0 %v797
  %823 = vmatprep.subr.bf16.mxu0 %v801
  %824 = vmatpush1.bf16.msra.mxu0 %v800
  %825 = vmatprep.subr.bf16.mxu0 %v804
  %826 = vmatpush1.bf16.msra.mxu0 %v803
  %827 = vmatprep.subr.bf16.mxu0 %v807
  %828 = vmatpush1.bf16.msra.mxu0 %v806
  %829 = vmatprep.subr.bf16.mxu0 %v810
  %830 = vmatpush1.bf16.msra.mxu0 %v809
  %831 = vmatprep.subr.bf16.mxu0 %v813
  %832 = vmatpush1.bf16.msra.mxu0 %v812
  %833 = vmatprep.subr.bf16.mxu0 %v816
  %834 = vmatpush1.bf16.msra.mxu0 %v815
  %835 = vmatprep.subr.bf16.mxu0 %v819
  %836 = vmatpush1.bf16.msra.mxu0 %v818
  %837 = vmatprep.subr.bf16.mxu0 0
  %838 = vmatpush1.bf16.msra.mxu0 0
  %839 = vmatprep.subr.bf16.mxu0 0
  %840 = vmatpush1.bf16.msra.mxu0 0
  %841 = vmatprep.subr.bf16.mxu0 0
  %842 = vmatpush1.bf16.msra.mxu0 0
  %843 = vmatprep.subr.bf16.mxu0 0
  %844 = vmatpush1.bf16.msra.mxu0 0
  %845 = vmatprep.subr.bf16.mxu0 0
  %846 = vmatpush1.bf16.msra.mxu0 0
  %847 = vmatprep.subr.bf16.mxu0 0
  %848 = vmatpush1.bf16.msra.mxu0 0
  %849 = vmatprep.subr.bf16.mxu0 0
  %850 = vmatpush1.bf16.msra.mxu0 0
  %851 = vmatprep.subr.bf16.mxu0 0
  %852 = vmatpush1.bf16.msra.mxu0 0
  %853 = vmatprep.mubr.bf16.mxu0 0
  %854 = vmatmul.mubr.bf16.gmra.mrb[0].mxu0 %v796
  %v855 = vpop.f32.mrb[0].mxu0
  %v856 = vadd.f32 0.0, %v855
  %v857 = vpop.f32.mrb[0].mxu0
  %v858 = vadd.f32 0.0, %v857
  %v859 = vpop.f32.mrb[0].mxu0
  %v860 = vpop.f32.mrb[0].mxu0
  %861 = vdwg.mxu0
  %862 = vmatprep.subr.bf16.mxu0 0
  %863 = vmatpush1.bf16.msra.mxu0 %v799
  %864 = vmatprep.subr.bf16.mxu0 0
  %865 = vmatpush1.bf16.msra.mxu0 %v802
  %866 = vmatprep.subr.bf16.mxu0 0
  %867 = vmatpush1.bf16.msra.mxu0 %v805
  %868 = vmatprep.subr.bf16.mxu0 0
  %869 = vmatpush1.bf16.msra.mxu0 %v808
  %870 = vmatprep.subr.bf16.mxu0 0
  %871 = vmatpush1.bf16.msra.mxu0 %v811
  %872 = vmatprep.subr.bf16.mxu0 0
  %873 = vmatpush1.bf16.msra.mxu0 %v814
  %874 = vmatprep.subr.bf16.mxu0 0
  %875 = vmatpush1.bf16.msra.mxu0 %v817
  %876 = vmatprep.subr.bf16.mxu0 0
  %877 = vmatpush1.bf16.msra.mxu0 %v820
  %878 = vmatprep.subr.bf16.mxu0 0
  %879 = vmatpush1.bf16.msra.mxu0 0
  %880 = vmatprep.subr.bf16.mxu0 0
  %881 = vmatpush1.bf16.msra.mxu0 0
  %882 = vmatprep.subr.bf16.mxu0 0
  %883 = vmatpush1.bf16.msra.mxu0 0
  %884 = vmatprep.subr.bf16.mxu0 0
  %885 = vmatpush1.bf16.msra.mxu0 0
  %886 = vmatprep.subr.bf16.mxu0 0
  %887 = vmatpush1.bf16.msra.mxu0 0
  %888 = vmatprep.subr.bf16.mxu0 0
  %889 = vmatpush1.bf16.msra.mxu0 0
  %890 = vmatprep.subr.bf16.mxu0 0
  %891 = vmatpush1.bf16.msra.mxu0 0
  %892 = vmatprep.subr.bf16.mxu0 0
  %893 = vmatpush1.bf16.msra.mxu0 0
  %894 = vmatprep.mubr.bf16.mxu0 0
  %895 = vmatmul.mubr.bf16.gmra.mrb[0].mxu0 %v796
  %v896 = vpop.f32.mrb[0].mxu0
  %v897 = vadd.f32 0.0, %v896
  %v898 = vpop.f32.mrb[0].mxu0
  %v899 = vpop.f32.mrb[0].mxu0
  %v900 = vpop.f32.mrb[0].mxu0
  %901 = vdwg.mxu0
  %s902 = scalar_lea.vmem %s0, 96
  %v903 = vld [vmem:[%s902] sm:$0xff]
  %v904 = vld [vmem:[%s902 + $0x8] sm:$0xff]
  %v905 = vld [vmem:[%s902 + $0x10] sm:$0xff]
  %v906 = vadd.f32 %v903, %v856
  %v907 = vmul.f32 %v906, 0.5
  %v908 = vtanh.pop %v907
  %v909 = vmul.f32 %v908, 0.5
  %v910 = vadd.f32 %v909, 0.5
  %v911 = vadd.f32 %v904, %v858
  %v912 = vmul.f32 %v911, 0.5
  %v913 = vtanh.pop %v912
  %v914 = vmul.f32 %v913, 0.5
  %v915 = vadd.f32 %v914, 0.5
  %v916 = vadd.f32 %v897, %v267
  %v917 = vmul.f32 %v910, %v916
  %v918 = vadd.f32 %v905, %v917
  %v919 = vtanh.pop %v918
  %v920 = vsub.f32 %v795, %v919
  %v921 = vmul.f32 %v915, %v920
  %v922 = vadd.f32 %v919, %v921
  %923 = vst [vmem:[#allocation4] sm:$0xff] %v922
  %v924 = vpack.c.bf16 %v922, %v922
  %s925 = scalar_lea.vmem %s3, 16
  %926 = vst [vmem:[%s925] sm:$0xf] %v924
  %v927 = vld [vmem:[#allocation4] sm:$0xff]
  %v928 = vpack.c.bf16 %v927, %v927
  %v929 = vld [vmem:[#allocation2] sm:$0xff]
  %v930 = vld [vmem:[#allocation2 + $0x8] sm:$0xff]
  %v931 = vld [vmem:[#allocation2 + $0x10] sm:$0xff]
  %v932 = vld [vmem:[#allocation2 + $0x18] sm:$0xff]
  %v933 = vld [vmem:[#allocation2 + $0x20] sm:$0xff]
  %v934 = vld [vmem:[#allocation2 + $0x28] sm:$0xff]
  %v935 = vld [vmem:[#allocation2 + $0x30] sm:$0xff]
  %v936 = vld [vmem:[#allocation2 + $0x38] sm:$0xff]
  %v937 = vld [vmem:[#allocation2 + $0x40] sm:$0xff]
  %v938 = vld [vmem:[#allocation2 + $0x48] sm:$0xff]
  %v939 = vld [vmem:[#allocation2 + $0x50] sm:$0xff]
  %v940 = vld [vmem:[#allocation2 + $0x58] sm:$0xff]
  %v941 = vld [vmem:[#allocation2 + $0x60] sm:$0xff]
  %v942 = vld [vmem:[#allocation2 + $0x68] sm:$0xff]
  %v943 = vld [vmem:[#allocation2 + $0x70] sm:$0xff]
  %v944 = vld [vmem:[#allocation2 + $0x78] sm:$0xff]
  %v945 = vld [vmem:[#allocation2 + $0x80] sm:$0xff]
  %v946 = vld [vmem:[#allocation2 + $0x88] sm:$0xff]
  %v947 = vld [vmem:[#allocation2 + $0x90] sm:$0xff]
  %v948 = vld [vmem:[#allocation2 + $0x98] sm:$0xff]
  %v949 = vld [vmem:[#allocation2 + $0xa0] sm:$0xff]
  %v950 = vld [vmem:[#allocation2 + $0xa8] sm:$0xff]
  %v951 = vld [vmem:[#allocation2 + $0xb0] sm:$0xff]
  %v952 = vld [vmem:[#allocation2 + $0xb8] sm:$0xff]
  %953 = vmatprep.subr.bf16.mxu0 %v930
  %954 = vmatpush1.bf16.msra.mxu0 %v929
  %955 = vmatprep.subr.bf16.mxu0 %v933
  %956 = vmatpush1.bf16.msra.mxu0 %v932
  %957 = vmatprep.subr.bf16.mxu0 %v936
  %958 = vmatpush1.bf16.msra.mxu0 %v935
  %959 = vmatprep.subr.bf16.mxu0 %v939
  %960 = vmatpush1.bf16.msra.mxu0 %v938
  %961 = vmatprep.subr.bf16.mxu0 %v942
  %962 = vmatpush1.bf16.msra.mxu0 %v941
  %963 = vmatprep.subr.bf16.mxu0 %v945
  %964 = vmatpush1.bf16.msra.mxu0 %v944
  %965 = vmatprep.subr.bf16.mxu0 %v948
  %966 = vmatpush1.bf16.msra.mxu0 %v947
  %967 = vmatprep.subr.bf16.mxu0 %v951
  %968 = vmatpush1.bf16.msra.mxu0 %v950
  %969 = vmatprep.subr.bf16.mxu0 0
  %970 = vmatpush1.bf16.msra.mxu0 0
  %971 = vmatprep.subr.bf16.mxu0 0
  %972 = vmatpush1.bf16.msra.mxu0 0
  %973 = vmatprep.subr.bf16.mxu0 0
  %974 = vmatpush1.bf16.msra.mxu0 0
  %975 = vmatprep.subr.bf16.mxu0 0
  %976 = vmatpush1.bf16.msra.mxu0 0
  %977 = vmatprep.subr.bf16.mxu0 0
  %978 = vmatpush1.bf16.msra.mxu0 0
  %979 = vmatprep.subr.bf16.mxu0 0
  %980 = vmatpush1.bf16.msra.mxu0 0
  %981 = vmatprep.subr.bf16.mxu0 0
  %982 = vmatpush1.bf16.msra.mxu0 0
  %983 = vmatprep.subr.bf16.mxu0 0
  %984 = vmatpush1.bf16.msra.mxu0 0
  %985 = vmatprep.mubr.bf16.mxu0 0
  %986 = vmatmul.mubr.bf16.gmra.mrb[0].mxu0 %v928
  %v987 = vpop.f32.mrb[0].mxu0
  %v988 = vadd.f32 0.0, %v987
  %v989 = vpop.f32.mrb[0].mxu0
  %v990 = vadd.f32 0.0, %v989
  %v991 = vpop.f32.mrb[0].mxu0
  %v992 = vpop.f32.mrb[0].mxu0
  %993 = vdwg.mxu0
  %994 = vmatprep.subr.bf16.mxu0 0
  %995 = vmatpush1.bf16.msra.mxu0 %v931
  %996 = vmatprep.subr.bf16.mxu0 0
  %997 = vmatpush1.bf16.msra.mxu0 %v934
  %998 = vmatprep.subr.bf16.mxu0 0
  %999 = vmatpush1.bf16.msra.mxu0 %v937
  %1000 = vmatprep.subr.bf16.mxu0 0
  %1001 = vmatpush1.bf16.msra.mxu0 %v940
  %1002 = vmatprep.subr.bf16.mxu0 0
  %1003 = vmatpush1.bf16.msra.mxu0 %v943
  %1004 = vmatprep.subr.bf16.mxu0 0
  %1005 = vmatpush1.bf16.msra.mxu0 %v946
  %1006 = vmatprep.subr.bf16.mxu0 0
  %1007 = vmatpush1.bf16.msra.mxu0 %v949
  %1008 = vmatprep.subr.bf16.mxu0 0
  %1009 = vmatpush1.bf16.msra.mxu0 %v952
  %1010 = vmatprep.subr.bf16.mxu0 0
  %1011 = vmatpush1.bf16.msra.mxu0 0
  %1012 = vmatprep.subr.bf16.mxu0 0
  %1013 = vmatpush1.bf16.msra.mxu0 0
  %1014 = vmatprep.subr.bf16.mxu0 0
  %1015 = vmatpush1.bf16.msra.mxu0 0
  %1016 = vmatprep.subr.bf16.mxu0 0
  %1017 = vmatpush1.bf16.msra.mxu0 0
  %1018 = vmatprep.subr.bf16.mxu0 0
  %1019 = vmatpush1.bf16.msra.mxu0 0
  %1020 = vmatprep.subr.bf16.mxu0 0
  %1021 = vmatpush1.bf16.msra.mxu0 0
  %1022 = vmatprep.subr.bf16.mxu0 0
  %1023 = vmatpush1.bf16.msra.mxu0 0
  %1024 = vmatprep.subr.bf16.mxu0 0
  %1025 = vmatpush1.bf16.msra.mxu0 0
  %1026 = vmatprep.mubr.bf16.mxu0 0
  %1027 = vmatmul.mubr.bf16.gmra.mrb[0].mxu0 %v928
  %v1028 = vpop.f32.mrb[0].mxu0
  %v1029 = vadd.f32 0.0, %v1028
  %v1030 = vpop.f32.mrb[0].mxu0
  %v1031 = vpop.f32.mrb[0].mxu0
  %v1032 = vpop.f32.mrb[0].mxu0
  %1033 = vdwg.mxu0
  %s1034 = scalar_lea.vmem %s0, 120
  %v1035 = vld [vmem:[%s1034] sm:$0xff]
  %v1036 = vld [vmem:[%s1034 + $0x8] sm:$0xff]
  %v1037 = vld [vmem:[%s1034 + $0x10] sm:$0xff]
  %v1038 = vadd.f32 %v1035, %v988
  %v1039 = vmul.f32 %v1038, 0.5
  %v1040 = vtanh.pop %v1039
  %v1041 = vmul.f32 %v1040, 0.5
  %v1042 = vadd.f32 %v1041, 0.5
  %v1043 = vadd.f32 %v1036, %v990
  %v1044 = vmul.f32 %v1043, 0.5
  %v1045 = vtanh.pop %v1044
  %v1046 = vmul.f32 %v1045, 0.5
  %v1047 = vadd.f32 %v1046, 0.5
  %v1048 = vadd.f32 %v1029, %v267
  %v1049 = vmul.f32 %v1042, %v1048
  %v1050 = vadd.f32 %v1037, %v1049
  %v1051 = vtanh.pop %v1050
  %v1052 = vsub.f32 %v927, %v1051
  %v1053 = vmul.f32 %v1047, %v1052
  %v1054 = vadd.f32 %v1051, %v1053
  %1055 = vst [vmem:[#allocation4] sm:$0xff] %v1054
  %v1056 = vpack.c.bf16 %v1054, %v1054
  %s1057 = scalar_lea.vmem %s3, 20
  %1058 = vst [vmem:[%s1057] sm:$0xf] %v1056
  %v1059 = vld [vmem:[#allocation4] sm:$0xff]
  %v1060 = vpack.c.bf16 %v1059, %v1059
  %v1061 = vld [vmem:[#allocation2] sm:$0xff]
  %v1062 = vld [vmem:[#allocation2 + $0x8] sm:$0xff]
  %v1063 = vld [vmem:[#allocation2 + $0x10] sm:$0xff]
  %v1064 = vld [vmem:[#allocation2 + $0x18] sm:$0xff]
  %v1065 = vld [vmem:[#allocation2 + $0x20] sm:$0xff]
  %v1066 = vld [vmem:[#allocation2 + $0x28] sm:$0xff]
  %v1067 = vld [vmem:[#allocation2 + $0x30] sm:$0xff]
  %v1068 = vld [vmem:[#allocation2 + $0x38] sm:$0xff]
  %v1069 = vld [vmem:[#allocation2 + $0x40] sm:$0xff]
  %v1070 = vld [vmem:[#allocation2 + $0x48] sm:$0xff]
  %v1071 = vld [vmem:[#allocation2 + $0x50] sm:$0xff]
  %v1072 = vld [vmem:[#allocation2 + $0x58] sm:$0xff]
  %v1073 = vld [vmem:[#allocation2 + $0x60] sm:$0xff]
  %v1074 = vld [vmem:[#allocation2 + $0x68] sm:$0xff]
  %v1075 = vld [vmem:[#allocation2 + $0x70] sm:$0xff]
  %v1076 = vld [vmem:[#allocation2 + $0x78] sm:$0xff]
  %v1077 = vld [vmem:[#allocation2 + $0x80] sm:$0xff]
  %v1078 = vld [vmem:[#allocation2 + $0x88] sm:$0xff]
  %v1079 = vld [vmem:[#allocation2 + $0x90] sm:$0xff]
  %v1080 = vld [vmem:[#allocation2 + $0x98] sm:$0xff]
  %v1081 = vld [vmem:[#allocation2 + $0xa0] sm:$0xff]
  %v1082 = vld [vmem:[#allocation2 + $0xa8] sm:$0xff]
  %v1083 = vld [vmem:[#allocation2 + $0xb0] sm:$0xff]
  %v1084 = vld [vmem:[#allocation2 + $0xb8] sm:$0xff]
  %1085 = vmatprep.subr.bf16.mxu0 %v1062
  %1086 = vmatpush1.bf16.msra.mxu0 %v1061
  %1087 = vmatprep.subr.bf16.mxu0 %v1065
  %1088 = vmatpush1.bf16.msra.mxu0 %v1064
  %1089 = vmatprep.subr.bf16.mxu0 %v1068
  %1090 = vmatpush1.bf16.msra.mxu0 %v1067
  %1091 = vmatprep.subr.bf16.mxu0 %v1071
  %1092 = vmatpush1.bf16.msra.mxu0 %v1070
  %1093 = vmatprep.subr.bf16.mxu0 %v1074
  %1094 = vmatpush1.bf16.msra.mxu0 %v1073
  %1095 = vmatprep.subr.bf16.mxu0 %v1077
  %1096 = vmatpush1.bf16.msra.mxu0 %v1076
  %1097 = vmatprep.subr.bf16.mxu0 %v1080
  %1098 = vmatpush1.bf16.msra.mxu0 %v1079
  %1099 = vmatprep.subr.bf16.mxu0 %v1083
  %1100 = vmatpush1.bf16.msra.mxu0 %v1082
  %1101 = vmatprep.subr.bf16.mxu0 0
  %1102 = vmatpush1.bf16.msra.mxu0 0
  %1103 = vmatprep.subr.bf16.mxu0 0
  %1104 = vmatpush1.bf16.msra.mxu0 0
  %1105 = vmatprep.subr.bf16.mxu0 0
  %1106 = vmatpush1.bf16.msra.mxu0 0
  %1107 = vmatprep.subr.bf16.mxu0 0
  %1108 = vmatpush1.bf16.msra.mxu0 0
  %1109 = vmatprep.subr.bf16.mxu0 0
  %1110 = vmatpush1.bf16.msra.mxu0 0
  %1111 = vmatprep.subr.bf16.mxu0 0
  %1112 = vmatpush1.bf16.msra.mxu0 0
  %1113 = vmatprep.subr.bf16.mxu0 0
  %1114 = vmatpush1.bf16.msra.mxu0 0
  %1115 = vmatprep.subr.bf16.mxu0 0
  %1116 = vmatpush1.bf16.msra.mxu0 0
  %1117 = vmatprep.mubr.bf16.mxu0 0
  %1118 = vmatmul.mubr.bf16.gmra.mrb[0].mxu0 %v1060
  %v1119 = vpop.f32.mrb[0].mxu0
  %v1120 = vadd.f32 0.0, %v1119
  %v1121 = vpop.f32.mrb[0].mxu0
  %v1122 = vadd.f32 0.0, %v1121
  %v1123 = vpop.f32.mrb[0].mxu0
  %v1124 = vpop.f32.mrb[0].mxu0
  %1125 = vdwg.mxu0
  %1126 = vmatprep.subr.bf16.mxu0 0
  %1127 = vmatpush1.bf16.msra.mxu0 %v1063
  %1128 = vmatprep.subr.bf16.mxu0 0
  %1129 = vmatpush1.bf16.msra.mxu0 %v1066
  %1130 = vmatprep.subr.bf16.mxu0 0
  %1131 = vmatpush1.bf16.msra.mxu0 %v1069
  %1132 = vmatprep.subr.bf16.mxu0 0
  %1133 = vmatpush1.bf16.msra.mxu0 %v1072
  %1134 = vmatprep.subr.bf16.mxu0 0
  %1135 = vmatpush1.bf16.msra.mxu0 %v1075
  %1136 = vmatprep.subr.bf16.mxu0 0
  %1137 = vmatpush1.bf16.msra.mxu0 %v1078
  %1138 = vmatprep.subr.bf16.mxu0 0
  %1139 = vmatpush1.bf16.msra.mxu0 %v1081
  %1140 = vmatprep.subr.bf16.mxu0 0
  %1141 = vmatpush1.bf16.msra.mxu0 %v1084
  %1142 = vmatprep.subr.bf16.mxu0 0
  %1143 = vmatpush1.bf16.msra.mxu0 0
  %1144 = vmatprep.subr.bf16.mxu0 0
  %1145 = vmatpush1.bf16.msra.mxu0 0
  %1146 = vmatprep.subr.bf16.mxu0 0
  %1147 = vmatpush1.bf16.msra.mxu0 0
  %1148 = vmatprep.subr.bf16.mxu0 0
  %1149 = vmatpush1.bf16.msra.mxu0 0
  %1150 = vmatprep.subr.bf16.mxu0 0
  %1151 = vmatpush1.bf16.msra.mxu0 0
  %1152 = vmatprep.subr.bf16.mxu0 0
  %1153 = vmatpush1.bf16.msra.mxu0 0
  %1154 = vmatprep.subr.bf16.mxu0 0
  %1155 = vmatpush1.bf16.msra.mxu0 0
  %1156 = vmatprep.subr.bf16.mxu0 0
  %1157 = vmatpush1.bf16.msra.mxu0 0
  %1158 = vmatprep.mubr.bf16.mxu0 0
  %1159 = vmatmul.mubr.bf16.gmra.mrb[0].mxu0 %v1060
  %v1160 = vpop.f32.mrb[0].mxu0
  %v1161 = vadd.f32 0.0, %v1160
  %v1162 = vpop.f32.mrb[0].mxu0
  %v1163 = vpop.f32.mrb[0].mxu0
  %v1164 = vpop.f32.mrb[0].mxu0
  %1165 = vdwg.mxu0
  %s1166 = scalar_lea.vmem %s0, 144
  %v1167 = vld [vmem:[%s1166] sm:$0xff]
  %v1168 = vld [vmem:[%s1166 + $0x8] sm:$0xff]
  %v1169 = vld [vmem:[%s1166 + $0x10] sm:$0xff]
  %v1170 = vadd.f32 %v1167, %v1120
  %v1171 = vmul.f32 %v1170, 0.5
  %v1172 = vtanh.pop %v1171
  %v1173 = vmul.f32 %v1172, 0.5
  %v1174 = vadd.f32 %v1173, 0.5
  %v1175 = vadd.f32 %v1168, %v1122
  %v1176 = vmul.f32 %v1175, 0.5
  %v1177 = vtanh.pop %v1176
  %v1178 = vmul.f32 %v1177, 0.5
  %v1179 = vadd.f32 %v1178, 0.5
  %v1180 = vadd.f32 %v1161, %v267
  %v1181 = vmul.f32 %v1174, %v1180
  %v1182 = vadd.f32 %v1169, %v1181
  %v1183 = vtanh.pop %v1182
  %v1184 = vsub.f32 %v1059, %v1183
  %v1185 = vmul.f32 %v1179, %v1184
  %v1186 = vadd.f32 %v1183, %v1185
  %1187 = vst [vmem:[#allocation4] sm:$0xff] %v1186
  %v1188 = vpack.c.bf16 %v1186, %v1186
  %s1189 = scalar_lea.vmem %s3, 24
  %1190 = vst [vmem:[%s1189] sm:$0xf] %v1188
  %v1191 = vld [vmem:[#allocation4] sm:$0xff]
  %v1192 = vpack.c.bf16 %v1191, %v1191
  %v1193 = vld [vmem:[#allocation2] sm:$0xff]
  %v1194 = vld [vmem:[#allocation2 + $0x8] sm:$0xff]
  %v1195 = vld [vmem:[#allocation2 + $0x10] sm:$0xff]
  %v1196 = vld [vmem:[#allocation2 + $0x18] sm:$0xff]
  %v1197 = vld [vmem:[#allocation2 + $0x20] sm:$0xff]
  %v1198 = vld [vmem:[#allocation2 + $0x28] sm:$0xff]
  %v1199 = vld [vmem:[#allocation2 + $0x30] sm:$0xff]
  %v1200 = vld [vmem:[#allocation2 + $0x38] sm:$0xff]
  %v1201 = vld [vmem:[#allocation2 + $0x40] sm:$0xff]
  %v1202 = vld [vmem:[#allocation2 + $0x48] sm:$0xff]
  %v1203 = vld [vmem:[#allocation2 + $0x50] sm:$0xff]
  %v1204 = vld [vmem:[#allocation2 + $0x58] sm:$0xff]
  %v1205 = vld [vmem:[#allocation2 + $0x60] sm:$0xff]
  %v1206 = vld [vmem:[#allocation2 + $0x68] sm:$0xff]
  %v1207 = vld [vmem:[#allocation2 + $0x70] sm:$0xff]
  %v1208 = vld [vmem:[#allocation2 + $0x78] sm:$0xff]
  %v1209 = vld [vmem:[#allocation2 + $0x80] sm:$0xff]
  %v1210 = vld [vmem:[#allocation2 + $0x88] sm:$0xff]
  %v1211 = vld [vmem:[#allocation2 + $0x90] sm:$0xff]
  %v1212 = vld [vmem:[#allocation2 + $0x98] sm:$0xff]
  %v1213 = vld [vmem:[#allocation2 + $0xa0] sm:$0xff]
  %v1214 = vld [vmem:[#allocation2 + $0xa8] sm:$0xff]
  %v1215 = vld [vmem:[#allocation2 + $0xb0] sm:$0xff]
  %v1216 = vld [vmem:[#allocation2 + $0xb8] sm:$0xff]
  %1217 = vmatprep.subr.bf16.mxu0 %v1194
  %1218 = vmatpush1.bf16.msra.mxu0 %v1193
  %1219 = vmatprep.subr.bf16.mxu0 %v1197
  %1220 = vmatpush1.bf16.msra.mxu0 %v1196
  %1221 = vmatprep.subr.bf16.mxu0 %v1200
  %1222 = vmatpush1.bf16.msra.mxu0 %v1199
  %1223 = vmatprep.subr.bf16.mxu0 %v1203
  %1224 = vmatpush1.bf16.msra.mxu0 %v1202
  %1225 = vmatprep.subr.bf16.mxu0 %v1206
  %1226 = vmatpush1.bf16.msra.mxu0 %v1205
  %1227 = vmatprep.subr.bf16.mxu0 %v1209
  %1228 = vmatpush1.bf16.msra.mxu0 %v1208
  %1229 = vmatprep.subr.bf16.mxu0 %v1212
  %1230 = vmatpush1.bf16.msra.mxu0 %v1211
  %1231 = vmatprep.subr.bf16.mxu0 %v1215
  %1232 = vmatpush1.bf16.msra.mxu0 %v1214
  %1233 = vmatprep.subr.bf16.mxu0 0
  %1234 = vmatpush1.bf16.msra.mxu0 0
  %1235 = vmatprep.subr.bf16.mxu0 0
  %1236 = vmatpush1.bf16.msra.mxu0 0
  %1237 = vmatprep.subr.bf16.mxu0 0
  %1238 = vmatpush1.bf16.msra.mxu0 0
  %1239 = vmatprep.subr.bf16.mxu0 0
  %1240 = vmatpush1.bf16.msra.mxu0 0
  %1241 = vmatprep.subr.bf16.mxu0 0
  %1242 = vmatpush1.bf16.msra.mxu0 0
  %1243 = vmatprep.subr.bf16.mxu0 0
  %1244 = vmatpush1.bf16.msra.mxu0 0
  %1245 = vmatprep.subr.bf16.mxu0 0
  %1246 = vmatpush1.bf16.msra.mxu0 0
  %1247 = vmatprep.subr.bf16.mxu0 0
  %1248 = vmatpush1.bf16.msra.mxu0 0
  %1249 = vmatprep.mubr.bf16.mxu0 0
  %1250 = vmatmul.mubr.bf16.gmra.mrb[0].mxu0 %v1192
  %v1251 = vpop.f32.mrb[0].mxu0
  %v1252 = vadd.f32 0.0, %v1251
  %v1253 = vpop.f32.mrb[0].mxu0
  %v1254 = vadd.f32 0.0, %v1253
  %v1255 = vpop.f32.mrb[0].mxu0
  %v1256 = vpop.f32.mrb[0].mxu0
  %1257 = vdwg.mxu0
  %1258 = vmatprep.subr.bf16.mxu0 0
  %1259 = vmatpush1.bf16.msra.mxu0 %v1195
  %1260 = vmatprep.subr.bf16.mxu0 0
  %1261 = vmatpush1.bf16.msra.mxu0 %v1198
  %1262 = vmatprep.subr.bf16.mxu0 0
  %1263 = vmatpush1.bf16.msra.mxu0 %v1201
  %1264 = vmatprep.subr.bf16.mxu0 0
  %1265 = vmatpush1.bf16.msra.mxu0 %v1204
  %1266 = vmatprep.subr.bf16.mxu0 0
  %1267 = vmatpush1.bf16.msra.mxu0 %v1207
  %1268 = vmatprep.subr.bf16.mxu0 0
  %1269 = vmatpush1.bf16.msra.mxu0 %v1210
  %1270 = vmatprep.subr.bf16.mxu0 0
  %1271 = vmatpush1.bf16.msra.mxu0 %v1213
  %1272 = vmatprep.subr.bf16.mxu0 0
  %1273 = vmatpush1.bf16.msra.mxu0 %v1216
  %1274 = vmatprep.subr.bf16.mxu0 0
  %1275 = vmatpush1.bf16.msra.mxu0 0
  %1276 = vmatprep.subr.bf16.mxu0 0
  %1277 = vmatpush1.bf16.msra.mxu0 0
  %1278 = vmatprep.subr.bf16.mxu0 0
  %1279 = vmatpush1.bf16.msra.mxu0 0
  %1280 = vmatprep.subr.bf16.mxu0 0
  %1281 = vmatpush1.bf16.msra.mxu0 0
  %1282 = vmatprep.subr.bf16.mxu0 0
  %1283 = vmatpush1.bf16.msra.mxu0 0
  %1284 = vmatprep.subr.bf16.mxu0 0
  %1285 = vmatpush1.bf16.msra.mxu0 0
  %1286 = vmatprep.subr.bf16.mxu0 0
  %1287 = vmatpush1.bf16.msra.mxu0 0
  %1288 = vmatprep.subr.bf16.mxu0 0
  %1289 = vmatpush1.bf16.msra.mxu0 0
  %1290 = vmatprep.mubr.bf16.mxu0 0
  %1291 = vmatmul.mubr.bf16.gmra.mrb[0].mxu0 %v1192
  %v1292 = vpop.f32.mrb[0].mxu0
  %v1293 = vadd.f32 0.0, %v1292
  %v1294 = vpop.f32.mrb[0].mxu0
  %v1295 = vpop.f32.mrb[0].mxu0
  %v1296 = vpop.f32.mrb[0].mxu0
  %1297 = vdwg.mxu0
  %s1298 = scalar_lea.vmem %s0, 168
  %v1299 = vld [vmem:[%s1298] sm:$0xff]
  %v1300 = vld [vmem:[%s1298 + $0x8] sm:$0xff]
  %v1301 = vld [vmem:[%s1298 + $0x10] sm:$0xff]
  %v1302 = vadd.f32 %v1299, %v1252
  %v1303 = vmul.f32 %v1302, 0.5
  %v1304 = vtanh.pop %v1303
  %v1305 = vmul.f32 %v1304, 0.5
  %v1306 = vadd.f32 %v1305, 0.5
  %v1307 = vadd.f32 %v1300, %v1254
  %v1308 = vmul.f32 %v1307, 0.5
  %v1309 = vtanh.pop %v1308
  %v1310 = vmul.f32 %v1309, 0.5
  %v1311 = vadd.f32 %v1310, 0.5
  %v1312 = vadd.f32 %v1293, %v267
  %v1313 = vmul.f32 %v1306, %v1312
  %v1314 = vadd.f32 %v1301, %v1313
  %v1315 = vtanh.pop %v1314
  %v1316 = vsub.f32 %v1191, %v1315
  %v1317 = vmul.f32 %v1311, %v1316
  %v1318 = vadd.f32 %v1315, %v1317
  %1319 = vst [vmem:[#allocation4] sm:$0xff] %v1318
  %v1320 = vpack.c.bf16 %v1318, %v1318
  %s1321 = scalar_lea.vmem %s3, 28
  %1322 = vst [vmem:[%s1321] sm:$0xf] %v1320
  // Predicated region
  $region51: #{rnn_model_forward.6} parent=0 // pred_check
    _
  $region52: #{rnn_model_forward.6} parent=0 // pred_check_branch
    %1324 = sbr.rel (0) target = $region54
  $region53: #{rnn_model_forward.6} parent=0 // pred_region
    _
  $region54: #{rnn_model_forward.6} parent=0 // pred_fallthru
    _
  // Predicated region
  $region55: #{rnn_model_forward.6} parent=0 // pred_check
    _
  $region56: #{rnn_model_forward.6} parent=0 // pred_check_branch
    %1326 = sbr.rel (0) target = $region58
  $region57: #{rnn_model_forward.6} parent=0 // pred_region
    _
  $region58: #{rnn_model_forward.6} parent=0 // pred_fallthru
    _
  %1327 = vsyncmov [#allocation3]
  %s1328 = vpop.sfrf %1327
  %p1329 = scmp.eq.s32.totalorder %s1328, 0
  %p1330 = pneg %p1329
  %1332 = shalt.err (%p1330)

</llo_original>
